<compile_context>
chip_gen: v6e
topology: v6e:2x2x1
jax: 0.10.0
libtpu: 0.0.40
codegen_flags: <defaults>
</compile_context>

<pallas_src>
import math
import jax
import jax.numpy as jnp
from jax.experimental import pallas as pl
from jax.experimental.pallas import tpu as pltpu

# ---- model hyperparameters (small, consistent with the module) -------------
D_MODEL = 32
NHEAD = 4
NUM_LAYERS = 2
DIM_FF = 64
SEQ = 8
BATCH = 2
HEAD_DIM = D_MODEL // NHEAD
TOKENS = SEQ * BATCH            # 16 tokens, s-major flatten of (S, B)
LANES = 128                     # TPU lane width; all params/activations padded to it
LN_EPS = 1e-5

_NN = (((1,), (0,)), ((), ()))   # a @ b
_NT = (((1,), (1,)), ((), ()))   # a @ b.T

# ---- packed parameter-slab layout (all row offsets are multiples of 8) -----
_W_ROWS = LANES                  # weight blocks stored as (128, 128)
_V_ROWS = TOKENS                 # bias / LN params pre-broadcast to (TOKENS, 128)

_LAYER_LAYOUT = [
    ("wq", _W_ROWS), ("wk", _W_ROWS), ("wv", _W_ROWS), ("wo", _W_ROWS),
    ("w1", _W_ROWS), ("w2", _W_ROWS),
    ("bq", _V_ROWS), ("bk", _V_ROWS), ("bv", _V_ROWS), ("bo", _V_ROWS),
    ("ln1w", _V_ROWS), ("ln1b", _V_ROWS),
    ("b1", _V_ROWS), ("b2", _V_ROWS),
    ("ln2w", _V_ROWS), ("ln2b", _V_ROWS),
]
_LAYER_OFF = {}
_r = 0
for _n, _rows in _LAYER_LAYOUT:
    _LAYER_OFF[_n] = _r
    _r += _rows
LAYER_ROWS = _r                                  # 6*128 + 10*16 = 928

_SHARED_LAYOUT = [("attn_bias", TOKENS), ("dmask", TOKENS), ("hmask", NHEAD * TOKENS)]
_SHARED_OFF = {}
_r = NUM_LAYERS * LAYER_ROWS
for _n, _rows in _SHARED_LAYOUT:
    _SHARED_OFF[_n] = _r
    _r += _rows
SLAB_ROWS = _r                                   # 2*928 + 16 + 16 + 64 = 1952


def encoder_stack_kernel(x_ref, p_ref, o_ref):
    """All NUM_LAYERS post-norm encoder layers, fused.

    x_ref: (TOKENS, 128)   activation, d_model zero-padded to 128 lanes
    p_ref: (SLAB_ROWS, 128) packed parameter / constant slab
    o_ref: (TOKENS, 128)
    """
    f32 = jnp.float32
    x = x_ref[...].astype(f32)

    def pslice(off, nrows):
        return p_ref[off:off + nrows, :].astype(f32)

    def lw(name, layer):     # (128, 128) weight block
        return pslice(layer * LAYER_ROWS + _LAYER_OFF[name], _W_ROWS)

    def lv(name, layer):     # (TOKENS, 128) pre-broadcast bias / LN param
        return pslice(layer * LAYER_ROWS + _LAYER_OFF[name], _V_ROWS)

    # shared constants (loaded once, reused by every layer / head)
    ab_off = _SHARED_OFF["attn_bias"]
    attn_bias = p_ref[ab_off:ab_off + TOKENS, 0:TOKENS].astype(f32)   # (T, T)
    dmask = pslice(_SHARED_OFF["dmask"], TOKENS)                      # d_model lane mask
    hm_off = _SHARED_OFF["hmask"]
    hmasks = [pslice(hm_off + h * TOKENS, TOKENS) for h in range(NHEAD)]

    def layer_norm(v, w, b):
        # padding lanes of v are zero, so the plain sum is the d_model sum
        mu = jnp.sum(v, axis=-1, keepdims=True) * (1.0 / D_MODEL)
        c = v - mu
        cm = c * dmask                              # exact centered variance over d_model
        var = jnp.sum(cm * cm, axis=-1, keepdims=True) * (1.0 / D_MODEL)
        # w, b are zero in padding lanes -> output padding stays exactly zero
        return c * jax.lax.rsqrt(var + LN_EPS) * w + b

    for l in range(NUM_LAYERS):                     # static unroll: layers fused
        wq, wk, wv, wo = lw("wq", l), lw("wk", l), lw("wv", l), lw("wo", l)
        w1, w2 = lw("w1", l), lw("w2", l)
        bq, bk, bv, bo = lv("bq", l), lv("bk", l), lv("bv", l), lv("bo", l)
        ln1w, ln1b = lv("ln1w", l), lv("ln1b", l)
        b1, b2 = lv("b1", l), lv("b2", l)
        ln2w, ln2b = lv("ln2w", l), lv("ln2b", l)

        # ---- QKV projections (full-lane MXU dots; 1/sqrt(head_dim) folded into wq/bq)
        q = jax.lax.dot_general(x, wq, _NN, preferred_element_type=f32) + bq
        k = jax.lax.dot_general(x, wk, _NN, preferred_element_type=f32) + bk
        v = jax.lax.dot_general(x, wv, _NN, preferred_element_type=f32) + bv

        # ---- multi-head attention via head masks (no lane slices, no concat) --------
        ctx = jnp.zeros((TOKENS, LANES), f32)
        for h in range(NHEAD):                      # static loop over heads
            qh = q * hmasks[h]                      # select head-h dims (VPU only)
            s = jax.lax.dot_general(qh, k, _NT, preferred_element_type=f32)
            s = s + attn_bias                       # kill cross-batch pairs
            s = s - jnp.max(s, axis=-1, keepdims=True)
            p = jnp.exp(s)
            p = p / jnp.sum(p, axis=-1, keepdims=True)      # exact divide (parity)
            # head-h context lands directly in its concat lanes; sum == concat
            ctx = ctx + jax.lax.dot_general(p, v * hmasks[h], _NN,
                                            preferred_element_type=f32)

        attn = jax.lax.dot_general(ctx, wo, _NN, preferred_element_type=f32) + bo
        x = layer_norm(x + attn, ln1w, ln1b)        # residual + norm 1 (post-norm)

        # ---- feed-forward (Linear -> ReLU -> Linear) ---------------------------------
        h1 = jax.lax.dot_general(x, w1, _NN, preferred_element_type=f32) + b1
        h1 = jnp.maximum(h1, 0.0)
        ff = jax.lax.dot_general(h1, w2, _NN, preferred_element_type=f32) + b2
        x = layer_norm(x + ff, ln2w, ln2b)          # residual + norm 2

    o_ref[...] = x.astype(o_ref.dtype)              # full-lane, unmasked store


@jax.jit
def transformer_encoder(src, slab):
    """src: (S, B, D) PyTorch convention -> (S, B, D). Single fused pallas_call."""
    S, B, D = src.shape
    x = src.reshape(S * B, D)                              # free s-major flatten
    x = jnp.pad(x, ((0, 0), (0, LANES - D)))               # lane-dense (pad d_model->128)
    out = pl.pallas_call(
        encoder_stack_kernel,
        out_shape=jax.ShapeDtypeStruct((S * B, LANES), src.dtype),
        in_specs=[pl.BlockSpec(memory_space=pltpu.MemorySpace.VMEM),
                  pl.BlockSpec(memory_space=pltpu.MemorySpace.VMEM)],
        out_specs=pl.BlockSpec(memory_space=pltpu.MemorySpace.VMEM),
    )(x, slab)
    return out[:, :D].reshape(S, B, D)


# ---------------------------- parameter packing -----------------------------
def _pad_block(a, rows):
    blk = jnp.zeros((rows, LANES), jnp.float32)
    return blk.at[:a.shape[0], :a.shape[1]].set(a.astype(jnp.float32))


def pack_params(layers):
    """Pack per-layer natural-shape params + constants into one (SLAB_ROWS,128) slab."""
    scale = 1.0 / math.sqrt(HEAD_DIM)
    blocks = []

    def wblock(w):                      # (in, out) weight -> (128, 128)
        return _pad_block(w, _W_ROWS)

    def vblock(b):                      # (1, dim) -> pre-broadcast (TOKENS, 128)
        return _pad_block(jnp.broadcast_to(b, (TOKENS, b.shape[-1])), _V_ROWS)

    for p in layers:                    # order must match _LAYER_LAYOUT
        blocks += [wblock(p["wq"] * scale), wblock(p["wk"]), wblock(p["wv"]),
                   wblock(p["wo"]), wblock(p["w1"]), wblock(p["w2"]),
                   vblock(p["bq"] * scale), vblock(p["bk"]), vblock(p["bv"]),
                   vblock(p["bo"]), vblock(p["ln1w"]), vblock(p["ln1b"]),
                   vblock(p["b1"]), vblock(p["b2"]), vblock(p["ln2w"]), vblock(p["ln2b"])]

    # batch-separation additive mask: token t belongs to batch t % BATCH (s-major flatten)
    tok = jnp.arange(TOKENS)
    same = (tok[:, None] % BATCH) == (tok[None, :] % BATCH)
    blocks.append(_pad_block(jnp.where(same, 0.0, -1e30).astype(jnp.float32), TOKENS))

    dmask = jnp.zeros((TOKENS, LANES), jnp.float32).at[:, :D_MODEL].set(1.0)
    blocks.append(dmask)

    for h in range(NHEAD):
        hm = jnp.zeros((TOKENS, LANES), jnp.float32)
        blocks.append(hm.at[:, h * HEAD_DIM:(h + 1) * HEAD_DIM].set(1.0))

    slab = jnp.concatenate(blocks, axis=0)
    assert slab.shape == (SLAB_ROWS, LANES), slab.shape
    return slab


def init_params(key):
    """Per-layer params in PyTorch-equivalent (in, out) layout, biases as (1, out)."""
    std = 0.02
    layers = []
    for k in jax.random.split(key, NUM_LAYERS):
        ks = jax.random.split(k, 8)
        w_in = std * jax.random.normal(ks[0], (D_MODEL, 3 * D_MODEL), jnp.float32)
        b_in = std * jax.random.normal(ks[1], (1, 3 * D_MODEL), jnp.float32)
        layers.append(dict(
            wq=w_in[:, :D_MODEL], wk=w_in[:, D_MODEL:2 * D_MODEL], wv=w_in[:, 2 * D_MODEL:],
            bq=b_in[:, :D_MODEL], bk=b_in[:, D_MODEL:2 * D_MODEL], bv=b_in[:, 2 * D_MODEL:],
            wo=std * jax.random.normal(ks[2], (D_MODEL, D_MODEL), jnp.float32),
            bo=std * jax.random.normal(ks[3], (1, D_MODEL), jnp.float32),
            ln1w=jnp.ones((1, D_MODEL), jnp.float32),
            ln1b=jnp.zeros((1, D_MODEL), jnp.float32),
            w1=std * jax.random.normal(ks[4], (D_MODEL, DIM_FF), jnp.float32),
            b1=std * jax.random.normal(ks[5], (1, DIM_FF), jnp.float32),
            w2=std * jax.random.normal(ks[6], (DIM_FF, D_MODEL), jnp.float32),
            b2=std * jax.random.normal(ks[7], (1, D_MODEL), jnp.float32),
            ln2w=jnp.ones((1, D_MODEL), jnp.float32),
            ln2b=jnp.zeros((1, D_MODEL), jnp.float32),
        ))
    return layers


if __name__ == "__main__":
    key = jax.random.PRNGKey(0)
    k_src, k_params = jax.random.split(key)

    # PyTorch nn.TransformerEncoder default layout: (seq, batch, d_model)
    src = jax.random.normal(k_src, (SEQ, BATCH, D_MODEL), jnp.float32)
    slab = pack_params(init_params(k_params))

    out = jax.block_until_ready(transformer_encoder(src, slab))

    assert out.shape == (SEQ, BATCH, D_MODEL), out.shape
    assert bool(jnp.all(jnp.isfinite(out)))
    print("KERNEL_OK")
</pallas_src>

<mosaic_0001>
module attributes {stable_mosaic.version = 11 : i64} {
  func.func @encoder_stack_kernel(%arg0: memref<16x128xf32, #tpu.memory_space<vmem>>, %arg1: memref<1952x128xf32, #tpu.memory_space<vmem>>, %arg2: memref<16x128xf32, #tpu.memory_space<vmem>>) attributes {dimension_semantics = [], scalar_prefetch = 0 : i64, scratch_operands = 0 : i64, tpu.core_type = #tpu.core_type<tc>} {
    %c0 = arith.constant 0 : index
    %c0_0 = arith.constant 0 : index
    %0 = vector.load %arg0[%c0, %c0_0] : memref<16x128xf32, #tpu.memory_space<vmem>>, vector<16x128xf32>
    %c1856 = arith.constant 1856 : index
    %c0_1 = arith.constant 0 : index
    %1 = vector.load %arg1[%c1856, %c0_1] : memref<1952x128xf32, #tpu.memory_space<vmem>>, vector<16x16xf32>
    %c1872 = arith.constant 1872 : index
    %c0_2 = arith.constant 0 : index
    %2 = vector.load %arg1[%c1872, %c0_2] : memref<1952x128xf32, #tpu.memory_space<vmem>>, vector<16x128xf32>
    %c1888 = arith.constant 1888 : index
    %c0_3 = arith.constant 0 : index
    %3 = vector.load %arg1[%c1888, %c0_3] : memref<1952x128xf32, #tpu.memory_space<vmem>>, vector<16x128xf32>
    %c1904 = arith.constant 1904 : index
    %c0_4 = arith.constant 0 : index
    %4 = vector.load %arg1[%c1904, %c0_4] : memref<1952x128xf32, #tpu.memory_space<vmem>>, vector<16x128xf32>
    %c1920 = arith.constant 1920 : index
    %c0_5 = arith.constant 0 : index
    %5 = vector.load %arg1[%c1920, %c0_5] : memref<1952x128xf32, #tpu.memory_space<vmem>>, vector<16x128xf32>
    %c1936 = arith.constant 1936 : index
    %c0_6 = arith.constant 0 : index
    %6 = vector.load %arg1[%c1936, %c0_6] : memref<1952x128xf32, #tpu.memory_space<vmem>>, vector<16x128xf32>
    %c0_7 = arith.constant 0 : index
    %c0_8 = arith.constant 0 : index
    %7 = vector.load %arg1[%c0_7, %c0_8] : memref<1952x128xf32, #tpu.memory_space<vmem>>, vector<128x128xf32>
    %c128 = arith.constant 128 : index
    %c0_9 = arith.constant 0 : index
    %8 = vector.load %arg1[%c128, %c0_9] : memref<1952x128xf32, #tpu.memory_space<vmem>>, vector<128x128xf32>
    %c256 = arith.constant 256 : index
    %c0_10 = arith.constant 0 : index
    %9 = vector.load %arg1[%c256, %c0_10] : memref<1952x128xf32, #tpu.memory_space<vmem>>, vector<128x128xf32>
    %c384 = arith.constant 384 : index
    %c0_11 = arith.constant 0 : index
    %10 = vector.load %arg1[%c384, %c0_11] : memref<1952x128xf32, #tpu.memory_space<vmem>>, vector<128x128xf32>
    %c512 = arith.constant 512 : index
    %c0_12 = arith.constant 0 : index
    %11 = vector.load %arg1[%c512, %c0_12] : memref<1952x128xf32, #tpu.memory_space<vmem>>, vector<128x128xf32>
    %c640 = arith.constant 640 : index
    %c0_13 = arith.constant 0 : index
    %12 = vector.load %arg1[%c640, %c0_13] : memref<1952x128xf32, #tpu.memory_space<vmem>>, vector<128x128xf32>
    %c768 = arith.constant 768 : index
    %c0_14 = arith.constant 0 : index
    %13 = vector.load %arg1[%c768, %c0_14] : memref<1952x128xf32, #tpu.memory_space<vmem>>, vector<16x128xf32>
    %c784 = arith.constant 784 : index
    %c0_15 = arith.constant 0 : index
    %14 = vector.load %arg1[%c784, %c0_15] : memref<1952x128xf32, #tpu.memory_space<vmem>>, vector<16x128xf32>
    %c800 = arith.constant 800 : index
    %c0_16 = arith.constant 0 : index
    %15 = vector.load %arg1[%c800, %c0_16] : memref<1952x128xf32, #tpu.memory_space<vmem>>, vector<16x128xf32>
    %c816 = arith.constant 816 : index
    %c0_17 = arith.constant 0 : index
    %16 = vector.load %arg1[%c816, %c0_17] : memref<1952x128xf32, #tpu.memory_space<vmem>>, vector<16x128xf32>
    %c832 = arith.constant 832 : index
    %c0_18 = arith.constant 0 : index
    %17 = vector.load %arg1[%c832, %c0_18] : memref<1952x128xf32, #tpu.memory_space<vmem>>, vector<16x128xf32>
    %c848 = arith.constant 848 : index
    %c0_19 = arith.constant 0 : index
    %18 = vector.load %arg1[%c848, %c0_19] : memref<1952x128xf32, #tpu.memory_space<vmem>>, vector<16x128xf32>
    %c864 = arith.constant 864 : index
    %c0_20 = arith.constant 0 : index
    %19 = vector.load %arg1[%c864, %c0_20] : memref<1952x128xf32, #tpu.memory_space<vmem>>, vector<16x128xf32>
    %c880 = arith.constant 880 : index
    %c0_21 = arith.constant 0 : index
    %20 = vector.load %arg1[%c880, %c0_21] : memref<1952x128xf32, #tpu.memory_space<vmem>>, vector<16x128xf32>
    %c896 = arith.constant 896 : index
    %c0_22 = arith.constant 0 : index
    %21 = vector.load %arg1[%c896, %c0_22] : memref<1952x128xf32, #tpu.memory_space<vmem>>, vector<16x128xf32>
    %c912 = arith.constant 912 : index
    %c0_23 = arith.constant 0 : index
    %22 = vector.load %arg1[%c912, %c0_23] : memref<1952x128xf32, #tpu.memory_space<vmem>>, vector<16x128xf32>
    %cst = arith.constant dense<0.000000e+00> : vector<16x128xf32>
    %23 = tpu.matmul %0, %7, %cst {dimension_numbers = #tpu.dot_dimension_numbers<[1], [0], [0], [1], [0, 0, 1, 1], [], []>} : vector<16x128xf32>, vector<128x128xf32>, vector<16x128xf32> -> vector<16x128xf32>
    %24 = arith.addf %23, %13 : vector<16x128xf32>
    %cst_24 = arith.constant dense<0.000000e+00> : vector<16x128xf32>
    %25 = tpu.matmul %0, %8, %cst_24 {dimension_numbers = #tpu.dot_dimension_numbers<[1], [0], [0], [1], [0, 0, 1, 1], [], []>} : vector<16x128xf32>, vector<128x128xf32>, vector<16x128xf32> -> vector<16x128xf32>
    %26 = arith.addf %25, %14 : vector<16x128xf32>
    %cst_25 = arith.constant dense<0.000000e+00> : vector<16x128xf32>
    %27 = tpu.matmul %0, %9, %cst_25 {dimension_numbers = #tpu.dot_dimension_numbers<[1], [0], [0], [1], [0, 0, 1, 1], [], []>} : vector<16x128xf32>, vector<128x128xf32>, vector<16x128xf32> -> vector<16x128xf32>
    %28 = arith.addf %27, %15 : vector<16x128xf32>
    %cst_26 = arith.constant 0.000000e+00 : f32
    %29 = vector.broadcast %cst_26 : f32 to vector<16x128xf32>
    %30 = arith.mulf %24, %3 : vector<16x128xf32>
    %cst_27 = arith.constant dense<0.000000e+00> : vector<16x16xf32>
    %31 = tpu.matmul %30, %26, %cst_27 {dimension_numbers = #tpu.dot_dimension_numbers<[1], [1], [0], [0], [0, 0, 1, 0], [], []>} : vector<16x128xf32>, vector<16x128xf32>, vector<16x16xf32> -> vector<16x16xf32>
    %32 = arith.addf %31, %1 : vector<16x16xf32>
    %cst_28 = arith.constant dense<0xFF800000> : vector<16xf32>
    %33 = vector.multi_reduction <maximumf>, %32, %cst_28 [1] : vector<16x16xf32> to vector<16xf32>
    %34 = vector.shape_cast %33 : vector<16xf32> to vector<16x1xf32>
    %35 = vector.broadcast %34 : vector<16x1xf32> to vector<16x16xf32>
    %36 = arith.subf %32, %35 : vector<16x16xf32>
    %37 = math.exp %36 : vector<16x16xf32>
    %cst_29 = arith.constant dense<0.000000e+00> : vector<16xf32>
    %38 = vector.multi_reduction <add>, %37, %cst_29 [1] : vector<16x16xf32> to vector<16xf32>
    %39 = vector.shape_cast %38 : vector<16xf32> to vector<16x1xf32>
    %40 = vector.broadcast %39 : vector<16x1xf32> to vector<16x16xf32>
    %41 = arith.divf %37, %40 : vector<16x16xf32>
    %42 = arith.mulf %28, %3 : vector<16x128xf32>
    %cst_30 = arith.constant dense<0.000000e+00> : vector<16x128xf32>
    %43 = tpu.matmul %41, %42, %cst_30 {dimension_numbers = #tpu.dot_dimension_numbers<[1], [0], [0], [1], [0, 0, 1, 1], [], []>} : vector<16x16xf32>, vector<16x128xf32>, vector<16x128xf32> -> vector<16x128xf32>
    %44 = arith.addf %29, %43 : vector<16x128xf32>
    %45 = arith.mulf %24, %4 : vector<16x128xf32>
    %cst_31 = arith.constant dense<0.000000e+00> : vector<16x16xf32>
    %46 = tpu.matmul %45, %26, %cst_31 {dimension_numbers = #tpu.dot_dimension_numbers<[1], [1], [0], [0], [0, 0, 1, 0], [], []>} : vector<16x128xf32>, vector<16x128xf32>, vector<16x16xf32> -> vector<16x16xf32>
    %47 = arith.addf %46, %1 : vector<16x16xf32>
    %cst_32 = arith.constant dense<0xFF800000> : vector<16xf32>
    %48 = vector.multi_reduction <maximumf>, %47, %cst_32 [1] : vector<16x16xf32> to vector<16xf32>
    %49 = vector.shape_cast %48 : vector<16xf32> to vector<16x1xf32>
    %50 = vector.broadcast %49 : vector<16x1xf32> to vector<16x16xf32>
    %51 = arith.subf %47, %50 : vector<16x16xf32>
    %52 = math.exp %51 : vector<16x16xf32>
    %cst_33 = arith.constant dense<0.000000e+00> : vector<16xf32>
    %53 = vector.multi_reduction <add>, %52, %cst_33 [1] : vector<16x16xf32> to vector<16xf32>
    %54 = vector.shape_cast %53 : vector<16xf32> to vector<16x1xf32>
    %55 = vector.broadcast %54 : vector<16x1xf32> to vector<16x16xf32>
    %56 = arith.divf %52, %55 : vector<16x16xf32>
    %57 = arith.mulf %28, %4 : vector<16x128xf32>
    %cst_34 = arith.constant dense<0.000000e+00> : vector<16x128xf32>
    %58 = tpu.matmul %56, %57, %cst_34 {dimension_numbers = #tpu.dot_dimension_numbers<[1], [0], [0], [1], [0, 0, 1, 1], [], []>} : vector<16x16xf32>, vector<16x128xf32>, vector<16x128xf32> -> vector<16x128xf32>
    %59 = arith.addf %44, %58 : vector<16x128xf32>
    %60 = arith.mulf %24, %5 : vector<16x128xf32>
    %cst_35 = arith.constant dense<0.000000e+00> : vector<16x16xf32>
    %61 = tpu.matmul %60, %26, %cst_35 {dimension_numbers = #tpu.dot_dimension_numbers<[1], [1], [0], [0], [0, 0, 1, 0], [], []>} : vector<16x128xf32>, vector<16x128xf32>, vector<16x16xf32> -> vector<16x16xf32>
    %62 = arith.addf %61, %1 : vector<16x16xf32>
    %cst_36 = arith.constant dense<0xFF800000> : vector<16xf32>
    %63 = vector.multi_reduction <maximumf>, %62, %cst_36 [1] : vector<16x16xf32> to vector<16xf32>
    %64 = vector.shape_cast %63 : vector<16xf32> to vector<16x1xf32>
    %65 = vector.broadcast %64 : vector<16x1xf32> to vector<16x16xf32>
    %66 = arith.subf %62, %65 : vector<16x16xf32>
    %67 = math.exp %66 : vector<16x16xf32>
    %cst_37 = arith.constant dense<0.000000e+00> : vector<16xf32>
    %68 = vector.multi_reduction <add>, %67, %cst_37 [1] : vector<16x16xf32> to vector<16xf32>
    %69 = vector.shape_cast %68 : vector<16xf32> to vector<16x1xf32>
    %70 = vector.broadcast %69 : vector<16x1xf32> to vector<16x16xf32>
    %71 = arith.divf %67, %70 : vector<16x16xf32>
    %72 = arith.mulf %28, %5 : vector<16x128xf32>
    %cst_38 = arith.constant dense<0.000000e+00> : vector<16x128xf32>
    %73 = tpu.matmul %71, %72, %cst_38 {dimension_numbers = #tpu.dot_dimension_numbers<[1], [0], [0], [1], [0, 0, 1, 1], [], []>} : vector<16x16xf32>, vector<16x128xf32>, vector<16x128xf32> -> vector<16x128xf32>
    %74 = arith.addf %59, %73 : vector<16x128xf32>
    %75 = arith.mulf %24, %6 : vector<16x128xf32>
    %cst_39 = arith.constant dense<0.000000e+00> : vector<16x16xf32>
    %76 = tpu.matmul %75, %26, %cst_39 {dimension_numbers = #tpu.dot_dimension_numbers<[1], [1], [0], [0], [0, 0, 1, 0], [], []>} : vector<16x128xf32>, vector<16x128xf32>, vector<16x16xf32> -> vector<16x16xf32>
    %77 = arith.addf %76, %1 : vector<16x16xf32>
    %cst_40 = arith.constant dense<0xFF800000> : vector<16xf32>
    %78 = vector.multi_reduction <maximumf>, %77, %cst_40 [1] : vector<16x16xf32> to vector<16xf32>
    %79 = vector.shape_cast %78 : vector<16xf32> to vector<16x1xf32>
    %80 = vector.broadcast %79 : vector<16x1xf32> to vector<16x16xf32>
    %81 = arith.subf %77, %80 : vector<16x16xf32>
    %82 = math.exp %81 : vector<16x16xf32>
    %cst_41 = arith.constant dense<0.000000e+00> : vector<16xf32>
    %83 = vector.multi_reduction <add>, %82, %cst_41 [1] : vector<16x16xf32> to vector<16xf32>
    %84 = vector.shape_cast %83 : vector<16xf32> to vector<16x1xf32>
    %85 = vector.broadcast %84 : vector<16x1xf32> to vector<16x16xf32>
    %86 = arith.divf %82, %85 : vector<16x16xf32>
    %87 = arith.mulf %28, %6 : vector<16x128xf32>
    %cst_42 = arith.constant dense<0.000000e+00> : vector<16x128xf32>
    %88 = tpu.matmul %86, %87, %cst_42 {dimension_numbers = #tpu.dot_dimension_numbers<[1], [0], [0], [1], [0, 0, 1, 1], [], []>} : vector<16x16xf32>, vector<16x128xf32>, vector<16x128xf32> -> vector<16x128xf32>
    %89 = arith.addf %74, %88 : vector<16x128xf32>
    %cst_43 = arith.constant dense<0.000000e+00> : vector<16x128xf32>
    %90 = tpu.matmul %89, %10, %cst_43 {dimension_numbers = #tpu.dot_dimension_numbers<[1], [0], [0], [1], [0, 0, 1, 1], [], []>} : vector<16x128xf32>, vector<128x128xf32>, vector<16x128xf32> -> vector<16x128xf32>
    %91 = arith.addf %90, %16 : vector<16x128xf32>
    %92 = arith.addf %0, %91 : vector<16x128xf32>
    %cst_44 = arith.constant dense<0.000000e+00> : vector<16xf32>
    %93 = vector.multi_reduction <add>, %92, %cst_44 [1] : vector<16x128xf32> to vector<16xf32>
    %94 = vector.shape_cast %93 : vector<16xf32> to vector<16x1xf32>
    %cst_45 = arith.constant 3.125000e-02 : f32
    %95 = vector.broadcast %cst_45 : f32 to vector<16x1xf32>
    %96 = arith.mulf %94, %95 : vector<16x1xf32>
    %97 = vector.broadcast %96 : vector<16x1xf32> to vector<16x128xf32>
    %98 = arith.subf %92, %97 : vector<16x128xf32>
    %99 = arith.mulf %98, %2 : vector<16x128xf32>
    %100 = arith.mulf %99, %99 : vector<16x128xf32>
    %cst_46 = arith.constant dense<0.000000e+00> : vector<16xf32>
    %101 = vector.multi_reduction <add>, %100, %cst_46 [1] : vector<16x128xf32> to vector<16xf32>
    %102 = vector.shape_cast %101 : vector<16xf32> to vector<16x1xf32>
    %cst_47 = arith.constant 3.125000e-02 : f32
    %103 = vector.broadcast %cst_47 : f32 to vector<16x1xf32>
    %104 = arith.mulf %102, %103 : vector<16x1xf32>
    %cst_48 = arith.constant 9.99999974E-6 : f32
    %105 = vector.broadcast %cst_48 : f32 to vector<16x1xf32>
    %106 = arith.addf %104, %105 : vector<16x1xf32>
    %107 = math.rsqrt %106 : vector<16x1xf32>
    %108 = vector.broadcast %107 : vector<16x1xf32> to vector<16x128xf32>
    %109 = arith.mulf %98, %108 : vector<16x128xf32>
    %110 = arith.mulf %109, %17 : vector<16x128xf32>
    %111 = arith.addf %110, %18 : vector<16x128xf32>
    %cst_49 = arith.constant dense<0.000000e+00> : vector<16x128xf32>
    %112 = tpu.matmul %111, %11, %cst_49 {dimension_numbers = #tpu.dot_dimension_numbers<[1], [0], [0], [1], [0, 0, 1, 1], [], []>} : vector<16x128xf32>, vector<128x128xf32>, vector<16x128xf32> -> vector<16x128xf32>
    %113 = arith.addf %112, %19 : vector<16x128xf32>
    %cst_50 = arith.constant 0.000000e+00 : f32
    %114 = vector.broadcast %cst_50 : f32 to vector<16x128xf32>
    %115 = arith.maximumf %113, %114 : vector<16x128xf32>
    %cst_51 = arith.constant dense<0.000000e+00> : vector<16x128xf32>
    %116 = tpu.matmul %115, %12, %cst_51 {dimension_numbers = #tpu.dot_dimension_numbers<[1], [0], [0], [1], [0, 0, 1, 1], [], []>} : vector<16x128xf32>, vector<128x128xf32>, vector<16x128xf32> -> vector<16x128xf32>
    %117 = arith.addf %116, %20 : vector<16x128xf32>
    %118 = arith.addf %111, %117 : vector<16x128xf32>
    %cst_52 = arith.constant dense<0.000000e+00> : vector<16xf32>
    %119 = vector.multi_reduction <add>, %118, %cst_52 [1] : vector<16x128xf32> to vector<16xf32>
    %120 = vector.shape_cast %119 : vector<16xf32> to vector<16x1xf32>
    %cst_53 = arith.constant 3.125000e-02 : f32
    %121 = vector.broadcast %cst_53 : f32 to vector<16x1xf32>
    %122 = arith.mulf %120, %121 : vector<16x1xf32>
    %123 = vector.broadcast %122 : vector<16x1xf32> to vector<16x128xf32>
    %124 = arith.subf %118, %123 : vector<16x128xf32>
    %125 = arith.mulf %124, %2 : vector<16x128xf32>
    %126 = arith.mulf %125, %125 : vector<16x128xf32>
    %cst_54 = arith.constant dense<0.000000e+00> : vector<16xf32>
    %127 = vector.multi_reduction <add>, %126, %cst_54 [1] : vector<16x128xf32> to vector<16xf32>
    %128 = vector.shape_cast %127 : vector<16xf32> to vector<16x1xf32>
    %cst_55 = arith.constant 3.125000e-02 : f32
    %129 = vector.broadcast %cst_55 : f32 to vector<16x1xf32>
    %130 = arith.mulf %128, %129 : vector<16x1xf32>
    %cst_56 = arith.constant 9.99999974E-6 : f32
    %131 = vector.broadcast %cst_56 : f32 to vector<16x1xf32>
    %132 = arith.addf %130, %131 : vector<16x1xf32>
    %133 = math.rsqrt %132 : vector<16x1xf32>
    %134 = vector.broadcast %133 : vector<16x1xf32> to vector<16x128xf32>
    %135 = arith.mulf %124, %134 : vector<16x128xf32>
    %136 = arith.mulf %135, %21 : vector<16x128xf32>
    %137 = arith.addf %136, %22 : vector<16x128xf32>
    %c928 = arith.constant 928 : index
    %c0_57 = arith.constant 0 : index
    %138 = vector.load %arg1[%c928, %c0_57] : memref<1952x128xf32, #tpu.memory_space<vmem>>, vector<128x128xf32>
    %c1056 = arith.constant 1056 : index
    %c0_58 = arith.constant 0 : index
    %139 = vector.load %arg1[%c1056, %c0_58] : memref<1952x128xf32, #tpu.memory_space<vmem>>, vector<128x128xf32>
    %c1184 = arith.constant 1184 : index
    %c0_59 = arith.constant 0 : index
    %140 = vector.load %arg1[%c1184, %c0_59] : memref<1952x128xf32, #tpu.memory_space<vmem>>, vector<128x128xf32>
    %c1312 = arith.constant 1312 : index
    %c0_60 = arith.constant 0 : index
    %141 = vector.load %arg1[%c1312, %c0_60] : memref<1952x128xf32, #tpu.memory_space<vmem>>, vector<128x128xf32>
    %c1440 = arith.constant 1440 : index
    %c0_61 = arith.constant 0 : index
    %142 = vector.load %arg1[%c1440, %c0_61] : memref<1952x128xf32, #tpu.memory_space<vmem>>, vector<128x128xf32>
    %c1568 = arith.constant 1568 : index
    %c0_62 = arith.constant 0 : index
    %143 = vector.load %arg1[%c1568, %c0_62] : memref<1952x128xf32, #tpu.memory_space<vmem>>, vector<128x128xf32>
    %c1696 = arith.constant 1696 : index
    %c0_63 = arith.constant 0 : index
    %144 = vector.load %arg1[%c1696, %c0_63] : memref<1952x128xf32, #tpu.memory_space<vmem>>, vector<16x128xf32>
    %c1712 = arith.constant 1712 : index
    %c0_64 = arith.constant 0 : index
    %145 = vector.load %arg1[%c1712, %c0_64] : memref<1952x128xf32, #tpu.memory_space<vmem>>, vector<16x128xf32>
    %c1728 = arith.constant 1728 : index
    %c0_65 = arith.constant 0 : index
    %146 = vector.load %arg1[%c1728, %c0_65] : memref<1952x128xf32, #tpu.memory_space<vmem>>, vector<16x128xf32>
    %c1744 = arith.constant 1744 : index
    %c0_66 = arith.constant 0 : index
    %147 = vector.load %arg1[%c1744, %c0_66] : memref<1952x128xf32, #tpu.memory_space<vmem>>, vector<16x128xf32>
    %c1760 = arith.constant 1760 : index
    %c0_67 = arith.constant 0 : index
    %148 = vector.load %arg1[%c1760, %c0_67] : memref<1952x128xf32, #tpu.memory_space<vmem>>, vector<16x128xf32>
    %c1776 = arith.constant 1776 : index
    %c0_68 = arith.constant 0 : index
    %149 = vector.load %arg1[%c1776, %c0_68] : memref<1952x128xf32, #tpu.memory_space<vmem>>, vector<16x128xf32>
    %c1792 = arith.constant 1792 : index
    %c0_69 = arith.constant 0 : index
    %150 = vector.load %arg1[%c1792, %c0_69] : memref<1952x128xf32, #tpu.memory_space<vmem>>, vector<16x128xf32>
    %c1808 = arith.constant 1808 : index
    %c0_70 = arith.constant 0 : index
    %151 = vector.load %arg1[%c1808, %c0_70] : memref<1952x128xf32, #tpu.memory_space<vmem>>, vector<16x128xf32>
    %c1824 = arith.constant 1824 : index
    %c0_71 = arith.constant 0 : index
    %152 = vector.load %arg1[%c1824, %c0_71] : memref<1952x128xf32, #tpu.memory_space<vmem>>, vector<16x128xf32>
    %c1840 = arith.constant 1840 : index
    %c0_72 = arith.constant 0 : index
    %153 = vector.load %arg1[%c1840, %c0_72] : memref<1952x128xf32, #tpu.memory_space<vmem>>, vector<16x128xf32>
    %cst_73 = arith.constant dense<0.000000e+00> : vector<16x128xf32>
    %154 = tpu.matmul %137, %138, %cst_73 {dimension_numbers = #tpu.dot_dimension_numbers<[1], [0], [0], [1], [0, 0, 1, 1], [], []>} : vector<16x128xf32>, vector<128x128xf32>, vector<16x128xf32> -> vector<16x128xf32>
    %155 = arith.addf %154, %144 : vector<16x128xf32>
    %cst_74 = arith.constant dense<0.000000e+00> : vector<16x128xf32>
    %156 = tpu.matmul %137, %139, %cst_74 {dimension_numbers = #tpu.dot_dimension_numbers<[1], [0], [0], [1], [0, 0, 1, 1], [], []>} : vector<16x128xf32>, vector<128x128xf32>, vector<16x128xf32> -> vector<16x128xf32>
    %157 = arith.addf %156, %145 : vector<16x128xf32>
    %cst_75 = arith.constant dense<0.000000e+00> : vector<16x128xf32>
    %158 = tpu.matmul %137, %140, %cst_75 {dimension_numbers = #tpu.dot_dimension_numbers<[1], [0], [0], [1], [0, 0, 1, 1], [], []>} : vector<16x128xf32>, vector<128x128xf32>, vector<16x128xf32> -> vector<16x128xf32>
    %159 = arith.addf %158, %146 : vector<16x128xf32>
    %cst_76 = arith.constant 0.000000e+00 : f32
    %160 = vector.broadcast %cst_76 : f32 to vector<16x128xf32>
    %161 = arith.mulf %155, %3 : vector<16x128xf32>
    %cst_77 = arith.constant dense<0.000000e+00> : vector<16x16xf32>
    %162 = tpu.matmul %161, %157, %cst_77 {dimension_numbers = #tpu.dot_dimension_numbers<[1], [1], [0], [0], [0, 0, 1, 0], [], []>} : vector<16x128xf32>, vector<16x128xf32>, vector<16x16xf32> -> vector<16x16xf32>
    %163 = arith.addf %162, %1 : vector<16x16xf32>
    %cst_78 = arith.constant dense<0xFF800000> : vector<16xf32>
    %164 = vector.multi_reduction <maximumf>, %163, %cst_78 [1] : vector<16x16xf32> to vector<16xf32>
    %165 = vector.shape_cast %164 : vector<16xf32> to vector<16x1xf32>
    %166 = vector.broadcast %165 : vector<16x1xf32> to vector<16x16xf32>
    %167 = arith.subf %163, %166 : vector<16x16xf32>
    %168 = math.exp %167 : vector<16x16xf32>
    %cst_79 = arith.constant dense<0.000000e+00> : vector<16xf32>
    %169 = vector.multi_reduction <add>, %168, %cst_79 [1] : vector<16x16xf32> to vector<16xf32>
    %170 = vector.shape_cast %169 : vector<16xf32> to vector<16x1xf32>
    %171 = vector.broadcast %170 : vector<16x1xf32> to vector<16x16xf32>
    %172 = arith.divf %168, %171 : vector<16x16xf32>
    %173 = arith.mulf %159, %3 : vector<16x128xf32>
    %cst_80 = arith.constant dense<0.000000e+00> : vector<16x128xf32>
    %174 = tpu.matmul %172, %173, %cst_80 {dimension_numbers = #tpu.dot_dimension_numbers<[1], [0], [0], [1], [0, 0, 1, 1], [], []>} : vector<16x16xf32>, vector<16x128xf32>, vector<16x128xf32> -> vector<16x128xf32>
    %175 = arith.addf %160, %174 : vector<16x128xf32>
    %176 = arith.mulf %155, %4 : vector<16x128xf32>
    %cst_81 = arith.constant dense<0.000000e+00> : vector<16x16xf32>
    %177 = tpu.matmul %176, %157, %cst_81 {dimension_numbers = #tpu.dot_dimension_numbers<[1], [1], [0], [0], [0, 0, 1, 0], [], []>} : vector<16x128xf32>, vector<16x128xf32>, vector<16x16xf32> -> vector<16x16xf32>
    %178 = arith.addf %177, %1 : vector<16x16xf32>
    %cst_82 = arith.constant dense<0xFF800000> : vector<16xf32>
    %179 = vector.multi_reduction <maximumf>, %178, %cst_82 [1] : vector<16x16xf32> to vector<16xf32>
    %180 = vector.shape_cast %179 : vector<16xf32> to vector<16x1xf32>
    %181 = vector.broadcast %180 : vector<16x1xf32> to vector<16x16xf32>
    %182 = arith.subf %178, %181 : vector<16x16xf32>
    %183 = math.exp %182 : vector<16x16xf32>
    %cst_83 = arith.constant dense<0.000000e+00> : vector<16xf32>
    %184 = vector.multi_reduction <add>, %183, %cst_83 [1] : vector<16x16xf32> to vector<16xf32>
    %185 = vector.shape_cast %184 : vector<16xf32> to vector<16x1xf32>
    %186 = vector.broadcast %185 : vector<16x1xf32> to vector<16x16xf32>
    %187 = arith.divf %183, %186 : vector<16x16xf32>
    %188 = arith.mulf %159, %4 : vector<16x128xf32>
    %cst_84 = arith.constant dense<0.000000e+00> : vector<16x128xf32>
    %189 = tpu.matmul %187, %188, %cst_84 {dimension_numbers = #tpu.dot_dimension_numbers<[1], [0], [0], [1], [0, 0, 1, 1], [], []>} : vector<16x16xf32>, vector<16x128xf32>, vector<16x128xf32> -> vector<16x128xf32>
    %190 = arith.addf %175, %189 : vector<16x128xf32>
    %191 = arith.mulf %155, %5 : vector<16x128xf32>
    %cst_85 = arith.constant dense<0.000000e+00> : vector<16x16xf32>
    %192 = tpu.matmul %191, %157, %cst_85 {dimension_numbers = #tpu.dot_dimension_numbers<[1], [1], [0], [0], [0, 0, 1, 0], [], []>} : vector<16x128xf32>, vector<16x128xf32>, vector<16x16xf32> -> vector<16x16xf32>
    %193 = arith.addf %192, %1 : vector<16x16xf32>
    %cst_86 = arith.constant dense<0xFF800000> : vector<16xf32>
    %194 = vector.multi_reduction <maximumf>, %193, %cst_86 [1] : vector<16x16xf32> to vector<16xf32>
    %195 = vector.shape_cast %194 : vector<16xf32> to vector<16x1xf32>
    %196 = vector.broadcast %195 : vector<16x1xf32> to vector<16x16xf32>
    %197 = arith.subf %193, %196 : vector<16x16xf32>
    %198 = math.exp %197 : vector<16x16xf32>
    %cst_87 = arith.constant dense<0.000000e+00> : vector<16xf32>
    %199 = vector.multi_reduction <add>, %198, %cst_87 [1] : vector<16x16xf32> to vector<16xf32>
    %200 = vector.shape_cast %199 : vector<16xf32> to vector<16x1xf32>
    %201 = vector.broadcast %200 : vector<16x1xf32> to vector<16x16xf32>
    %202 = arith.divf %198, %201 : vector<16x16xf32>
    %203 = arith.mulf %159, %5 : vector<16x128xf32>
    %cst_88 = arith.constant dense<0.000000e+00> : vector<16x128xf32>
    %204 = tpu.matmul %202, %203, %cst_88 {dimension_numbers = #tpu.dot_dimension_numbers<[1], [0], [0], [1], [0, 0, 1, 1], [], []>} : vector<16x16xf32>, vector<16x128xf32>, vector<16x128xf32> -> vector<16x128xf32>
    %205 = arith.addf %190, %204 : vector<16x128xf32>
    %206 = arith.mulf %155, %6 : vector<16x128xf32>
    %cst_89 = arith.constant dense<0.000000e+00> : vector<16x16xf32>
    %207 = tpu.matmul %206, %157, %cst_89 {dimension_numbers = #tpu.dot_dimension_numbers<[1], [1], [0], [0], [0, 0, 1, 0], [], []>} : vector<16x128xf32>, vector<16x128xf32>, vector<16x16xf32> -> vector<16x16xf32>
    %208 = arith.addf %207, %1 : vector<16x16xf32>
    %cst_90 = arith.constant dense<0xFF800000> : vector<16xf32>
    %209 = vector.multi_reduction <maximumf>, %208, %cst_90 [1] : vector<16x16xf32> to vector<16xf32>
    %210 = vector.shape_cast %209 : vector<16xf32> to vector<16x1xf32>
    %211 = vector.broadcast %210 : vector<16x1xf32> to vector<16x16xf32>
    %212 = arith.subf %208, %211 : vector<16x16xf32>
    %213 = math.exp %212 : vector<16x16xf32>
    %cst_91 = arith.constant dense<0.000000e+00> : vector<16xf32>
    %214 = vector.multi_reduction <add>, %213, %cst_91 [1] : vector<16x16xf32> to vector<16xf32>
    %215 = vector.shape_cast %214 : vector<16xf32> to vector<16x1xf32>
    %216 = vector.broadcast %215 : vector<16x1xf32> to vector<16x16xf32>
    %217 = arith.divf %213, %216 : vector<16x16xf32>
    %218 = arith.mulf %159, %6 : vector<16x128xf32>
    %cst_92 = arith.constant dense<0.000000e+00> : vector<16x128xf32>
    %219 = tpu.matmul %217, %218, %cst_92 {dimension_numbers = #tpu.dot_dimension_numbers<[1], [0], [0], [1], [0, 0, 1, 1], [], []>} : vector<16x16xf32>, vector<16x128xf32>, vector<16x128xf32> -> vector<16x128xf32>
    %220 = arith.addf %205, %219 : vector<16x128xf32>
    %cst_93 = arith.constant dense<0.000000e+00> : vector<16x128xf32>
    %221 = tpu.matmul %220, %141, %cst_93 {dimension_numbers = #tpu.dot_dimension_numbers<[1], [0], [0], [1], [0, 0, 1, 1], [], []>} : vector<16x128xf32>, vector<128x128xf32>, vector<16x128xf32> -> vector<16x128xf32>
    %222 = arith.addf %221, %147 : vector<16x128xf32>
    %223 = arith.addf %137, %222 : vector<16x128xf32>
    %cst_94 = arith.constant dense<0.000000e+00> : vector<16xf32>
    %224 = vector.multi_reduction <add>, %223, %cst_94 [1] : vector<16x128xf32> to vector<16xf32>
    %225 = vector.shape_cast %224 : vector<16xf32> to vector<16x1xf32>
    %cst_95 = arith.constant 3.125000e-02 : f32
    %226 = vector.broadcast %cst_95 : f32 to vector<16x1xf32>
    %227 = arith.mulf %225, %226 : vector<16x1xf32>
    %228 = vector.broadcast %227 : vector<16x1xf32> to vector<16x128xf32>
    %229 = arith.subf %223, %228 : vector<16x128xf32>
    %230 = arith.mulf %229, %2 : vector<16x128xf32>
    %231 = arith.mulf %230, %230 : vector<16x128xf32>
    %cst_96 = arith.constant dense<0.000000e+00> : vector<16xf32>
    %232 = vector.multi_reduction <add>, %231, %cst_96 [1] : vector<16x128xf32> to vector<16xf32>
    %233 = vector.shape_cast %232 : vector<16xf32> to vector<16x1xf32>
    %cst_97 = arith.constant 3.125000e-02 : f32
    %234 = vector.broadcast %cst_97 : f32 to vector<16x1xf32>
    %235 = arith.mulf %233, %234 : vector<16x1xf32>
    %cst_98 = arith.constant 9.99999974E-6 : f32
    %236 = vector.broadcast %cst_98 : f32 to vector<16x1xf32>
    %237 = arith.addf %235, %236 : vector<16x1xf32>
    %238 = math.rsqrt %237 : vector<16x1xf32>
    %239 = vector.broadcast %238 : vector<16x1xf32> to vector<16x128xf32>
    %240 = arith.mulf %229, %239 : vector<16x128xf32>
    %241 = arith.mulf %240, %148 : vector<16x128xf32>
    %242 = arith.addf %241, %149 : vector<16x128xf32>
    %cst_99 = arith.constant dense<0.000000e+00> : vector<16x128xf32>
    %243 = tpu.matmul %242, %142, %cst_99 {dimension_numbers = #tpu.dot_dimension_numbers<[1], [0], [0], [1], [0, 0, 1, 1], [], []>} : vector<16x128xf32>, vector<128x128xf32>, vector<16x128xf32> -> vector<16x128xf32>
    %244 = arith.addf %243, %150 : vector<16x128xf32>
    %cst_100 = arith.constant 0.000000e+00 : f32
    %245 = vector.broadcast %cst_100 : f32 to vector<16x128xf32>
    %246 = arith.maximumf %244, %245 : vector<16x128xf32>
    %cst_101 = arith.constant dense<0.000000e+00> : vector<16x128xf32>
    %247 = tpu.matmul %246, %143, %cst_101 {dimension_numbers = #tpu.dot_dimension_numbers<[1], [0], [0], [1], [0, 0, 1, 1], [], []>} : vector<16x128xf32>, vector<128x128xf32>, vector<16x128xf32> -> vector<16x128xf32>
    %248 = arith.addf %247, %151 : vector<16x128xf32>
    %249 = arith.addf %242, %248 : vector<16x128xf32>
    %cst_102 = arith.constant dense<0.000000e+00> : vector<16xf32>
    %250 = vector.multi_reduction <add>, %249, %cst_102 [1] : vector<16x128xf32> to vector<16xf32>
    %251 = vector.shape_cast %250 : vector<16xf32> to vector<16x1xf32>
    %cst_103 = arith.constant 3.125000e-02 : f32
    %252 = vector.broadcast %cst_103 : f32 to vector<16x1xf32>
    %253 = arith.mulf %251, %252 : vector<16x1xf32>
    %254 = vector.broadcast %253 : vector<16x1xf32> to vector<16x128xf32>
    %255 = arith.subf %249, %254 : vector<16x128xf32>
    %256 = arith.mulf %255, %2 : vector<16x128xf32>
    %257 = arith.mulf %256, %256 : vector<16x128xf32>
    %cst_104 = arith.constant dense<0.000000e+00> : vector<16xf32>
    %258 = vector.multi_reduction <add>, %257, %cst_104 [1] : vector<16x128xf32> to vector<16xf32>
    %259 = vector.shape_cast %258 : vector<16xf32> to vector<16x1xf32>
    %cst_105 = arith.constant 3.125000e-02 : f32
    %260 = vector.broadcast %cst_105 : f32 to vector<16x1xf32>
    %261 = arith.mulf %259, %260 : vector<16x1xf32>
    %cst_106 = arith.constant 9.99999974E-6 : f32
    %262 = vector.broadcast %cst_106 : f32 to vector<16x1xf32>
    %263 = arith.addf %261, %262 : vector<16x1xf32>
    %264 = math.rsqrt %263 : vector<16x1xf32>
    %265 = vector.broadcast %264 : vector<16x1xf32> to vector<16x128xf32>
    %266 = arith.mulf %255, %265 : vector<16x128xf32>
    %267 = arith.mulf %266, %152 : vector<16x128xf32>
    %268 = arith.addf %267, %153 : vector<16x128xf32>
    %c0_107 = arith.constant 0 : index
    %c0_108 = arith.constant 0 : index
    %269 = vector.load %arg2[%c0_107, %c0_108] : memref<16x128xf32, #tpu.memory_space<vmem>>, vector<16x128xf32>
    tpu.vector_store %arg2[%c0_107, %c0_108], %268 {strides = array<i32>} : memref<16x128xf32, #tpu.memory_space<vmem>>, vector<16x128xf32>,
    return
  }
}

</mosaic_0001>

<llo_original>
// kernel: transformer_encoder.1
$region0: #{transformer_encoder.1}
  #allocation0 [shape = 'u32[]', space=smem, size = 0x4, offset = 0x4, fixed_abs, tag = 'smem constant byte address 0x4 - core index']
  #allocation1 [shape = 'u32[144,128]{1,0:T(1,128)}', space=vmem, size = 0x12000, scoped, tag = 'internal scratch']
  %s0 = inlined_call_operand.vmem [shape: f32[16,128], index: 0, kind: input, shape index: {}]
  %s1 = inlined_call_operand.hbm [shape: f32[1952,128], index: 1, kind: input, shape index: {}]
  %s2 = inlined_call_operand.hbm [shape: f32[16,128], index: 2, kind: output, shape index: {}]
  %s3 = sld [smem:[#allocation0]]
  $region22: #{transformer_encoder.1} parent=0
    _
  %s5 = ssub.s32 1, %s3
  %s6 = scalar_select 0, %s5, %s3
  $region1: #{transformer_encoder.1} parent=0
    #allocation2 [shape = 'u8[999424]{0}', space=vmem, size = 0xf4000, scoped, tag = 'input window, operand 1, single buffered']
    #allocation3 [shape = 's32[1]{0}', space=sflag, size = 0x4, scoped, tag = 'scoped memory for transformer_encoder.1']
    #allocation4 [shape = 's32[1]{0}', space=sflag, size = 0x4, scoped, tag = 'scoped memory for transformer_encoder.1']
    #allocation5 [shape = 'u8[8192]{0}', space=vmem, size = 0x2000, scoped, tag = 'output window, operand 0, single buffered']
    %7 = vsyncpa [#allocation3], 0
    %8 = vsyncpa [#allocation4], 0
    // Predicated region
    $region2: #{transformer_encoder.1} parent=1 // pred_check
      _
    $region3: #{transformer_encoder.1} parent=1 // pred_check_branch
      %10 = sbr.rel (0) target = $region5
    $region4: #{transformer_encoder.1} parent=1 // pred_region
      _
    $region5: #{transformer_encoder.1} parent=1 // pred_fallthru
      _
    // Predicated region
    $region6: #{transformer_encoder.1} parent=1 // pred_check
      _
    $region7: #{transformer_encoder.1} parent=1 // pred_check_branch
      %12 = sbr.rel (0) target = $region9
    $region8: #{transformer_encoder.1} parent=1 // pred_region
      %s14 = ssub.s32 31232, 31232
      %15 = vsyncadd [#allocation3], %s14
      %s16 = sshll.u32 [#allocation2], 4
      %s17 = int_to_ptr.vmem [resolvable:$true] %s16
      %22 = dma.hbm_to_vmem [thread:$0]  %s1, 31232, %s17, [#allocation3], 128, 128, 8
    $region9: #{transformer_encoder.1} parent=1 // pred_fallthru
      _
    // Predicated region
    $region10: #{transformer_encoder.1} parent=1 // pred_check
      _
    $region11: #{transformer_encoder.1} parent=1 // pred_check_branch
      %24 = sbr.rel (0) target = $region13
    $region12: #{transformer_encoder.1} parent=1 // pred_region
      %25 = dma.done [#allocation3], 31232
    $region13: #{transformer_encoder.1} parent=1 // pred_fallthru
      _
    %v26 = vld [vmem:[%s0] sm:$0xff]
    %v27 = vld [vmem:[%s0 + $0x8] sm:$0xff]
    %v28 = vld [vmem:[#allocation2 + $0x740] sm:$0xff]
    %v29 = vld [vmem:[#allocation2 + $0x748] sm:$0xff]
    %v30 = vld [vmem:[#allocation2 + $0x750] sm:$0xff]
    %v31 = vld [vmem:[#allocation2 + $0x758] sm:$0xff]
    %v32 = vld [vmem:[#allocation2 + $0x760] sm:$0xff]
    %v33 = vld [vmem:[#allocation2 + $0x768] sm:$0xff]
    %v34 = vld [vmem:[#allocation2 + $0x770] sm:$0xff]
    %v35 = vld [vmem:[#allocation2 + $0x778] sm:$0xff]
    %v36 = vld [vmem:[#allocation2 + $0x780] sm:$0xff]
    %v37 = vld [vmem:[#allocation2 + $0x788] sm:$0xff]
    %v38 = vld [vmem:[#allocation2 + $0x790] sm:$0xff]
    %v39 = vld [vmem:[#allocation2 + $0x798] sm:$0xff]
    %v40 = vld [vmem:[#allocation2] sm:$0xff]
    %v41 = vld [vmem:[#allocation2 + $0x8] sm:$0xff]
    %v42 = vld [vmem:[#allocation2 + $0x10] sm:$0xff]
    %v43 = vld [vmem:[#allocation2 + $0x18] sm:$0xff]
    %v44 = vld [vmem:[#allocation2 + $0x20] sm:$0xff]
    %v45 = vld [vmem:[#allocation2 + $0x28] sm:$0xff]
    %v46 = vld [vmem:[#allocation2 + $0x30] sm:$0xff]
    %v47 = vld [vmem:[#allocation2 + $0x38] sm:$0xff]
    %v48 = vld [vmem:[#allocation2 + $0x40] sm:$0xff]
    %v49 = vld [vmem:[#allocation2 + $0x48] sm:$0xff]
    %v50 = vld [vmem:[#allocation2 + $0x50] sm:$0xff]
    %v51 = vld [vmem:[#allocation2 + $0x58] sm:$0xff]
    %v52 = vld [vmem:[#allocation2 + $0x60] sm:$0xff]
    %v53 = vld [vmem:[#allocation2 + $0x68] sm:$0xff]
    %v54 = vld [vmem:[#allocation2 + $0x70] sm:$0xff]
    %v55 = vld [vmem:[#allocation2 + $0x78] sm:$0xff]
    %v56 = vld [vmem:[#allocation2 + $0x80] sm:$0xff]
    %v57 = vld [vmem:[#allocation2 + $0x88] sm:$0xff]
    %v58 = vld [vmem:[#allocation2 + $0x90] sm:$0xff]
    %v59 = vld [vmem:[#allocation2 + $0x98] sm:$0xff]
    %v60 = vld [vmem:[#allocation2 + $0xa0] sm:$0xff]
    %v61 = vld [vmem:[#allocation2 + $0xa8] sm:$0xff]
    %v62 = vld [vmem:[#allocation2 + $0xb0] sm:$0xff]
    %v63 = vld [vmem:[#allocation2 + $0xb8] sm:$0xff]
    %v64 = vld [vmem:[#allocation2 + $0xc0] sm:$0xff]
    %v65 = vld [vmem:[#allocation2 + $0xc8] sm:$0xff]
    %v66 = vld [vmem:[#allocation2 + $0xd0] sm:$0xff]
    %v67 = vld [vmem:[#allocation2 + $0xd8] sm:$0xff]
    %v68 = vld [vmem:[#allocation2 + $0xe0] sm:$0xff]
    %v69 = vld [vmem:[#allocation2 + $0xe8] sm:$0xff]
    %v70 = vld [vmem:[#allocation2 + $0xf0] sm:$0xff]
    %v71 = vld [vmem:[#allocation2 + $0xf8] sm:$0xff]
    %v72 = vld [vmem:[#allocation2 + $0x100] sm:$0xff]
    %v73 = vld [vmem:[#allocation2 + $0x108] sm:$0xff]
    %v74 = vld [vmem:[#allocation2 + $0x110] sm:$0xff]
    %v75 = vld [vmem:[#allocation2 + $0x118] sm:$0xff]
    %v76 = vld [vmem:[#allocation2 + $0x120] sm:$0xff]
    %v77 = vld [vmem:[#allocation2 + $0x128] sm:$0xff]
    %v78 = vld [vmem:[#allocation2 + $0x130] sm:$0xff]
    %v79 = vld [vmem:[#allocation2 + $0x138] sm:$0xff]
    %v80 = vld [vmem:[#allocation2 + $0x140] sm:$0xff]
    %v81 = vld [vmem:[#allocation2 + $0x148] sm:$0xff]
    %v82 = vld [vmem:[#allocation2 + $0x150] sm:$0xff]
    %v83 = vld [vmem:[#allocation2 + $0x158] sm:$0xff]
    %v84 = vld [vmem:[#allocation2 + $0x160] sm:$0xff]
    %v85 = vld [vmem:[#allocation2 + $0x168] sm:$0xff]
    %v86 = vld [vmem:[#allocation2 + $0x170] sm:$0xff]
    %v87 = vld [vmem:[#allocation2 + $0x178] sm:$0xff]
    %v88 = vld [vmem:[#allocation2 + $0x180] sm:$0xff]
    %v89 = vld [vmem:[#allocation2 + $0x188] sm:$0xff]
    %v90 = vld [vmem:[#allocation2 + $0x190] sm:$0xff]
    %v91 = vld [vmem:[#allocation2 + $0x198] sm:$0xff]
    %v92 = vld [vmem:[#allocation2 + $0x1a0] sm:$0xff]
    %v93 = vld [vmem:[#allocation2 + $0x1a8] sm:$0xff]
    %v94 = vld [vmem:[#allocation2 + $0x1b0] sm:$0xff]
    %v95 = vld [vmem:[#allocation2 + $0x1b8] sm:$0xff]
    %v96 = vld [vmem:[#allocation2 + $0x1c0] sm:$0xff]
    %v97 = vld [vmem:[#allocation2 + $0x1c8] sm:$0xff]
    %v98 = vld [vmem:[#allocation2 + $0x1d0] sm:$0xff]
    %v99 = vld [vmem:[#allocation2 + $0x1d8] sm:$0xff]
    %v100 = vld [vmem:[#allocation2 + $0x1e0] sm:$0xff]
    %v101 = vld [vmem:[#allocation2 + $0x1e8] sm:$0xff]
    %v102 = vld [vmem:[#allocation2 + $0x1f0] sm:$0xff]
    %v103 = vld [vmem:[#allocation2 + $0x1f8] sm:$0xff]
    %v104 = vld [vmem:[#allocation2 + $0x200] sm:$0xff]
    %v105 = vld [vmem:[#allocation2 + $0x208] sm:$0xff]
    %v106 = vld [vmem:[#allocation2 + $0x210] sm:$0xff]
    %v107 = vld [vmem:[#allocation2 + $0x218] sm:$0xff]
    %v108 = vld [vmem:[#allocation2 + $0x220] sm:$0xff]
    %v109 = vld [vmem:[#allocation2 + $0x228] sm:$0xff]
    %v110 = vld [vmem:[#allocation2 + $0x230] sm:$0xff]
    %v111 = vld [vmem:[#allocation2 + $0x238] sm:$0xff]
    %v112 = vld [vmem:[#allocation2 + $0x240] sm:$0xff]
    %v113 = vld [vmem:[#allocation2 + $0x248] sm:$0xff]
    %v114 = vld [vmem:[#allocation2 + $0x250] sm:$0xff]
    %v115 = vld [vmem:[#allocation2 + $0x258] sm:$0xff]
    %v116 = vld [vmem:[#allocation2 + $0x260] sm:$0xff]
    %v117 = vld [vmem:[#allocation2 + $0x268] sm:$0xff]
    %v118 = vld [vmem:[#allocation2 + $0x270] sm:$0xff]
    %v119 = vld [vmem:[#allocation2 + $0x278] sm:$0xff]
    %v120 = vld [vmem:[#allocation2 + $0x280] sm:$0xff]
    %v121 = vld [vmem:[#allocation2 + $0x288] sm:$0xff]
    %v122 = vld [vmem:[#allocation2 + $0x290] sm:$0xff]
    %v123 = vld [vmem:[#allocation2 + $0x298] sm:$0xff]
    %v124 = vld [vmem:[#allocation2 + $0x2a0] sm:$0xff]
    %v125 = vld [vmem:[#allocation2 + $0x2a8] sm:$0xff]
    %v126 = vld [vmem:[#allocation2 + $0x2b0] sm:$0xff]
    %v127 = vld [vmem:[#allocation2 + $0x2b8] sm:$0xff]
    %v128 = vld [vmem:[#allocation2 + $0x2c0] sm:$0xff]
    %v129 = vld [vmem:[#allocation2 + $0x2c8] sm:$0xff]
    %v130 = vld [vmem:[#allocation2 + $0x2d0] sm:$0xff]
    %v131 = vld [vmem:[#allocation2 + $0x2d8] sm:$0xff]
    %v132 = vld [vmem:[#allocation2 + $0x2e0] sm:$0xff]
    %v133 = vld [vmem:[#allocation2 + $0x2e8] sm:$0xff]
    %v134 = vld [vmem:[#allocation2 + $0x2f0] sm:$0xff]
    %v135 = vld [vmem:[#allocation2 + $0x2f8] sm:$0xff]
    %v136 = vld [vmem:[#allocation2 + $0x300] sm:$0xff]
    %v137 = vld [vmem:[#allocation2 + $0x308] sm:$0xff]
    %v138 = vld [vmem:[#allocation2 + $0x310] sm:$0xff]
    %v139 = vld [vmem:[#allocation2 + $0x318] sm:$0xff]
    %v140 = vld [vmem:[#allocation2 + $0x320] sm:$0xff]
    %v141 = vld [vmem:[#allocation2 + $0x328] sm:$0xff]
    %v142 = vld [vmem:[#allocation2 + $0x330] sm:$0xff]
    %v143 = vld [vmem:[#allocation2 + $0x338] sm:$0xff]
    %v144 = vld [vmem:[#allocation2 + $0x340] sm:$0xff]
    %v145 = vld [vmem:[#allocation2 + $0x348] sm:$0xff]
    %v146 = vld [vmem:[#allocation2 + $0x350] sm:$0xff]
    %v147 = vld [vmem:[#allocation2 + $0x358] sm:$0xff]
    %v148 = vld [vmem:[#allocation2 + $0x360] sm:$0xff]
    %v149 = vld [vmem:[#allocation2 + $0x368] sm:$0xff]
    %v150 = vld [vmem:[#allocation2 + $0x370] sm:$0xff]
    %v151 = vld [vmem:[#allocation2 + $0x378] sm:$0xff]
    %v152 = vld [vmem:[#allocation2 + $0x380] sm:$0xff]
    %v153 = vld [vmem:[#allocation2 + $0x388] sm:$0xff]
    %v154 = vld [vmem:[#allocation2 + $0x390] sm:$0xff]
    %v155 = vld [vmem:[#allocation2 + $0x398] sm:$0xff]
    %156 = vmatprep.subr.mxu0 0.0
    %157 = vmatpush1.msra.mxu0 %v55
    %158 = vmatprep.subr.mxu0 0.0
    %159 = vmatpush1.msra.mxu0 %v54
    %160 = vmatprep.subr.mxu0 0.0
    %161 = vmatpush1.msra.mxu0 %v53
    %162 = vmatprep.subr.mxu0 0.0
    %163 = vmatpush1.msra.mxu0 %v52
    %164 = vmatprep.subr.mxu0 0.0
    %165 = vmatpush1.msra.mxu0 %v51
    %166 = vmatprep.subr.mxu0 0.0
    %167 = vmatpush1.msra.mxu0 %v50
    %168 = vmatprep.subr.mxu0 0.0
    %169 = vmatpush1.msra.mxu0 %v49
    %170 = vmatprep.subr.mxu0 0.0
    %171 = vmatpush1.msra.mxu0 %v48
    %172 = vmatprep.subr.mxu0 0.0
    %173 = vmatpush1.msra.mxu0 %v47
    %174 = vmatprep.subr.mxu0 0.0
    %175 = vmatpush1.msra.mxu0 %v46
    %176 = vmatprep.subr.mxu0 0.0
    %177 = vmatpush1.msra.mxu0 %v45
    %178 = vmatprep.subr.mxu0 0.0
    %179 = vmatpush1.msra.mxu0 %v44
    %180 = vmatprep.subr.mxu0 0.0
    %181 = vmatpush1.msra.mxu0 %v43
    %182 = vmatprep.subr.mxu0 0.0
    %183 = vmatpush1.msra.mxu0 %v42
    %184 = vmatprep.subr.mxu0 0.0
    %185 = vmatpush1.msra.mxu0 %v41
    %186 = vmatprep.subr.mxu0 0.0
    %187 = vmatpush1.msra.mxu0 %v40
    %188 = vmatprep.subr.mxu0 0.0
    %189 = vmatpush2.msra.mxu0 0.0
    %190 = vmatprep.subr.mxu0 0.0
    %191 = vmatpush2.msra.mxu0 0.0
    %192 = vmatprep.subr.mxu0 0.0
    %193 = vmatpush2.msra.mxu0 0.0
    %194 = vmatprep.subr.mxu0 0.0
    %195 = vmatpush2.msra.mxu0 0.0
    %196 = vmatprep.subr.mxu0 0.0
    %197 = vmatpush2.msra.mxu0 0.0
    %198 = vmatprep.subr.mxu0 0.0
    %199 = vmatpush2.msra.mxu0 0.0
    %200 = vmatprep.subr.mxu0 0.0
    %201 = vmatpush2.msra.mxu0 0.0
    %202 = vmatprep.subr.mxu0 0.0
    %203 = vmatpush2.msra.mxu0 0.0
    %204 = vmatprep.subr.mxu0 0.0
    %205 = vmatpush2.msra.mxu0 0.0
    %206 = vmatprep.subr.mxu0 0.0
    %207 = vmatpush2.msra.mxu0 0.0
    %208 = vmatprep.subr.mxu0 0.0
    %209 = vmatpush2.msra.mxu0 0.0
    %210 = vmatprep.subr.mxu0 0.0
    %211 = vmatpush2.msra.mxu0 0.0
    %212 = vmatprep.subr.mxu0 0.0
    %213 = vmatpush2.msra.mxu0 0.0
    %214 = vmatprep.subr.mxu0 0.0
    %215 = vmatpush2.msra.mxu0 0.0
    %216 = vmatprep.subr.mxu0 0.0
    %217 = vmatpush2.msra.mxu0 0.0
    %218 = vmatprep.subr.mxu0 0.0
    %219 = vmatpush2.msra.mxu0 0.0
    %220 = vmatprep.mubr.f32.mxu0 0.0
    %221 = vmatmul.mubr.f32.gmra.mxu0 %v26
    %v222 = vpop.f32.mrf.mxu0
    %v223 = vadd.f32 %v136, %v222
    %v224 = vpop.f32.mrf.mxu0
    %225 = vmatprep.mubr.f32.mxu0 0.0
    %226 = vmatmul.mubr.f32.gmra.mxu0 %v27
    %v227 = vpop.f32.mrf.mxu0
    %v228 = vadd.f32 %v137, %v227
    %v229 = vpop.f32.mrf.mxu0
    %230 = vdwg.mxu0
    %231 = vmatprep.subr.mxu0 0.0
    %232 = vmatpush1.msra.mxu0 %v71
    %233 = vmatprep.subr.mxu0 0.0
    %234 = vmatpush1.msra.mxu0 %v70
    %235 = vmatprep.subr.mxu0 0.0
    %236 = vmatpush1.msra.mxu0 %v69
    %237 = vmatprep.subr.mxu0 0.0
    %238 = vmatpush1.msra.mxu0 %v68
    %239 = vmatprep.subr.mxu0 0.0
    %240 = vmatpush1.msra.mxu0 %v67
    %241 = vmatprep.subr.mxu0 0.0
    %242 = vmatpush1.msra.mxu0 %v66
    %243 = vmatprep.subr.mxu0 0.0
    %244 = vmatpush1.msra.mxu0 %v65
    %245 = vmatprep.subr.mxu0 0.0
    %246 = vmatpush1.msra.mxu0 %v64
    %247 = vmatprep.subr.mxu0 0.0
    %248 = vmatpush1.msra.mxu0 %v63
    %249 = vmatprep.subr.mxu0 0.0
    %250 = vmatpush1.msra.mxu0 %v62
    %251 = vmatprep.subr.mxu0 0.0
    %252 = vmatpush1.msra.mxu0 %v61
    %253 = vmatprep.subr.mxu0 0.0
    %254 = vmatpush1.msra.mxu0 %v60
    %255 = vmatprep.subr.mxu0 0.0
    %256 = vmatpush1.msra.mxu0 %v59
    %257 = vmatprep.subr.mxu0 0.0
    %258 = vmatpush1.msra.mxu0 %v58
    %259 = vmatprep.subr.mxu0 0.0
    %260 = vmatpush1.msra.mxu0 %v57
    %261 = vmatprep.subr.mxu0 0.0
    %262 = vmatpush1.msra.mxu0 %v56
    %263 = vmatprep.subr.mxu0 0.0
    %264 = vmatpush2.msra.mxu0 0.0
    %265 = vmatprep.subr.mxu0 0.0
    %266 = vmatpush2.msra.mxu0 0.0
    %267 = vmatprep.subr.mxu0 0.0
    %268 = vmatpush2.msra.mxu0 0.0
    %269 = vmatprep.subr.mxu0 0.0
    %270 = vmatpush2.msra.mxu0 0.0
    %271 = vmatprep.subr.mxu0 0.0
    %272 = vmatpush2.msra.mxu0 0.0
    %273 = vmatprep.subr.mxu0 0.0
    %274 = vmatpush2.msra.mxu0 0.0
    %275 = vmatprep.subr.mxu0 0.0
    %276 = vmatpush2.msra.mxu0 0.0
    %277 = vmatprep.subr.mxu0 0.0
    %278 = vmatpush2.msra.mxu0 0.0
    %279 = vmatprep.subr.mxu0 0.0
    %280 = vmatpush2.msra.mxu0 0.0
    %281 = vmatprep.subr.mxu0 0.0
    %282 = vmatpush2.msra.mxu0 0.0
    %283 = vmatprep.subr.mxu0 0.0
    %284 = vmatpush2.msra.mxu0 0.0
    %285 = vmatprep.subr.mxu0 0.0
    %286 = vmatpush2.msra.mxu0 0.0
    %287 = vmatprep.subr.mxu0 0.0
    %288 = vmatpush2.msra.mxu0 0.0
    %289 = vmatprep.subr.mxu0 0.0
    %290 = vmatpush2.msra.mxu0 0.0
    %291 = vmatprep.subr.mxu0 0.0
    %292 = vmatpush2.msra.mxu0 0.0
    %293 = vmatprep.subr.mxu0 0.0
    %294 = vmatpush2.msra.mxu0 0.0
    %295 = vmatprep.mubr.f32.mxu0 0.0
    %296 = vmatmul.mubr.f32.gmra.mxu0 %v26
    %v297 = vpop.f32.mrf.mxu0
    %v298 = vadd.f32 %v138, %v297
    %v299 = vpop.f32.mrf.mxu0
    %300 = vmatprep.mubr.f32.mxu0 0.0
    %301 = vmatmul.mubr.f32.gmra.mxu0 %v27
    %v302 = vpop.f32.mrf.mxu0
    %v303 = vadd.f32 %v139, %v302
    %v304 = vpop.f32.mrf.mxu0
    %305 = vdwg.mxu0
    %306 = vmatprep.subr.mxu0 0.0
    %307 = vmatpush1.msra.mxu0 %v87
    %308 = vmatprep.subr.mxu0 0.0
    %309 = vmatpush1.msra.mxu0 %v86
    %310 = vmatprep.subr.mxu0 0.0
    %311 = vmatpush1.msra.mxu0 %v85
    %312 = vmatprep.subr.mxu0 0.0
    %313 = vmatpush1.msra.mxu0 %v84
    %314 = vmatprep.subr.mxu0 0.0
    %315 = vmatpush1.msra.mxu0 %v83
    %316 = vmatprep.subr.mxu0 0.0
    %317 = vmatpush1.msra.mxu0 %v82
    %318 = vmatprep.subr.mxu0 0.0
    %319 = vmatpush1.msra.mxu0 %v81
    %320 = vmatprep.subr.mxu0 0.0
    %321 = vmatpush1.msra.mxu0 %v80
    %322 = vmatprep.subr.mxu0 0.0
    %323 = vmatpush1.msra.mxu0 %v79
    %324 = vmatprep.subr.mxu0 0.0
    %325 = vmatpush1.msra.mxu0 %v78
    %326 = vmatprep.subr.mxu0 0.0
    %327 = vmatpush1.msra.mxu0 %v77
    %328 = vmatprep.subr.mxu0 0.0
    %329 = vmatpush1.msra.mxu0 %v76
    %330 = vmatprep.subr.mxu0 0.0
    %331 = vmatpush1.msra.mxu0 %v75
    %332 = vmatprep.subr.mxu0 0.0
    %333 = vmatpush1.msra.mxu0 %v74
    %334 = vmatprep.subr.mxu0 0.0
    %335 = vmatpush1.msra.mxu0 %v73
    %336 = vmatprep.subr.mxu0 0.0
    %337 = vmatpush1.msra.mxu0 %v72
    %338 = vmatprep.subr.mxu0 0.0
    %339 = vmatpush2.msra.mxu0 0.0
    %340 = vmatprep.subr.mxu0 0.0
    %341 = vmatpush2.msra.mxu0 0.0
    %342 = vmatprep.subr.mxu0 0.0
    %343 = vmatpush2.msra.mxu0 0.0
    %344 = vmatprep.subr.mxu0 0.0
    %345 = vmatpush2.msra.mxu0 0.0
    %346 = vmatprep.subr.mxu0 0.0
    %347 = vmatpush2.msra.mxu0 0.0
    %348 = vmatprep.subr.mxu0 0.0
    %349 = vmatpush2.msra.mxu0 0.0
    %350 = vmatprep.subr.mxu0 0.0
    %351 = vmatpush2.msra.mxu0 0.0
    %352 = vmatprep.subr.mxu0 0.0
    %353 = vmatpush2.msra.mxu0 0.0
    %354 = vmatprep.subr.mxu0 0.0
    %355 = vmatpush2.msra.mxu0 0.0
    %356 = vmatprep.subr.mxu0 0.0
    %357 = vmatpush2.msra.mxu0 0.0
    %358 = vmatprep.subr.mxu0 0.0
    %359 = vmatpush2.msra.mxu0 0.0
    %360 = vmatprep.subr.mxu0 0.0
    %361 = vmatpush2.msra.mxu0 0.0
    %362 = vmatprep.subr.mxu0 0.0
    %363 = vmatpush2.msra.mxu0 0.0
    %364 = vmatprep.subr.mxu0 0.0
    %365 = vmatpush2.msra.mxu0 0.0
    %366 = vmatprep.subr.mxu0 0.0
    %367 = vmatpush2.msra.mxu0 0.0
    %368 = vmatprep.subr.mxu0 0.0
    %369 = vmatpush2.msra.mxu0 0.0
    %370 = vmatprep.mubr.f32.mxu0 0.0
    %371 = vmatmul.mubr.f32.gmra.mxu0 %v26
    %v372 = vpop.f32.mrf.mxu0
    %v373 = vadd.f32 %v140, %v372
    %v374 = vpop.f32.mrf.mxu0
    %375 = vmatprep.mubr.f32.mxu0 0.0
    %376 = vmatmul.mubr.f32.gmra.mxu0 %v27
    %v377 = vpop.f32.mrf.mxu0
    %v378 = vadd.f32 %v141, %v377
    %v379 = vpop.f32.mrf.mxu0
    %380 = vdwg.mxu0
    %v381 = vmul.f32 %v223, %v32
    %v382 = vmul.f32 %v228, %v33
    %383 = vmatprep.subr.mxu0 0.0
    %384 = vmatpush1.xpose.msra.mxu0 0.0
    %385 = vmatprep.subr.mxu0 0.0
    %386 = vmatpush1.xpose.msra.mxu0 0.0
    %387 = vmatprep.subr.mxu0 0.0
    %388 = vmatpush1.xpose.msra.mxu0 0.0
    %389 = vmatprep.subr.mxu0 0.0
    %390 = vmatpush1.xpose.msra.mxu0 0.0
    %391 = vmatprep.subr.mxu0 0.0
    %392 = vmatpush1.xpose.msra.mxu0 0.0
    %393 = vmatprep.subr.mxu0 0.0
    %394 = vmatpush1.xpose.msra.mxu0 0.0
    %395 = vmatprep.subr.mxu0 0.0
    %396 = vmatpush1.xpose.msra.mxu0 0.0
    %397 = vmatprep.subr.mxu0 0.0
    %398 = vmatpush1.xpose.msra.mxu0 0.0
    %399 = vmatprep.subr.mxu0 0.0
    %400 = vmatpush1.xpose.msra.mxu0 0.0
    %401 = vmatprep.subr.mxu0 0.0
    %402 = vmatpush1.xpose.msra.mxu0 0.0
    %403 = vmatprep.subr.mxu0 0.0
    %404 = vmatpush1.xpose.msra.mxu0 0.0
    %405 = vmatprep.subr.mxu0 0.0
    %406 = vmatpush1.xpose.msra.mxu0 0.0
    %407 = vmatprep.subr.mxu0 0.0
    %408 = vmatpush1.xpose.msra.mxu0 0.0
    %409 = vmatprep.subr.mxu0 0.0
    %410 = vmatpush1.xpose.msra.mxu0 0.0
    %411 = vmatprep.subr.mxu0 0.0
    %412 = vmatpush1.xpose.msra.mxu0 %v303
    %413 = vmatprep.subr.mxu0 0.0
    %414 = vmatpush1.xpose.msra.mxu0 %v298
    %415 = vmatprep.subr.mxu0 0.0
    %416 = vmatpush2.xpose.msra.mxu0 0.0
    %417 = vmatprep.subr.mxu0 0.0
    %418 = vmatpush2.xpose.msra.mxu0 0.0
    %419 = vmatprep.subr.mxu0 0.0
    %420 = vmatpush2.xpose.msra.mxu0 0.0
    %421 = vmatprep.subr.mxu0 0.0
    %422 = vmatpush2.xpose.msra.mxu0 0.0
    %423 = vmatprep.subr.mxu0 0.0
    %424 = vmatpush2.xpose.msra.mxu0 0.0
    %425 = vmatprep.subr.mxu0 0.0
    %426 = vmatpush2.xpose.msra.mxu0 0.0
    %427 = vmatprep.subr.mxu0 0.0
    %428 = vmatpush2.xpose.msra.mxu0 0.0
    %429 = vmatprep.subr.mxu0 0.0
    %430 = vmatpush2.xpose.msra.mxu0 0.0
    %431 = vmatprep.subr.mxu0 0.0
    %432 = vmatpush2.xpose.msra.mxu0 0.0
    %433 = vmatprep.subr.mxu0 0.0
    %434 = vmatpush2.xpose.msra.mxu0 0.0
    %435 = vmatprep.subr.mxu0 0.0
    %436 = vmatpush2.xpose.msra.mxu0 0.0
    %437 = vmatprep.subr.mxu0 0.0
    %438 = vmatpush2.xpose.msra.mxu0 0.0
    %439 = vmatprep.subr.mxu0 0.0
    %440 = vmatpush2.xpose.msra.mxu0 0.0
    %441 = vmatprep.subr.mxu0 0.0
    %442 = vmatpush2.xpose.msra.mxu0 0.0
    %443 = vmatprep.subr.mxu0 0.0
    %444 = vmatpush2.xpose.msra.mxu0 0.0
    %445 = vmatprep.subr.mxu0 0.0
    %446 = vmatpush2.xpose.msra.mxu0 0.0
    %447 = vmatprep.mubr.f32.mxu0 0.0
    %448 = vmatmul.mubr.f32.gmra.mxu0 %v381
    %v449 = vpop.f32.mrf.mxu0
    %v450 = vadd.f32 %v28, %v449
    %v451 = vpop.f32.mrf.mxu0
    %452 = vmatprep.mubr.f32.mxu0 0.0
    %453 = vmatmul.mubr.f32.gmra.mxu0 %v382
    %v454 = vpop.f32.mrf.mxu0
    %v455 = vadd.f32 %v29, %v454
    %v456 = vpop.f32.mrf.mxu0
    %457 = vdwg.mxu0
    %vm458 = vcmask 130048
    %v459 = vsel %vm458, %v450, -inf
    %460 = vmax.xlane.f32.xlu0 %v459
    %v461 = vpop.xlane.xlu0 %460
    %v462 = vsel %vm458, %v455, -inf
    %463 = vmax.xlane.f32.xlu0 %v462
    %v464 = vpop.xlane.xlu0 %463
    %v465 = vsub.f32 %v450, %v461
    %v466 = vsub.f32 %v455, %v464
    %v467 = vmul.f32 %v465, 1.442695
    %v468 = vpow.pop %v467
    %v469 = vmul.f32 %v466, 1.442695
    %v470 = vpow.pop %v469
    %v471 = vsel %vm458, %v468, 0.0
    %472 = vadd.xlane.f32.xlu0 %v471
    %v473 = vpop.xlane.xlu0 %472
    %v474 = vsel %vm458, %v470, 0.0
    %475 = vadd.xlane.f32.xlu0 %v474
    %v476 = vpop.xlane.xlu0 %475
    %v477 = vrcp.pop %v473
    %v478 = vmul.f32 %v468, %v477
    %v479 = vrcp.pop %v476
    %v480 = vmul.f32 %v470, %v479
    %v481 = vmul.f32 %v373, %v32
    %v482 = vmul.f32 %v378, %v33
    %v483 = vmul.f32 %v223, %v34
    %v484 = vmul.f32 %v228, %v35
    %485 = vmatprep.subr.mxu0 0.0
    %486 = vmatpush1.xpose.msra.mxu0 0.0
    %487 = vmatprep.subr.mxu0 0.0
    %488 = vmatpush1.xpose.msra.mxu0 0.0
    %489 = vmatprep.subr.mxu0 0.0
    %490 = vmatpush1.xpose.msra.mxu0 0.0
    %491 = vmatprep.subr.mxu0 0.0
    %492 = vmatpush1.xpose.msra.mxu0 0.0
    %493 = vmatprep.subr.mxu0 0.0
    %494 = vmatpush1.xpose.msra.mxu0 0.0
    %495 = vmatprep.subr.mxu0 0.0
    %496 = vmatpush1.xpose.msra.mxu0 0.0
    %497 = vmatprep.subr.mxu0 0.0
    %498 = vmatpush1.xpose.msra.mxu0 0.0
    %499 = vmatprep.subr.mxu0 0.0
    %500 = vmatpush1.xpose.msra.mxu0 0.0
    %501 = vmatprep.subr.mxu0 0.0
    %502 = vmatpush1.xpose.msra.mxu0 0.0
    %503 = vmatprep.subr.mxu0 0.0
    %504 = vmatpush1.xpose.msra.mxu0 0.0
    %505 = vmatprep.subr.mxu0 0.0
    %506 = vmatpush1.xpose.msra.mxu0 0.0
    %507 = vmatprep.subr.mxu0 0.0
    %508 = vmatpush1.xpose.msra.mxu0 0.0
    %509 = vmatprep.subr.mxu0 0.0
    %510 = vmatpush1.xpose.msra.mxu0 0.0
    %511 = vmatprep.subr.mxu0 0.0
    %512 = vmatpush1.xpose.msra.mxu0 0.0
    %513 = vmatprep.subr.mxu0 0.0
    %514 = vmatpush1.xpose.msra.mxu0 %v303
    %515 = vmatprep.subr.mxu0 0.0
    %516 = vmatpush1.xpose.msra.mxu0 %v298
    %517 = vmatprep.subr.mxu0 0.0
    %518 = vmatpush2.xpose.msra.mxu0 0.0
    %519 = vmatprep.subr.mxu0 0.0
    %520 = vmatpush2.xpose.msra.mxu0 0.0
    %521 = vmatprep.subr.mxu0 0.0
    %522 = vmatpush2.xpose.msra.mxu0 0.0
    %523 = vmatprep.subr.mxu0 0.0
    %524 = vmatpush2.xpose.msra.mxu0 0.0
    %525 = vmatprep.subr.mxu0 0.0
    %526 = vmatpush2.xpose.msra.mxu0 0.0
    %527 = vmatprep.subr.mxu0 0.0
    %528 = vmatpush2.xpose.msra.mxu0 0.0
    %529 = vmatprep.subr.mxu0 0.0
    %530 = vmatpush2.xpose.msra.mxu0 0.0
    %531 = vmatprep.subr.mxu0 0.0
    %532 = vmatpush2.xpose.msra.mxu0 0.0
    %533 = vmatprep.subr.mxu0 0.0
    %534 = vmatpush2.xpose.msra.mxu0 0.0
    %535 = vmatprep.subr.mxu0 0.0
    %536 = vmatpush2.xpose.msra.mxu0 0.0
    %537 = vmatprep.subr.mxu0 0.0
    %538 = vmatpush2.xpose.msra.mxu0 0.0
    %539 = vmatprep.subr.mxu0 0.0
    %540 = vmatpush2.xpose.msra.mxu0 0.0
    %541 = vmatprep.subr.mxu0 0.0
    %542 = vmatpush2.xpose.msra.mxu0 0.0
    %543 = vmatprep.subr.mxu0 0.0
    %544 = vmatpush2.xpose.msra.mxu0 0.0
    %545 = vmatprep.subr.mxu0 0.0
    %546 = vmatpush2.xpose.msra.mxu0 0.0
    %547 = vmatprep.subr.mxu0 0.0
    %548 = vmatpush2.xpose.msra.mxu0 0.0
    %549 = vmatprep.mubr.f32.mxu0 0.0
    %550 = vmatmul.mubr.f32.gmra.mxu0 %v483
    %v551 = vpop.f32.mrf.mxu0
    %v552 = vadd.f32 %v28, %v551
    %v553 = vpop.f32.mrf.mxu0
    %554 = vmatprep.mubr.f32.mxu0 0.0
    %555 = vmatmul.mubr.f32.gmra.mxu0 %v484
    %v556 = vpop.f32.mrf.mxu0
    %v557 = vadd.f32 %v29, %v556
    %v558 = vpop.f32.mrf.mxu0
    %559 = vdwg.mxu0
    %v560 = vsel %vm458, %v552, -inf
    %561 = vmax.xlane.f32.xlu0 %v560
    %v562 = vpop.xlane.xlu0 %561
    %v563 = vsel %vm458, %v557, -inf
    %564 = vmax.xlane.f32.xlu0 %v563
    %v565 = vpop.xlane.xlu0 %564
    %v566 = vsub.f32 %v552, %v562
    %v567 = vsub.f32 %v557, %v565
    %v568 = vmul.f32 %v566, 1.442695
    %v569 = vpow.pop %v568
    %v570 = vmul.f32 %v567, 1.442695
    %v571 = vpow.pop %v570
    %v572 = vsel %vm458, %v569, 0.0
    %573 = vadd.xlane.f32.xlu0 %v572
    %v574 = vpop.xlane.xlu0 %573
    %v575 = vsel %vm458, %v571, 0.0
    %576 = vadd.xlane.f32.xlu0 %v575
    %v577 = vpop.xlane.xlu0 %576
    %v578 = vrcp.pop %v574
    %v579 = vmul.f32 %v569, %v578
    %v580 = vrcp.pop %v577
    %v581 = vmul.f32 %v571, %v580
    %v582 = vmul.f32 %v373, %v34
    %v583 = vmul.f32 %v378, %v35
    %v585 = vsel %vm458, %v579, 0
    %v588 = vsel %vm458, %v581, 0
    %590 = vmatprep.subr.mxu0 0.0
    %591 = vmatpush1.msra.mxu0 0.0
    %592 = vmatprep.subr.mxu0 0.0
    %593 = vmatpush1.msra.mxu0 0.0
    %594 = vmatprep.subr.mxu0 0.0
    %595 = vmatpush1.msra.mxu0 0.0
    %596 = vmatprep.subr.mxu0 0.0
    %597 = vmatpush1.msra.mxu0 0.0
    %598 = vmatprep.subr.mxu0 0.0
    %599 = vmatpush1.msra.mxu0 0.0
    %600 = vmatprep.subr.mxu0 0.0
    %601 = vmatpush1.msra.mxu0 0.0
    %602 = vmatprep.subr.mxu0 0.0
    %603 = vmatpush1.msra.mxu0 0.0
    %604 = vmatprep.subr.mxu0 0.0
    %605 = vmatpush1.msra.mxu0 0.0
    %606 = vmatprep.subr.mxu0 0.0
    %607 = vmatpush1.msra.mxu0 0.0
    %608 = vmatprep.subr.mxu0 0.0
    %609 = vmatpush1.msra.mxu0 0.0
    %610 = vmatprep.subr.mxu0 0.0
    %611 = vmatpush1.msra.mxu0 0.0
    %612 = vmatprep.subr.mxu0 0.0
    %613 = vmatpush1.msra.mxu0 0.0
    %614 = vmatprep.subr.mxu0 0.0
    %615 = vmatpush1.msra.mxu0 0.0
    %616 = vmatprep.subr.mxu0 0.0
    %617 = vmatpush1.msra.mxu0 0.0
    %618 = vmatprep.subr.mxu0 0.0
    %619 = vmatpush1.msra.mxu0 %v583
    %620 = vmatprep.subr.mxu0 0.0
    %621 = vmatpush1.msra.mxu0 %v582
    %622 = vmatprep.subr.mxu0 0.0
    %623 = vmatpush2.msra.mxu0 0.0
    %624 = vmatprep.subr.mxu0 0.0
    %625 = vmatpush2.msra.mxu0 0.0
    %626 = vmatprep.subr.mxu0 0.0
    %627 = vmatpush2.msra.mxu0 0.0
    %628 = vmatprep.subr.mxu0 0.0
    %629 = vmatpush2.msra.mxu0 0.0
    %630 = vmatprep.subr.mxu0 0.0
    %631 = vmatpush2.msra.mxu0 0.0
    %632 = vmatprep.subr.mxu0 0.0
    %633 = vmatpush2.msra.mxu0 0.0
    %634 = vmatprep.subr.mxu0 0.0
    %635 = vmatpush2.msra.mxu0 0.0
    %636 = vmatprep.subr.mxu0 0.0
    %637 = vmatpush2.msra.mxu0 0.0
    %638 = vmatprep.subr.mxu0 0.0
    %639 = vmatpush2.msra.mxu0 0.0
    %640 = vmatprep.subr.mxu0 0.0
    %641 = vmatpush2.msra.mxu0 0.0
    %642 = vmatprep.subr.mxu0 0.0
    %643 = vmatpush2.msra.mxu0 0.0
    %644 = vmatprep.subr.mxu0 0.0
    %645 = vmatpush2.msra.mxu0 0.0
    %646 = vmatprep.subr.mxu0 0.0
    %647 = vmatpush2.msra.mxu0 0.0
    %648 = vmatprep.subr.mxu0 0.0
    %649 = vmatpush2.msra.mxu0 0.0
    %650 = vmatprep.subr.mxu0 0.0
    %651 = vmatpush2.msra.mxu0 0.0
    %652 = vmatprep.subr.mxu0 0.0
    %653 = vmatpush2.msra.mxu0 0.0
    %654 = vmatprep.mubr.f32.mxu0 0.0
    %655 = vmatmul.mubr.f32.gmra.mxu0 %v585
    %v656 = vpop.f32.mrf.mxu0
    %v657 = vadd.f32 0.0, %v656
    %v658 = vpop.f32.mrf.mxu0
    %659 = vmatprep.mubr.f32.mxu0 0.0
    %660 = vmatmul.mubr.f32.gmra.mxu0 %v588
    %v661 = vpop.f32.mrf.mxu0
    %v662 = vadd.f32 0.0, %v661
    %v663 = vpop.f32.mrf.mxu0
    %664 = vdwg.mxu0
    %v666 = vsel %vm458, %v478, 0
    %v669 = vsel %vm458, %v480, 0
    %671 = vmatprep.subr.mxu0 0.0
    %672 = vmatpush1.msra.mxu0 0.0
    %673 = vmatprep.subr.mxu0 0.0
    %674 = vmatpush1.msra.mxu0 0.0
    %675 = vmatprep.subr.mxu0 0.0
    %676 = vmatpush1.msra.mxu0 0.0
    %677 = vmatprep.subr.mxu0 0.0
    %678 = vmatpush1.msra.mxu0 0.0
    %679 = vmatprep.subr.mxu0 0.0
    %680 = vmatpush1.msra.mxu0 0.0
    %681 = vmatprep.subr.mxu0 0.0
    %682 = vmatpush1.msra.mxu0 0.0
    %683 = vmatprep.subr.mxu0 0.0
    %684 = vmatpush1.msra.mxu0 0.0
    %685 = vmatprep.subr.mxu0 0.0
    %686 = vmatpush1.msra.mxu0 0.0
    %687 = vmatprep.subr.mxu0 0.0
    %688 = vmatpush1.msra.mxu0 0.0
    %689 = vmatprep.subr.mxu0 0.0
    %690 = vmatpush1.msra.mxu0 0.0
    %691 = vmatprep.subr.mxu0 0.0
    %692 = vmatpush1.msra.mxu0 0.0
    %693 = vmatprep.subr.mxu0 0.0
    %694 = vmatpush1.msra.mxu0 0.0
    %695 = vmatprep.subr.mxu0 0.0
    %696 = vmatpush1.msra.mxu0 0.0
    %697 = vmatprep.subr.mxu0 0.0
    %698 = vmatpush1.msra.mxu0 0.0
    %699 = vmatprep.subr.mxu0 0.0
    %700 = vmatpush1.msra.mxu0 %v482
    %701 = vmatprep.subr.mxu0 0.0
    %702 = vmatpush1.msra.mxu0 %v481
    %703 = vmatprep.subr.mxu0 0.0
    %704 = vmatpush2.msra.mxu0 0.0
    %705 = vmatprep.subr.mxu0 0.0
    %706 = vmatpush2.msra.mxu0 0.0
    %707 = vmatprep.subr.mxu0 0.0
    %708 = vmatpush2.msra.mxu0 0.0
    %709 = vmatprep.subr.mxu0 0.0
    %710 = vmatpush2.msra.mxu0 0.0
    %711 = vmatprep.subr.mxu0 0.0
    %712 = vmatpush2.msra.mxu0 0.0
    %713 = vmatprep.subr.mxu0 0.0
    %714 = vmatpush2.msra.mxu0 0.0
    %715 = vmatprep.subr.mxu0 0.0
    %716 = vmatpush2.msra.mxu0 0.0
    %717 = vmatprep.subr.mxu0 0.0
    %718 = vmatpush2.msra.mxu0 0.0
    %719 = vmatprep.subr.mxu0 0.0
    %720 = vmatpush2.msra.mxu0 0.0
    %721 = vmatprep.subr.mxu0 0.0
    %722 = vmatpush2.msra.mxu0 0.0
    %723 = vmatprep.subr.mxu0 0.0
    %724 = vmatpush2.msra.mxu0 0.0
    %725 = vmatprep.subr.mxu0 0.0
    %726 = vmatpush2.msra.mxu0 0.0
    %727 = vmatprep.subr.mxu0 0.0
    %728 = vmatpush2.msra.mxu0 0.0
    %729 = vmatprep.subr.mxu0 0.0
    %730 = vmatpush2.msra.mxu0 0.0
    %731 = vmatprep.subr.mxu0 0.0
    %732 = vmatpush2.msra.mxu0 0.0
    %733 = vmatprep.subr.mxu0 0.0
    %734 = vmatpush2.msra.mxu0 0.0
    %735 = vmatprep.mubr.f32.mxu0 0.0
    %736 = vmatmul.mubr.f32.gmra.mxu0 %v666
    %v737 = vpop.f32.mrf.mxu0
    %v738 = vadd.f32 %v657, %v737
    %v739 = vpop.f32.mrf.mxu0
    %740 = vmatprep.mubr.f32.mxu0 0.0
    %741 = vmatmul.mubr.f32.gmra.mxu0 %v669
    %v742 = vpop.f32.mrf.mxu0
    %v743 = vadd.f32 %v662, %v742
    %v744 = vpop.f32.mrf.mxu0
    %745 = vdwg.mxu0
    %v746 = vmul.f32 %v223, %v36
    %v747 = vmul.f32 %v228, %v37
    %748 = vmatprep.subr.mxu0 0.0
    %749 = vmatpush1.xpose.msra.mxu0 0.0
    %750 = vmatprep.subr.mxu0 0.0
    %751 = vmatpush1.xpose.msra.mxu0 0.0
    %752 = vmatprep.subr.mxu0 0.0
    %753 = vmatpush1.xpose.msra.mxu0 0.0
    %754 = vmatprep.subr.mxu0 0.0
    %755 = vmatpush1.xpose.msra.mxu0 0.0
    %756 = vmatprep.subr.mxu0 0.0
    %757 = vmatpush1.xpose.msra.mxu0 0.0
    %758 = vmatprep.subr.mxu0 0.0
    %759 = vmatpush1.xpose.msra.mxu0 0.0
    %760 = vmatprep.subr.mxu0 0.0
    %761 = vmatpush1.xpose.msra.mxu0 0.0
    %762 = vmatprep.subr.mxu0 0.0
    %763 = vmatpush1.xpose.msra.mxu0 0.0
    %764 = vmatprep.subr.mxu0 0.0
    %765 = vmatpush1.xpose.msra.mxu0 0.0
    %766 = vmatprep.subr.mxu0 0.0
    %767 = vmatpush1.xpose.msra.mxu0 0.0
    %768 = vmatprep.subr.mxu0 0.0
    %769 = vmatpush1.xpose.msra.mxu0 0.0
    %770 = vmatprep.subr.mxu0 0.0
    %771 = vmatpush1.xpose.msra.mxu0 0.0
    %772 = vmatprep.subr.mxu0 0.0
    %773 = vmatpush1.xpose.msra.mxu0 0.0
    %774 = vmatprep.subr.mxu0 0.0
    %775 = vmatpush1.xpose.msra.mxu0 0.0
    %776 = vmatprep.subr.mxu0 0.0
    %777 = vmatpush1.xpose.msra.mxu0 %v303
    %778 = vmatprep.subr.mxu0 0.0
    %779 = vmatpush1.xpose.msra.mxu0 %v298
    %780 = vmatprep.subr.mxu0 0.0
    %781 = vmatpush2.xpose.msra.mxu0 0.0
    %782 = vmatprep.subr.mxu0 0.0
    %783 = vmatpush2.xpose.msra.mxu0 0.0
    %784 = vmatprep.subr.mxu0 0.0
    %785 = vmatpush2.xpose.msra.mxu0 0.0
    %786 = vmatprep.subr.mxu0 0.0
    %787 = vmatpush2.xpose.msra.mxu0 0.0
    %788 = vmatprep.subr.mxu0 0.0
    %789 = vmatpush2.xpose.msra.mxu0 0.0
    %790 = vmatprep.subr.mxu0 0.0
    %791 = vmatpush2.xpose.msra.mxu0 0.0
    %792 = vmatprep.subr.mxu0 0.0
    %793 = vmatpush2.xpose.msra.mxu0 0.0
    %794 = vmatprep.subr.mxu0 0.0
    %795 = vmatpush2.xpose.msra.mxu0 0.0
    %796 = vmatprep.subr.mxu0 0.0
    %797 = vmatpush2.xpose.msra.mxu0 0.0
    %798 = vmatprep.subr.mxu0 0.0
    %799 = vmatpush2.xpose.msra.mxu0 0.0
    %800 = vmatprep.subr.mxu0 0.0
    %801 = vmatpush2.xpose.msra.mxu0 0.0
    %802 = vmatprep.subr.mxu0 0.0
    %803 = vmatpush2.xpose.msra.mxu0 0.0
    %804 = vmatprep.subr.mxu0 0.0
    %805 = vmatpush2.xpose.msra.mxu0 0.0
    %806 = vmatprep.subr.mxu0 0.0
    %807 = vmatpush2.xpose.msra.mxu0 0.0
    %808 = vmatprep.subr.mxu0 0.0
    %809 = vmatpush2.xpose.msra.mxu0 0.0
    %810 = vmatprep.subr.mxu0 0.0
    %811 = vmatpush2.xpose.msra.mxu0 0.0
    %812 = vmatprep.mubr.f32.mxu0 0.0
    %813 = vmatmul.mubr.f32.gmra.mxu0 %v746
    %v814 = vpop.f32.mrf.mxu0
    %v815 = vadd.f32 %v28, %v814
    %v816 = vpop.f32.mrf.mxu0
    %817 = vmatprep.mubr.f32.mxu0 0.0
    %818 = vmatmul.mubr.f32.gmra.mxu0 %v747
    %v819 = vpop.f32.mrf.mxu0
    %v820 = vadd.f32 %v29, %v819
    %v821 = vpop.f32.mrf.mxu0
    %822 = vdwg.mxu0
    %v823 = vsel %vm458, %v815, -inf
    %824 = vmax.xlane.f32.xlu0 %v823
    %v825 = vpop.xlane.xlu0 %824
    %v826 = vsel %vm458, %v820, -inf
    %827 = vmax.xlane.f32.xlu0 %v826
    %v828 = vpop.xlane.xlu0 %827
    %v829 = vsub.f32 %v815, %v825
    %v830 = vsub.f32 %v820, %v828
    %v831 = vmul.f32 %v829, 1.442695
    %v832 = vpow.pop %v831
    %v833 = vmul.f32 %v830, 1.442695
    %v834 = vpow.pop %v833
    %v835 = vsel %vm458, %v832, 0.0
    %836 = vadd.xlane.f32.xlu0 %v835
    %v837 = vpop.xlane.xlu0 %836
    %v838 = vsel %vm458, %v834, 0.0
    %839 = vadd.xlane.f32.xlu0 %v838
    %v840 = vpop.xlane.xlu0 %839
    %v841 = vrcp.pop %v837
    %v842 = vmul.f32 %v832, %v841
    %v843 = vrcp.pop %v840
    %v844 = vmul.f32 %v834, %v843
    %v845 = vmul.f32 %v373, %v36
    %v846 = vmul.f32 %v378, %v37
    %v848 = vsel %vm458, %v842, 0
    %v851 = vsel %vm458, %v844, 0
    %853 = vmatprep.subr.mxu0 0.0
    %854 = vmatpush1.msra.mxu0 0.0
    %855 = vmatprep.subr.mxu0 0.0
    %856 = vmatpush1.msra.mxu0 0.0
    %857 = vmatprep.subr.mxu0 0.0
    %858 = vmatpush1.msra.mxu0 0.0
    %859 = vmatprep.subr.mxu0 0.0
    %860 = vmatpush1.msra.mxu0 0.0
    %861 = vmatprep.subr.mxu0 0.0
    %862 = vmatpush1.msra.mxu0 0.0
    %863 = vmatprep.subr.mxu0 0.0
    %864 = vmatpush1.msra.mxu0 0.0
    %865 = vmatprep.subr.mxu0 0.0
    %866 = vmatpush1.msra.mxu0 0.0
    %867 = vmatprep.subr.mxu0 0.0
    %868 = vmatpush1.msra.mxu0 0.0
    %869 = vmatprep.subr.mxu0 0.0
    %870 = vmatpush1.msra.mxu0 0.0
    %871 = vmatprep.subr.mxu0 0.0
    %872 = vmatpush1.msra.mxu0 0.0
    %873 = vmatprep.subr.mxu0 0.0
    %874 = vmatpush1.msra.mxu0 0.0
    %875 = vmatprep.subr.mxu0 0.0
    %876 = vmatpush1.msra.mxu0 0.0
    %877 = vmatprep.subr.mxu0 0.0
    %878 = vmatpush1.msra.mxu0 0.0
    %879 = vmatprep.subr.mxu0 0.0
    %880 = vmatpush1.msra.mxu0 0.0
    %881 = vmatprep.subr.mxu0 0.0
    %882 = vmatpush1.msra.mxu0 %v846
    %883 = vmatprep.subr.mxu0 0.0
    %884 = vmatpush1.msra.mxu0 %v845
    %885 = vmatprep.subr.mxu0 0.0
    %886 = vmatpush2.msra.mxu0 0.0
    %887 = vmatprep.subr.mxu0 0.0
    %888 = vmatpush2.msra.mxu0 0.0
    %889 = vmatprep.subr.mxu0 0.0
    %890 = vmatpush2.msra.mxu0 0.0
    %891 = vmatprep.subr.mxu0 0.0
    %892 = vmatpush2.msra.mxu0 0.0
    %893 = vmatprep.subr.mxu0 0.0
    %894 = vmatpush2.msra.mxu0 0.0
    %895 = vmatprep.subr.mxu0 0.0
    %896 = vmatpush2.msra.mxu0 0.0
    %897 = vmatprep.subr.mxu0 0.0
    %898 = vmatpush2.msra.mxu0 0.0
    %899 = vmatprep.subr.mxu0 0.0
    %900 = vmatpush2.msra.mxu0 0.0
    %901 = vmatprep.subr.mxu0 0.0
    %902 = vmatpush2.msra.mxu0 0.0
    %903 = vmatprep.subr.mxu0 0.0
    %904 = vmatpush2.msra.mxu0 0.0
    %905 = vmatprep.subr.mxu0 0.0
    %906 = vmatpush2.msra.mxu0 0.0
    %907 = vmatprep.subr.mxu0 0.0
    %908 = vmatpush2.msra.mxu0 0.0
    %909 = vmatprep.subr.mxu0 0.0
    %910 = vmatpush2.msra.mxu0 0.0
    %911 = vmatprep.subr.mxu0 0.0
    %912 = vmatpush2.msra.mxu0 0.0
    %913 = vmatprep.subr.mxu0 0.0
    %914 = vmatpush2.msra.mxu0 0.0
    %915 = vmatprep.subr.mxu0 0.0
    %916 = vmatpush2.msra.mxu0 0.0
    %917 = vmatprep.mubr.f32.mxu0 0.0
    %918 = vmatmul.mubr.f32.gmra.mxu0 %v848
    %v919 = vpop.f32.mrf.mxu0
    %v920 = vadd.f32 0.0, %v919
    %v921 = vpop.f32.mrf.mxu0
    %922 = vmatprep.mubr.f32.mxu0 0.0
    %923 = vmatmul.mubr.f32.gmra.mxu0 %v851
    %v924 = vpop.f32.mrf.mxu0
    %v925 = vadd.f32 0.0, %v924
    %v926 = vpop.f32.mrf.mxu0
    %927 = vdwg.mxu0
    %v928 = vadd.f32 %v738, %v920
    %v929 = vadd.f32 %v743, %v925
    %v930 = vmul.f32 %v223, %v38
    %v931 = vmul.f32 %v228, %v39
    %932 = vmatprep.subr.mxu0 0.0
    %933 = vmatpush1.xpose.msra.mxu0 0.0
    %934 = vmatprep.subr.mxu0 0.0
    %935 = vmatpush1.xpose.msra.mxu0 0.0
    %936 = vmatprep.subr.mxu0 0.0
    %937 = vmatpush1.xpose.msra.mxu0 0.0
    %938 = vmatprep.subr.mxu0 0.0
    %939 = vmatpush1.xpose.msra.mxu0 0.0
    %940 = vmatprep.subr.mxu0 0.0
    %941 = vmatpush1.xpose.msra.mxu0 0.0
    %942 = vmatprep.subr.mxu0 0.0
    %943 = vmatpush1.xpose.msra.mxu0 0.0
    %944 = vmatprep.subr.mxu0 0.0
    %945 = vmatpush1.xpose.msra.mxu0 0.0
    %946 = vmatprep.subr.mxu0 0.0
    %947 = vmatpush1.xpose.msra.mxu0 0.0
    %948 = vmatprep.subr.mxu0 0.0
    %949 = vmatpush1.xpose.msra.mxu0 0.0
    %950 = vmatprep.subr.mxu0 0.0
    %951 = vmatpush1.xpose.msra.mxu0 0.0
    %952 = vmatprep.subr.mxu0 0.0
    %953 = vmatpush1.xpose.msra.mxu0 0.0
    %954 = vmatprep.subr.mxu0 0.0
    %955 = vmatpush1.xpose.msra.mxu0 0.0
    %956 = vmatprep.subr.mxu0 0.0
    %957 = vmatpush1.xpose.msra.mxu0 0.0
    %958 = vmatprep.subr.mxu0 0.0
    %959 = vmatpush1.xpose.msra.mxu0 0.0
    %960 = vmatprep.subr.mxu0 0.0
    %961 = vmatpush1.xpose.msra.mxu0 %v303
    %962 = vmatprep.subr.mxu0 0.0
    %963 = vmatpush1.xpose.msra.mxu0 %v298
    %964 = vmatprep.subr.mxu0 0.0
    %965 = vmatpush2.xpose.msra.mxu0 0.0
    %966 = vmatprep.subr.mxu0 0.0
    %967 = vmatpush2.xpose.msra.mxu0 0.0
    %968 = vmatprep.subr.mxu0 0.0
    %969 = vmatpush2.xpose.msra.mxu0 0.0
    %970 = vmatprep.subr.mxu0 0.0
    %971 = vmatpush2.xpose.msra.mxu0 0.0
    %972 = vmatprep.subr.mxu0 0.0
    %973 = vmatpush2.xpose.msra.mxu0 0.0
    %974 = vmatprep.subr.mxu0 0.0
    %975 = vmatpush2.xpose.msra.mxu0 0.0
    %976 = vmatprep.subr.mxu0 0.0
    %977 = vmatpush2.xpose.msra.mxu0 0.0
    %978 = vmatprep.subr.mxu0 0.0
    %979 = vmatpush2.xpose.msra.mxu0 0.0
    %980 = vmatprep.subr.mxu0 0.0
    %981 = vmatpush2.xpose.msra.mxu0 0.0
    %982 = vmatprep.subr.mxu0 0.0
    %983 = vmatpush2.xpose.msra.mxu0 0.0
    %984 = vmatprep.subr.mxu0 0.0
    %985 = vmatpush2.xpose.msra.mxu0 0.0
    %986 = vmatprep.subr.mxu0 0.0
    %987 = vmatpush2.xpose.msra.mxu0 0.0
    %988 = vmatprep.subr.mxu0 0.0
    %989 = vmatpush2.xpose.msra.mxu0 0.0
    %990 = vmatprep.subr.mxu0 0.0
    %991 = vmatpush2.xpose.msra.mxu0 0.0
    %992 = vmatprep.subr.mxu0 0.0
    %993 = vmatpush2.xpose.msra.mxu0 0.0
    %994 = vmatprep.subr.mxu0 0.0
    %995 = vmatpush2.xpose.msra.mxu0 0.0
    %996 = vmatprep.mubr.f32.mxu0 0.0
    %997 = vmatmul.mubr.f32.gmra.mxu0 %v930
    %v998 = vpop.f32.mrf.mxu0
    %v999 = vadd.f32 %v28, %v998
    %v1000 = vpop.f32.mrf.mxu0
    %1001 = vmatprep.mubr.f32.mxu0 0.0
    %1002 = vmatmul.mubr.f32.gmra.mxu0 %v931
    %v1003 = vpop.f32.mrf.mxu0
    %v1004 = vadd.f32 %v29, %v1003
    %v1005 = vpop.f32.mrf.mxu0
    %1006 = vdwg.mxu0
    %v1007 = vsel %vm458, %v999, -inf
    %1008 = vmax.xlane.f32.xlu0 %v1007
    %v1009 = vpop.xlane.xlu0 %1008
    %v1010 = vsel %vm458, %v1004, -inf
    %1011 = vmax.xlane.f32.xlu0 %v1010
    %v1012 = vpop.xlane.xlu0 %1011
    %v1013 = vsub.f32 %v999, %v1009
    %v1014 = vsub.f32 %v1004, %v1012
    %v1015 = vmul.f32 %v1013, 1.442695
    %v1016 = vpow.pop %v1015
    %v1017 = vmul.f32 %v1014, 1.442695
    %v1018 = vpow.pop %v1017
    %v1019 = vsel %vm458, %v1016, 0.0
    %1020 = vadd.xlane.f32.xlu0 %v1019
    %v1021 = vpop.xlane.xlu0 %1020
    %v1022 = vsel %vm458, %v1018, 0.0
    %1023 = vadd.xlane.f32.xlu0 %v1022
    %v1024 = vpop.xlane.xlu0 %1023
    %v1025 = vrcp.pop %v1021
    %v1026 = vmul.f32 %v1016, %v1025
    %v1027 = vrcp.pop %v1024
    %v1028 = vmul.f32 %v1018, %v1027
    %v1029 = vmul.f32 %v373, %v38
    %v1030 = vmul.f32 %v378, %v39
    %v1032 = vsel %vm458, %v1026, 0
    %v1035 = vsel %vm458, %v1028, 0
    %1037 = vmatprep.subr.mxu0 0.0
    %1038 = vmatpush1.msra.mxu0 0.0
    %1039 = vmatprep.subr.mxu0 0.0
    %1040 = vmatpush1.msra.mxu0 0.0
    %1041 = vmatprep.subr.mxu0 0.0
    %1042 = vmatpush1.msra.mxu0 0.0
    %1043 = vmatprep.subr.mxu0 0.0
    %1044 = vmatpush1.msra.mxu0 0.0
    %1045 = vmatprep.subr.mxu0 0.0
    %1046 = vmatpush1.msra.mxu0 0.0
    %1047 = vmatprep.subr.mxu0 0.0
    %1048 = vmatpush1.msra.mxu0 0.0
    %1049 = vmatprep.subr.mxu0 0.0
    %1050 = vmatpush1.msra.mxu0 0.0
    %1051 = vmatprep.subr.mxu0 0.0
    %1052 = vmatpush1.msra.mxu0 0.0
    %1053 = vmatprep.subr.mxu0 0.0
    %1054 = vmatpush1.msra.mxu0 0.0
    %1055 = vmatprep.subr.mxu0 0.0
    %1056 = vmatpush1.msra.mxu0 0.0
    %1057 = vmatprep.subr.mxu0 0.0
    %1058 = vmatpush1.msra.mxu0 0.0
    %1059 = vmatprep.subr.mxu0 0.0
    %1060 = vmatpush1.msra.mxu0 0.0
    %1061 = vmatprep.subr.mxu0 0.0
    %1062 = vmatpush1.msra.mxu0 0.0
    %1063 = vmatprep.subr.mxu0 0.0
    %1064 = vmatpush1.msra.mxu0 0.0
    %1065 = vmatprep.subr.mxu0 0.0
    %1066 = vmatpush1.msra.mxu0 %v1030
    %1067 = vmatprep.subr.mxu0 0.0
    %1068 = vmatpush1.msra.mxu0 %v1029
    %1069 = vmatprep.subr.mxu0 0.0
    %1070 = vmatpush2.msra.mxu0 0.0
    %1071 = vmatprep.subr.mxu0 0.0
    %1072 = vmatpush2.msra.mxu0 0.0
    %1073 = vmatprep.subr.mxu0 0.0
    %1074 = vmatpush2.msra.mxu0 0.0
    %1075 = vmatprep.subr.mxu0 0.0
    %1076 = vmatpush2.msra.mxu0 0.0
    %1077 = vmatprep.subr.mxu0 0.0
    %1078 = vmatpush2.msra.mxu0 0.0
    %1079 = vmatprep.subr.mxu0 0.0
    %1080 = vmatpush2.msra.mxu0 0.0
    %1081 = vmatprep.subr.mxu0 0.0
    %1082 = vmatpush2.msra.mxu0 0.0
    %1083 = vmatprep.subr.mxu0 0.0
    %1084 = vmatpush2.msra.mxu0 0.0
    %1085 = vmatprep.subr.mxu0 0.0
    %1086 = vmatpush2.msra.mxu0 0.0
    %1087 = vmatprep.subr.mxu0 0.0
    %1088 = vmatpush2.msra.mxu0 0.0
    %1089 = vmatprep.subr.mxu0 0.0
    %1090 = vmatpush2.msra.mxu0 0.0
    %1091 = vmatprep.subr.mxu0 0.0
    %1092 = vmatpush2.msra.mxu0 0.0
    %1093 = vmatprep.subr.mxu0 0.0
    %1094 = vmatpush2.msra.mxu0 0.0
    %1095 = vmatprep.subr.mxu0 0.0
    %1096 = vmatpush2.msra.mxu0 0.0
    %1097 = vmatprep.subr.mxu0 0.0
    %1098 = vmatpush2.msra.mxu0 0.0
    %1099 = vmatprep.subr.mxu0 0.0
    %1100 = vmatpush2.msra.mxu0 0.0
    %1101 = vmatprep.mubr.f32.mxu0 0.0
    %1102 = vmatmul.mubr.f32.gmra.mxu0 %v1032
    %v1103 = vpop.f32.mrf.mxu0
    %v1104 = vadd.f32 0.0, %v1103
    %v1105 = vpop.f32.mrf.mxu0
    %1106 = vmatprep.mubr.f32.mxu0 0.0
    %1107 = vmatmul.mubr.f32.gmra.mxu0 %v1035
    %v1108 = vpop.f32.mrf.mxu0
    %v1109 = vadd.f32 0.0, %v1108
    %v1110 = vpop.f32.mrf.mxu0
    %1111 = vdwg.mxu0
    %v1112 = vadd.f32 %v928, %v1104
    %v1113 = vadd.f32 %v929, %v1109
    %1114 = vmatprep.subr.mxu0 0.0
    %1115 = vmatpush1.msra.mxu0 %v103
    %1116 = vmatprep.subr.mxu0 0.0
    %1117 = vmatpush1.msra.mxu0 %v102
    %1118 = vmatprep.subr.mxu0 0.0
    %1119 = vmatpush1.msra.mxu0 %v101
    %1120 = vmatprep.subr.mxu0 0.0
    %1121 = vmatpush1.msra.mxu0 %v100
    %1122 = vmatprep.subr.mxu0 0.0
    %1123 = vmatpush1.msra.mxu0 %v99
    %1124 = vmatprep.subr.mxu0 0.0
    %1125 = vmatpush1.msra.mxu0 %v98
    %1126 = vmatprep.subr.mxu0 0.0
    %1127 = vmatpush1.msra.mxu0 %v97
    %1128 = vmatprep.subr.mxu0 0.0
    %1129 = vmatpush1.msra.mxu0 %v96
    %1130 = vmatprep.subr.mxu0 0.0
    %1131 = vmatpush1.msra.mxu0 %v95
    %1132 = vmatprep.subr.mxu0 0.0
    %1133 = vmatpush1.msra.mxu0 %v94
    %1134 = vmatprep.subr.mxu0 0.0
    %1135 = vmatpush1.msra.mxu0 %v93
    %1136 = vmatprep.subr.mxu0 0.0
    %1137 = vmatpush1.msra.mxu0 %v92
    %1138 = vmatprep.subr.mxu0 0.0
    %1139 = vmatpush1.msra.mxu0 %v91
    %1140 = vmatprep.subr.mxu0 0.0
    %1141 = vmatpush1.msra.mxu0 %v90
    %1142 = vmatprep.subr.mxu0 0.0
    %1143 = vmatpush1.msra.mxu0 %v89
    %1144 = vmatprep.subr.mxu0 0.0
    %1145 = vmatpush1.msra.mxu0 %v88
    %1146 = vmatprep.subr.mxu0 0.0
    %1147 = vmatpush2.msra.mxu0 0.0
    %1148 = vmatprep.subr.mxu0 0.0
    %1149 = vmatpush2.msra.mxu0 0.0
    %1150 = vmatprep.subr.mxu0 0.0
    %1151 = vmatpush2.msra.mxu0 0.0
    %1152 = vmatprep.subr.mxu0 0.0
    %1153 = vmatpush2.msra.mxu0 0.0
    %1154 = vmatprep.subr.mxu0 0.0
    %1155 = vmatpush2.msra.mxu0 0.0
    %1156 = vmatprep.subr.mxu0 0.0
    %1157 = vmatpush2.msra.mxu0 0.0
    %1158 = vmatprep.subr.mxu0 0.0
    %1159 = vmatpush2.msra.mxu0 0.0
    %1160 = vmatprep.subr.mxu0 0.0
    %1161 = vmatpush2.msra.mxu0 0.0
    %1162 = vmatprep.subr.mxu0 0.0
    %1163 = vmatpush2.msra.mxu0 0.0
    %1164 = vmatprep.subr.mxu0 0.0
    %1165 = vmatpush2.msra.mxu0 0.0
    %1166 = vmatprep.subr.mxu0 0.0
    %1167 = vmatpush2.msra.mxu0 0.0
    %1168 = vmatprep.subr.mxu0 0.0
    %1169 = vmatpush2.msra.mxu0 0.0
    %1170 = vmatprep.subr.mxu0 0.0
    %1171 = vmatpush2.msra.mxu0 0.0
    %1172 = vmatprep.subr.mxu0 0.0
    %1173 = vmatpush2.msra.mxu0 0.0
    %1174 = vmatprep.subr.mxu0 0.0
    %1175 = vmatpush2.msra.mxu0 0.0
    %1176 = vmatprep.subr.mxu0 0.0
    %1177 = vmatpush2.msra.mxu0 0.0
    %1178 = vmatprep.mubr.f32.mxu0 0.0
    %1179 = vmatmul.mubr.f32.gmra.mxu0 %v1112
    %v1180 = vpop.f32.mrf.mxu0
    %v1181 = vadd.f32 %v142, %v1180
    %v1182 = vpop.f32.mrf.mxu0
    %1183 = vmatprep.mubr.f32.mxu0 0.0
    %1184 = vmatmul.mubr.f32.gmra.mxu0 %v1113
    %v1185 = vpop.f32.mrf.mxu0
    %v1186 = vadd.f32 %v143, %v1185
    %v1187 = vpop.f32.mrf.mxu0
    %1188 = vdwg.mxu0
    %v1189 = vadd.f32 %v26, %v1181
    %v1190 = vadd.f32 %v27, %v1186
    %1191 = vadd.xlane.f32.xlu0 %v1189
    %v1192 = vpop.xlane.xlu0 %1191
    %1193 = vadd.xlane.f32.xlu0 %v1190
    %v1194 = vpop.xlane.xlu0 %1193
    %v1195 = vmul.f32 %v1192, 0.03125
    %v1196 = vmul.f32 %v1194, 0.03125
    %v1197 = vsub.f32 %v1189, %v1195
    %v1198 = vsub.f32 %v1190, %v1196
    %v1199 = vmul.f32 %v1197, %v30
    %v1200 = vmul.f32 %v1198, %v31
    %v1201 = vmul.f32 %v1199, %v1199
    %v1202 = vmul.f32 %v1200, %v1200
    %1203 = vadd.xlane.f32.xlu0 %v1201
    %v1204 = vpop.xlane.xlu0 %1203
    %1205 = vadd.xlane.f32.xlu0 %v1202
    %v1206 = vpop.xlane.xlu0 %1205
    %v1207 = vmul.f32 %v1204, 0.03125
    %v1208 = vmul.f32 %v1206, 0.03125
    %v1209 = vadd.f32 %v1207, 1e-05
    %v1210 = vadd.f32 %v1208, 1e-05
    %v1211 = vrsqrt.pop %v1209
    %v1212 = vrsqrt.pop %v1210
    %v1213 = vmul.f32 %v1197, %v1211
    %v1214 = vmul.f32 %v1198, %v1212
    %v1215 = vmul.f32 %v1213, %v144
    %v1216 = vmul.f32 %v1214, %v145
    %v1217 = vadd.f32 %v1215, %v146
    %v1218 = vadd.f32 %v1216, %v147
    %1219 = vmatprep.subr.mxu0 0.0
    %1220 = vmatpush1.msra.mxu0 %v119
    %1221 = vmatprep.subr.mxu0 0.0
    %1222 = vmatpush1.msra.mxu0 %v118
    %1223 = vmatprep.subr.mxu0 0.0
    %1224 = vmatpush1.msra.mxu0 %v117
    %1225 = vmatprep.subr.mxu0 0.0
    %1226 = vmatpush1.msra.mxu0 %v116
    %1227 = vmatprep.subr.mxu0 0.0
    %1228 = vmatpush1.msra.mxu0 %v115
    %1229 = vmatprep.subr.mxu0 0.0
    %1230 = vmatpush1.msra.mxu0 %v114
    %1231 = vmatprep.subr.mxu0 0.0
    %1232 = vmatpush1.msra.mxu0 %v113
    %1233 = vmatprep.subr.mxu0 0.0
    %1234 = vmatpush1.msra.mxu0 %v112
    %1235 = vmatprep.subr.mxu0 0.0
    %1236 = vmatpush1.msra.mxu0 %v111
    %1237 = vmatprep.subr.mxu0 0.0
    %1238 = vmatpush1.msra.mxu0 %v110
    %1239 = vmatprep.subr.mxu0 0.0
    %1240 = vmatpush1.msra.mxu0 %v109
    %1241 = vmatprep.subr.mxu0 0.0
    %1242 = vmatpush1.msra.mxu0 %v108
    %1243 = vmatprep.subr.mxu0 0.0
    %1244 = vmatpush1.msra.mxu0 %v107
    %1245 = vmatprep.subr.mxu0 0.0
    %1246 = vmatpush1.msra.mxu0 %v106
    %1247 = vmatprep.subr.mxu0 0.0
    %1248 = vmatpush1.msra.mxu0 %v105
    %1249 = vmatprep.subr.mxu0 0.0
    %1250 = vmatpush1.msra.mxu0 %v104
    %1251 = vmatprep.subr.mxu0 0.0
    %1252 = vmatpush2.msra.mxu0 0.0
    %1253 = vmatprep.subr.mxu0 0.0
    %1254 = vmatpush2.msra.mxu0 0.0
    %1255 = vmatprep.subr.mxu0 0.0
    %1256 = vmatpush2.msra.mxu0 0.0
    %1257 = vmatprep.subr.mxu0 0.0
    %1258 = vmatpush2.msra.mxu0 0.0
    %1259 = vmatprep.subr.mxu0 0.0
    %1260 = vmatpush2.msra.mxu0 0.0
    %1261 = vmatprep.subr.mxu0 0.0
    %1262 = vmatpush2.msra.mxu0 0.0
    %1263 = vmatprep.subr.mxu0 0.0
    %1264 = vmatpush2.msra.mxu0 0.0
    %1265 = vmatprep.subr.mxu0 0.0
    %1266 = vmatpush2.msra.mxu0 0.0
    %1267 = vmatprep.subr.mxu0 0.0
    %1268 = vmatpush2.msra.mxu0 0.0
    %1269 = vmatprep.subr.mxu0 0.0
    %1270 = vmatpush2.msra.mxu0 0.0
    %1271 = vmatprep.subr.mxu0 0.0
    %1272 = vmatpush2.msra.mxu0 0.0
    %1273 = vmatprep.subr.mxu0 0.0
    %1274 = vmatpush2.msra.mxu0 0.0
    %1275 = vmatprep.subr.mxu0 0.0
    %1276 = vmatpush2.msra.mxu0 0.0
    %1277 = vmatprep.subr.mxu0 0.0
    %1278 = vmatpush2.msra.mxu0 0.0
    %1279 = vmatprep.subr.mxu0 0.0
    %1280 = vmatpush2.msra.mxu0 0.0
    %1281 = vmatprep.subr.mxu0 0.0
    %1282 = vmatpush2.msra.mxu0 0.0
    %1283 = vmatprep.mubr.f32.mxu0 0.0
    %1284 = vmatmul.mubr.f32.gmra.mxu0 %v1217
    %v1285 = vpop.f32.mrf.mxu0
    %v1286 = vadd.f32 %v148, %v1285
    %v1287 = vpop.f32.mrf.mxu0
    %1288 = vmatprep.mubr.f32.mxu0 0.0
    %1289 = vmatmul.mubr.f32.gmra.mxu0 %v1218
    %v1290 = vpop.f32.mrf.mxu0
    %v1291 = vadd.f32 %v149, %v1290
    %v1292 = vpop.f32.mrf.mxu0
    %1293 = vdwg.mxu0
    %v1294 = vmax.f32 %v1286, 0.0
    %v1295 = vmax.f32 %v1291, 0.0
    %1296 = vmatprep.subr.mxu0 0.0
    %1297 = vmatpush1.msra.mxu0 %v135
    %1298 = vmatprep.subr.mxu0 0.0
    %1299 = vmatpush1.msra.mxu0 %v134
    %1300 = vmatprep.subr.mxu0 0.0
    %1301 = vmatpush1.msra.mxu0 %v133
    %1302 = vmatprep.subr.mxu0 0.0
    %1303 = vmatpush1.msra.mxu0 %v132
    %1304 = vmatprep.subr.mxu0 0.0
    %1305 = vmatpush1.msra.mxu0 %v131
    %1306 = vmatprep.subr.mxu0 0.0
    %1307 = vmatpush1.msra.mxu0 %v130
    %1308 = vmatprep.subr.mxu0 0.0
    %1309 = vmatpush1.msra.mxu0 %v129
    %1310 = vmatprep.subr.mxu0 0.0
    %1311 = vmatpush1.msra.mxu0 %v128
    %1312 = vmatprep.subr.mxu0 0.0
    %1313 = vmatpush1.msra.mxu0 %v127
    %1314 = vmatprep.subr.mxu0 0.0
    %1315 = vmatpush1.msra.mxu0 %v126
    %1316 = vmatprep.subr.mxu0 0.0
    %1317 = vmatpush1.msra.mxu0 %v125
    %1318 = vmatprep.subr.mxu0 0.0
    %1319 = vmatpush1.msra.mxu0 %v124
    %1320 = vmatprep.subr.mxu0 0.0
    %1321 = vmatpush1.msra.mxu0 %v123
    %1322 = vmatprep.subr.mxu0 0.0
    %1323 = vmatpush1.msra.mxu0 %v122
    %1324 = vmatprep.subr.mxu0 0.0
    %1325 = vmatpush1.msra.mxu0 %v121
    %1326 = vmatprep.subr.mxu0 0.0
    %1327 = vmatpush1.msra.mxu0 %v120
    %1328 = vmatprep.subr.mxu0 0.0
    %1329 = vmatpush2.msra.mxu0 0.0
    %1330 = vmatprep.subr.mxu0 0.0
    %1331 = vmatpush2.msra.mxu0 0.0
    %1332 = vmatprep.subr.mxu0 0.0
    %1333 = vmatpush2.msra.mxu0 0.0
    %1334 = vmatprep.subr.mxu0 0.0
    %1335 = vmatpush2.msra.mxu0 0.0
    %1336 = vmatprep.subr.mxu0 0.0
    %1337 = vmatpush2.msra.mxu0 0.0
    %1338 = vmatprep.subr.mxu0 0.0
    %1339 = vmatpush2.msra.mxu0 0.0
    %1340 = vmatprep.subr.mxu0 0.0
    %1341 = vmatpush2.msra.mxu0 0.0
    %1342 = vmatprep.subr.mxu0 0.0
    %1343 = vmatpush2.msra.mxu0 0.0
    %1344 = vmatprep.subr.mxu0 0.0
    %1345 = vmatpush2.msra.mxu0 0.0
    %1346 = vmatprep.subr.mxu0 0.0
    %1347 = vmatpush2.msra.mxu0 0.0
    %1348 = vmatprep.subr.mxu0 0.0
    %1349 = vmatpush2.msra.mxu0 0.0
    %1350 = vmatprep.subr.mxu0 0.0
    %1351 = vmatpush2.msra.mxu0 0.0
    %1352 = vmatprep.subr.mxu0 0.0
    %1353 = vmatpush2.msra.mxu0 0.0
    %1354 = vmatprep.subr.mxu0 0.0
    %1355 = vmatpush2.msra.mxu0 0.0
    %1356 = vmatprep.subr.mxu0 0.0
    %1357 = vmatpush2.msra.mxu0 0.0
    %1358 = vmatprep.subr.mxu0 0.0
    %1359 = vmatpush2.msra.mxu0 0.0
    %1360 = vmatprep.mubr.f32.mxu0 0.0
    %1361 = vmatmul.mubr.f32.gmra.mxu0 %v1294
    %v1362 = vpop.f32.mrf.mxu0
    %v1363 = vadd.f32 %v150, %v1362
    %v1364 = vpop.f32.mrf.mxu0
    %1365 = vmatprep.mubr.f32.mxu0 0.0
    %1366 = vmatmul.mubr.f32.gmra.mxu0 %v1295
    %v1367 = vpop.f32.mrf.mxu0
    %v1368 = vadd.f32 %v151, %v1367
    %v1369 = vpop.f32.mrf.mxu0
    %1370 = vdwg.mxu0
    %v1371 = vadd.f32 %v1217, %v1363
    %v1372 = vadd.f32 %v1218, %v1368
    %1373 = vadd.xlane.f32.xlu0 %v1371
    %v1374 = vpop.xlane.xlu0 %1373
    %1375 = vadd.xlane.f32.xlu0 %v1372
    %v1376 = vpop.xlane.xlu0 %1375
    %v1377 = vmul.f32 %v1374, 0.03125
    %v1378 = vmul.f32 %v1376, 0.03125
    %v1379 = vsub.f32 %v1371, %v1377
    %v1380 = vsub.f32 %v1372, %v1378
    %v1381 = vmul.f32 %v1379, %v30
    %v1382 = vmul.f32 %v1380, %v31
    %v1383 = vmul.f32 %v1381, %v1381
    %v1384 = vmul.f32 %v1382, %v1382
    %1385 = vadd.xlane.f32.xlu0 %v1383
    %v1386 = vpop.xlane.xlu0 %1385
    %1387 = vadd.xlane.f32.xlu0 %v1384
    %v1388 = vpop.xlane.xlu0 %1387
    %v1389 = vmul.f32 %v1386, 0.03125
    %v1390 = vmul.f32 %v1388, 0.03125
    %v1391 = vadd.f32 %v1389, 1e-05
    %v1392 = vadd.f32 %v1390, 1e-05
    %v1393 = vrsqrt.pop %v1391
    %v1394 = vrsqrt.pop %v1392
    %v1395 = vmul.f32 %v1379, %v1393
    %v1396 = vmul.f32 %v1380, %v1394
    %v1397 = vmul.f32 %v1395, %v152
    %v1398 = vmul.f32 %v1396, %v153
    %v1399 = vadd.f32 %v1397, %v154
    %v1400 = vadd.f32 %v1398, %v155
    %v1401 = vld [vmem:[#allocation2 + $0x3a0] sm:$0xff]
    %v1402 = vld [vmem:[#allocation2 + $0x3a8] sm:$0xff]
    %v1403 = vld [vmem:[#allocation2 + $0x3b0] sm:$0xff]
    %v1404 = vld [vmem:[#allocation2 + $0x3b8] sm:$0xff]
    %v1405 = vld [vmem:[#allocation2 + $0x3c0] sm:$0xff]
    %v1406 = vld [vmem:[#allocation2 + $0x3c8] sm:$0xff]
    %v1407 = vld [vmem:[#allocation2 + $0x3d0] sm:$0xff]
    %v1408 = vld [vmem:[#allocation2 + $0x3d8] sm:$0xff]
    %v1409 = vld [vmem:[#allocation2 + $0x3e0] sm:$0xff]
    %v1410 = vld [vmem:[#allocation2 + $0x3e8] sm:$0xff]
    %v1411 = vld [vmem:[#allocation2 + $0x3f0] sm:$0xff]
    %v1412 = vld [vmem:[#allocation2 + $0x3f8] sm:$0xff]
    %v1413 = vld [vmem:[#allocation2 + $0x400] sm:$0xff]
    %v1414 = vld [vmem:[#allocation2 + $0x408] sm:$0xff]
    %v1415 = vld [vmem:[#allocation2 + $0x410] sm:$0xff]
    %v1416 = vld [vmem:[#allocation2 + $0x418] sm:$0xff]
    %v1417 = vld [vmem:[#allocation2 + $0x420] sm:$0xff]
    %v1418 = vld [vmem:[#allocation2 + $0x428] sm:$0xff]
    %v1419 = vld [vmem:[#allocation2 + $0x430] sm:$0xff]
    %v1420 = vld [vmem:[#allocation2 + $0x438] sm:$0xff]
    %v1421 = vld [vmem:[#allocation2 + $0x440] sm:$0xff]
    %v1422 = vld [vmem:[#allocation2 + $0x448] sm:$0xff]
    %v1423 = vld [vmem:[#allocation2 + $0x450] sm:$0xff]
    %v1424 = vld [vmem:[#allocation2 + $0x458] sm:$0xff]
    %v1425 = vld [vmem:[#allocation2 + $0x460] sm:$0xff]
    %v1426 = vld [vmem:[#allocation2 + $0x468] sm:$0xff]
    %v1427 = vld [vmem:[#allocation2 + $0x470] sm:$0xff]
    %v1428 = vld [vmem:[#allocation2 + $0x478] sm:$0xff]
    %v1429 = vld [vmem:[#allocation2 + $0x480] sm:$0xff]
    %v1430 = vld [vmem:[#allocation2 + $0x488] sm:$0xff]
    %v1431 = vld [vmem:[#allocation2 + $0x490] sm:$0xff]
    %v1432 = vld [vmem:[#allocation2 + $0x498] sm:$0xff]
    %v1433 = vld [vmem:[#allocation2 + $0x4a0] sm:$0xff]
    %v1434 = vld [vmem:[#allocation2 + $0x4a8] sm:$0xff]
    %v1435 = vld [vmem:[#allocation2 + $0x4b0] sm:$0xff]
    %v1436 = vld [vmem:[#allocation2 + $0x4b8] sm:$0xff]
    %v1437 = vld [vmem:[#allocation2 + $0x4c0] sm:$0xff]
    %v1438 = vld [vmem:[#allocation2 + $0x4c8] sm:$0xff]
    %v1439 = vld [vmem:[#allocation2 + $0x4d0] sm:$0xff]
    %v1440 = vld [vmem:[#allocation2 + $0x4d8] sm:$0xff]
    %v1441 = vld [vmem:[#allocation2 + $0x4e0] sm:$0xff]
    %v1442 = vld [vmem:[#allocation2 + $0x4e8] sm:$0xff]
    %v1443 = vld [vmem:[#allocation2 + $0x4f0] sm:$0xff]
    %v1444 = vld [vmem:[#allocation2 + $0x4f8] sm:$0xff]
    %v1445 = vld [vmem:[#allocation2 + $0x500] sm:$0xff]
    %v1446 = vld [vmem:[#allocation2 + $0x508] sm:$0xff]
    %v1447 = vld [vmem:[#allocation2 + $0x510] sm:$0xff]
    %v1448 = vld [vmem:[#allocation2 + $0x518] sm:$0xff]
    %v1449 = vld [vmem:[#allocation2 + $0x520] sm:$0xff]
    %v1450 = vld [vmem:[#allocation2 + $0x528] sm:$0xff]
    %v1451 = vld [vmem:[#allocation2 + $0x530] sm:$0xff]
    %v1452 = vld [vmem:[#allocation2 + $0x538] sm:$0xff]
    %v1453 = vld [vmem:[#allocation2 + $0x540] sm:$0xff]
    %v1454 = vld [vmem:[#allocation2 + $0x548] sm:$0xff]
    %v1455 = vld [vmem:[#allocation2 + $0x550] sm:$0xff]
    %v1456 = vld [vmem:[#allocation2 + $0x558] sm:$0xff]
    %v1457 = vld [vmem:[#allocation2 + $0x560] sm:$0xff]
    %v1458 = vld [vmem:[#allocation2 + $0x568] sm:$0xff]
    %v1459 = vld [vmem:[#allocation2 + $0x570] sm:$0xff]
    %v1460 = vld [vmem:[#allocation2 + $0x578] sm:$0xff]
    %v1461 = vld [vmem:[#allocation2 + $0x580] sm:$0xff]
    %v1462 = vld [vmem:[#allocation2 + $0x588] sm:$0xff]
    %v1463 = vld [vmem:[#allocation2 + $0x590] sm:$0xff]
    %v1464 = vld [vmem:[#allocation2 + $0x598] sm:$0xff]
    %v1465 = vld [vmem:[#allocation2 + $0x5a0] sm:$0xff]
    %v1466 = vld [vmem:[#allocation2 + $0x5a8] sm:$0xff]
    %v1467 = vld [vmem:[#allocation2 + $0x5b0] sm:$0xff]
    %v1468 = vld [vmem:[#allocation2 + $0x5b8] sm:$0xff]
    %v1469 = vld [vmem:[#allocation2 + $0x5c0] sm:$0xff]
    %v1470 = vld [vmem:[#allocation2 + $0x5c8] sm:$0xff]
    %v1471 = vld [vmem:[#allocation2 + $0x5d0] sm:$0xff]
    %v1472 = vld [vmem:[#allocation2 + $0x5d8] sm:$0xff]
    %v1473 = vld [vmem:[#allocation2 + $0x5e0] sm:$0xff]
    %v1474 = vld [vmem:[#allocation2 + $0x5e8] sm:$0xff]
    %v1475 = vld [vmem:[#allocation2 + $0x5f0] sm:$0xff]
    %v1476 = vld [vmem:[#allocation2 + $0x5f8] sm:$0xff]
    %v1477 = vld [vmem:[#allocation2 + $0x600] sm:$0xff]
    %v1478 = vld [vmem:[#allocation2 + $0x608] sm:$0xff]
    %v1479 = vld [vmem:[#allocation2 + $0x610] sm:$0xff]
    %v1480 = vld [vmem:[#allocation2 + $0x618] sm:$0xff]
    %v1481 = vld [vmem:[#allocation2 + $0x620] sm:$0xff]
    %v1482 = vld [vmem:[#allocation2 + $0x628] sm:$0xff]
    %v1483 = vld [vmem:[#allocation2 + $0x630] sm:$0xff]
    %v1484 = vld [vmem:[#allocation2 + $0x638] sm:$0xff]
    %v1485 = vld [vmem:[#allocation2 + $0x640] sm:$0xff]
    %v1486 = vld [vmem:[#allocation2 + $0x648] sm:$0xff]
    %v1487 = vld [vmem:[#allocation2 + $0x650] sm:$0xff]
    %v1488 = vld [vmem:[#allocation2 + $0x658] sm:$0xff]
    %v1489 = vld [vmem:[#allocation2 + $0x660] sm:$0xff]
    %v1490 = vld [vmem:[#allocation2 + $0x668] sm:$0xff]
    %v1491 = vld [vmem:[#allocation2 + $0x670] sm:$0xff]
    %v1492 = vld [vmem:[#allocation2 + $0x678] sm:$0xff]
    %v1493 = vld [vmem:[#allocation2 + $0x680] sm:$0xff]
    %v1494 = vld [vmem:[#allocation2 + $0x688] sm:$0xff]
    %v1495 = vld [vmem:[#allocation2 + $0x690] sm:$0xff]
    %v1496 = vld [vmem:[#allocation2 + $0x698] sm:$0xff]
    %v1497 = vld [vmem:[#allocation2 + $0x6a0] sm:$0xff]
    %v1498 = vld [vmem:[#allocation2 + $0x6a8] sm:$0xff]
    %v1499 = vld [vmem:[#allocation2 + $0x6b0] sm:$0xff]
    %v1500 = vld [vmem:[#allocation2 + $0x6b8] sm:$0xff]
    %v1501 = vld [vmem:[#allocation2 + $0x6c0] sm:$0xff]
    %v1502 = vld [vmem:[#allocation2 + $0x6c8] sm:$0xff]
    %v1503 = vld [vmem:[#allocation2 + $0x6d0] sm:$0xff]
    %v1504 = vld [vmem:[#allocation2 + $0x6d8] sm:$0xff]
    %v1505 = vld [vmem:[#allocation2 + $0x6e0] sm:$0xff]
    %v1506 = vld [vmem:[#allocation2 + $0x6e8] sm:$0xff]
    %v1507 = vld [vmem:[#allocation2 + $0x6f0] sm:$0xff]
    %v1508 = vld [vmem:[#allocation2 + $0x6f8] sm:$0xff]
    %v1509 = vld [vmem:[#allocation2 + $0x700] sm:$0xff]
    %v1510 = vld [vmem:[#allocation2 + $0x708] sm:$0xff]
    %v1511 = vld [vmem:[#allocation2 + $0x710] sm:$0xff]
    %v1512 = vld [vmem:[#allocation2 + $0x718] sm:$0xff]
    %v1513 = vld [vmem:[#allocation2 + $0x720] sm:$0xff]
    %v1514 = vld [vmem:[#allocation2 + $0x728] sm:$0xff]
    %v1515 = vld [vmem:[#allocation2 + $0x730] sm:$0xff]
    %v1516 = vld [vmem:[#allocation2 + $0x738] sm:$0xff]
    %1517 = vmatprep.subr.mxu0 0.0
    %1518 = vmatpush1.msra.mxu0 %v1416
    %1519 = vmatprep.subr.mxu0 0.0
    %1520 = vmatpush1.msra.mxu0 %v1415
    %1521 = vmatprep.subr.mxu0 0.0
    %1522 = vmatpush1.msra.mxu0 %v1414
    %1523 = vmatprep.subr.mxu0 0.0
    %1524 = vmatpush1.msra.mxu0 %v1413
    %1525 = vmatprep.subr.mxu0 0.0
    %1526 = vmatpush1.msra.mxu0 %v1412
    %1527 = vmatprep.subr.mxu0 0.0
    %1528 = vmatpush1.msra.mxu0 %v1411
    %1529 = vmatprep.subr.mxu0 0.0
    %1530 = vmatpush1.msra.mxu0 %v1410
    %1531 = vmatprep.subr.mxu0 0.0
    %1532 = vmatpush1.msra.mxu0 %v1409
    %1533 = vmatprep.subr.mxu0 0.0
    %1534 = vmatpush1.msra.mxu0 %v1408
    %1535 = vmatprep.subr.mxu0 0.0
    %1536 = vmatpush1.msra.mxu0 %v1407
    %1537 = vmatprep.subr.mxu0 0.0
    %1538 = vmatpush1.msra.mxu0 %v1406
    %1539 = vmatprep.subr.mxu0 0.0
    %1540 = vmatpush1.msra.mxu0 %v1405
    %1541 = vmatprep.subr.mxu0 0.0
    %1542 = vmatpush1.msra.mxu0 %v1404
    %1543 = vmatprep.subr.mxu0 0.0
    %1544 = vmatpush1.msra.mxu0 %v1403
    %1545 = vmatprep.subr.mxu0 0.0
    %1546 = vmatpush1.msra.mxu0 %v1402
    %1547 = vmatprep.subr.mxu0 0.0
    %1548 = vmatpush1.msra.mxu0 %v1401
    %1549 = vmatprep.subr.mxu0 0.0
    %1550 = vmatpush2.msra.mxu0 0.0
    %1551 = vmatprep.subr.mxu0 0.0
    %1552 = vmatpush2.msra.mxu0 0.0
    %1553 = vmatprep.subr.mxu0 0.0
    %1554 = vmatpush2.msra.mxu0 0.0
    %1555 = vmatprep.subr.mxu0 0.0
    %1556 = vmatpush2.msra.mxu0 0.0
    %1557 = vmatprep.subr.mxu0 0.0
    %1558 = vmatpush2.msra.mxu0 0.0
    %1559 = vmatprep.subr.mxu0 0.0
    %1560 = vmatpush2.msra.mxu0 0.0
    %1561 = vmatprep.subr.mxu0 0.0
    %1562 = vmatpush2.msra.mxu0 0.0
    %1563 = vmatprep.subr.mxu0 0.0
    %1564 = vmatpush2.msra.mxu0 0.0
    %1565 = vmatprep.subr.mxu0 0.0
    %1566 = vmatpush2.msra.mxu0 0.0
    %1567 = vmatprep.subr.mxu0 0.0
    %1568 = vmatpush2.msra.mxu0 0.0
    %1569 = vmatprep.subr.mxu0 0.0
    %1570 = vmatpush2.msra.mxu0 0.0
    %1571 = vmatprep.subr.mxu0 0.0
    %1572 = vmatpush2.msra.mxu0 0.0
    %1573 = vmatprep.subr.mxu0 0.0
    %1574 = vmatpush2.msra.mxu0 0.0
    %1575 = vmatprep.subr.mxu0 0.0
    %1576 = vmatpush2.msra.mxu0 0.0
    %1577 = vmatprep.subr.mxu0 0.0
    %1578 = vmatpush2.msra.mxu0 0.0
    %1579 = vmatprep.subr.mxu0 0.0
    %1580 = vmatpush2.msra.mxu0 0.0
    %1581 = vmatprep.mubr.f32.mxu0 0.0
    %1582 = vmatmul.mubr.f32.gmra.mxu0 %v1399
    %v1583 = vpop.f32.mrf.mxu0
    %v1584 = vadd.f32 %v1497, %v1583
    %v1585 = vpop.f32.mrf.mxu0
    %1586 = vmatprep.mubr.f32.mxu0 0.0
    %1587 = vmatmul.mubr.f32.gmra.mxu0 %v1400
    %v1588 = vpop.f32.mrf.mxu0
    %v1589 = vadd.f32 %v1498, %v1588
    %v1590 = vpop.f32.mrf.mxu0
    %1591 = vdwg.mxu0
    %1592 = vmatprep.subr.mxu0 0.0
    %1593 = vmatpush1.msra.mxu0 %v1432
    %1594 = vmatprep.subr.mxu0 0.0
    %1595 = vmatpush1.msra.mxu0 %v1431
    %1596 = vmatprep.subr.mxu0 0.0
    %1597 = vmatpush1.msra.mxu0 %v1430
    %1598 = vmatprep.subr.mxu0 0.0
    %1599 = vmatpush1.msra.mxu0 %v1429
    %1600 = vmatprep.subr.mxu0 0.0
    %1601 = vmatpush1.msra.mxu0 %v1428
    %1602 = vmatprep.subr.mxu0 0.0
    %1603 = vmatpush1.msra.mxu0 %v1427
    %1604 = vmatprep.subr.mxu0 0.0
    %1605 = vmatpush1.msra.mxu0 %v1426
    %1606 = vmatprep.subr.mxu0 0.0
    %1607 = vmatpush1.msra.mxu0 %v1425
    %1608 = vmatprep.subr.mxu0 0.0
    %1609 = vmatpush1.msra.mxu0 %v1424
    %1610 = vmatprep.subr.mxu0 0.0
    %1611 = vmatpush1.msra.mxu0 %v1423
    %1612 = vmatprep.subr.mxu0 0.0
    %1613 = vmatpush1.msra.mxu0 %v1422
    %1614 = vmatprep.subr.mxu0 0.0
    %1615 = vmatpush1.msra.mxu0 %v1421
    %1616 = vmatprep.subr.mxu0 0.0
    %1617 = vmatpush1.msra.mxu0 %v1420
    %1618 = vmatprep.subr.mxu0 0.0
    %1619 = vmatpush1.msra.mxu0 %v1419
    %1620 = vmatprep.subr.mxu0 0.0
    %1621 = vmatpush1.msra.mxu0 %v1418
    %1622 = vmatprep.subr.mxu0 0.0
    %1623 = vmatpush1.msra.mxu0 %v1417
    %1624 = vmatprep.subr.mxu0 0.0
    %1625 = vmatpush2.msra.mxu0 0.0
    %1626 = vmatprep.subr.mxu0 0.0
    %1627 = vmatpush2.msra.mxu0 0.0
    %1628 = vmatprep.subr.mxu0 0.0
    %1629 = vmatpush2.msra.mxu0 0.0
    %1630 = vmatprep.subr.mxu0 0.0
    %1631 = vmatpush2.msra.mxu0 0.0
    %1632 = vmatprep.subr.mxu0 0.0
    %1633 = vmatpush2.msra.mxu0 0.0
    %1634 = vmatprep.subr.mxu0 0.0
    %1635 = vmatpush2.msra.mxu0 0.0
    %1636 = vmatprep.subr.mxu0 0.0
    %1637 = vmatpush2.msra.mxu0 0.0
    %1638 = vmatprep.subr.mxu0 0.0
    %1639 = vmatpush2.msra.mxu0 0.0
    %1640 = vmatprep.subr.mxu0 0.0
    %1641 = vmatpush2.msra.mxu0 0.0
    %1642 = vmatprep.subr.mxu0 0.0
    %1643 = vmatpush2.msra.mxu0 0.0
    %1644 = vmatprep.subr.mxu0 0.0
    %1645 = vmatpush2.msra.mxu0 0.0
    %1646 = vmatprep.subr.mxu0 0.0
    %1647 = vmatpush2.msra.mxu0 0.0
    %1648 = vmatprep.subr.mxu0 0.0
    %1649 = vmatpush2.msra.mxu0 0.0
    %1650 = vmatprep.subr.mxu0 0.0
    %1651 = vmatpush2.msra.mxu0 0.0
    %1652 = vmatprep.subr.mxu0 0.0
    %1653 = vmatpush2.msra.mxu0 0.0
    %1654 = vmatprep.subr.mxu0 0.0
    %1655 = vmatpush2.msra.mxu0 0.0
    %1656 = vmatprep.mubr.f32.mxu0 0.0
    %1657 = vmatmul.mubr.f32.gmra.mxu0 %v1399
    %v1658 = vpop.f32.mrf.mxu0
    %v1659 = vadd.f32 %v1499, %v1658
    %v1660 = vpop.f32.mrf.mxu0
    %1661 = vmatprep.mubr.f32.mxu0 0.0
    %1662 = vmatmul.mubr.f32.gmra.mxu0 %v1400
    %v1663 = vpop.f32.mrf.mxu0
    %v1664 = vadd.f32 %v1500, %v1663
    %v1665 = vpop.f32.mrf.mxu0
    %1666 = vdwg.mxu0
    %1667 = vmatprep.subr.mxu0 0.0
    %1668 = vmatpush1.msra.mxu0 %v1448
    %1669 = vmatprep.subr.mxu0 0.0
    %1670 = vmatpush1.msra.mxu0 %v1447
    %1671 = vmatprep.subr.mxu0 0.0
    %1672 = vmatpush1.msra.mxu0 %v1446
    %1673 = vmatprep.subr.mxu0 0.0
    %1674 = vmatpush1.msra.mxu0 %v1445
    %1675 = vmatprep.subr.mxu0 0.0
    %1676 = vmatpush1.msra.mxu0 %v1444
    %1677 = vmatprep.subr.mxu0 0.0
    %1678 = vmatpush1.msra.mxu0 %v1443
    %1679 = vmatprep.subr.mxu0 0.0
    %1680 = vmatpush1.msra.mxu0 %v1442
    %1681 = vmatprep.subr.mxu0 0.0
    %1682 = vmatpush1.msra.mxu0 %v1441
    %1683 = vmatprep.subr.mxu0 0.0
    %1684 = vmatpush1.msra.mxu0 %v1440
    %1685 = vmatprep.subr.mxu0 0.0
    %1686 = vmatpush1.msra.mxu0 %v1439
    %1687 = vmatprep.subr.mxu0 0.0
    %1688 = vmatpush1.msra.mxu0 %v1438
    %1689 = vmatprep.subr.mxu0 0.0
    %1690 = vmatpush1.msra.mxu0 %v1437
    %1691 = vmatprep.subr.mxu0 0.0
    %1692 = vmatpush1.msra.mxu0 %v1436
    %1693 = vmatprep.subr.mxu0 0.0
    %1694 = vmatpush1.msra.mxu0 %v1435
    %1695 = vmatprep.subr.mxu0 0.0
    %1696 = vmatpush1.msra.mxu0 %v1434
    %1697 = vmatprep.subr.mxu0 0.0
    %1698 = vmatpush1.msra.mxu0 %v1433
    %1699 = vmatprep.subr.mxu0 0.0
    %1700 = vmatpush2.msra.mxu0 0.0
    %1701 = vmatprep.subr.mxu0 0.0
    %1702 = vmatpush2.msra.mxu0 0.0
    %1703 = vmatprep.subr.mxu0 0.0
    %1704 = vmatpush2.msra.mxu0 0.0
    %1705 = vmatprep.subr.mxu0 0.0
    %1706 = vmatpush2.msra.mxu0 0.0
    %1707 = vmatprep.subr.mxu0 0.0
    %1708 = vmatpush2.msra.mxu0 0.0
    %1709 = vmatprep.subr.mxu0 0.0
    %1710 = vmatpush2.msra.mxu0 0.0
    %1711 = vmatprep.subr.mxu0 0.0
    %1712 = vmatpush2.msra.mxu0 0.0
    %1713 = vmatprep.subr.mxu0 0.0
    %1714 = vmatpush2.msra.mxu0 0.0
    %1715 = vmatprep.subr.mxu0 0.0
    %1716 = vmatpush2.msra.mxu0 0.0
    %1717 = vmatprep.subr.mxu0 0.0
    %1718 = vmatpush2.msra.mxu0 0.0
    %1719 = vmatprep.subr.mxu0 0.0
    %1720 = vmatpush2.msra.mxu0 0.0
    %1721 = vmatprep.subr.mxu0 0.0
    %1722 = vmatpush2.msra.mxu0 0.0
    %1723 = vmatprep.subr.mxu0 0.0
    %1724 = vmatpush2.msra.mxu0 0.0
    %1725 = vmatprep.subr.mxu0 0.0
    %1726 = vmatpush2.msra.mxu0 0.0
    %1727 = vmatprep.subr.mxu0 0.0
    %1728 = vmatpush2.msra.mxu0 0.0
    %1729 = vmatprep.subr.mxu0 0.0
    %1730 = vmatpush2.msra.mxu0 0.0
    %1731 = vmatprep.mubr.f32.mxu0 0.0
    %1732 = vmatmul.mubr.f32.gmra.mxu0 %v1399
    %v1733 = vpop.f32.mrf.mxu0
    %v1734 = vadd.f32 %v1501, %v1733
    %v1735 = vpop.f32.mrf.mxu0
    %1736 = vmatprep.mubr.f32.mxu0 0.0
    %1737 = vmatmul.mubr.f32.gmra.mxu0 %v1400
    %v1738 = vpop.f32.mrf.mxu0
    %v1739 = vadd.f32 %v1502, %v1738
    %v1740 = vpop.f32.mrf.mxu0
    %1741 = vdwg.mxu0
    %v1742 = vmul.f32 %v1584, %v32
    %v1743 = vmul.f32 %v1589, %v33
    %1744 = vmatprep.subr.mxu0 0.0
    %1745 = vmatpush1.xpose.msra.mxu0 0.0
    %1746 = vmatprep.subr.mxu0 0.0
    %1747 = vmatpush1.xpose.msra.mxu0 0.0
    %1748 = vmatprep.subr.mxu0 0.0
    %1749 = vmatpush1.xpose.msra.mxu0 0.0
    %1750 = vmatprep.subr.mxu0 0.0
    %1751 = vmatpush1.xpose.msra.mxu0 0.0
    %1752 = vmatprep.subr.mxu0 0.0
    %1753 = vmatpush1.xpose.msra.mxu0 0.0
    %1754 = vmatprep.subr.mxu0 0.0
    %1755 = vmatpush1.xpose.msra.mxu0 0.0
    %1756 = vmatprep.subr.mxu0 0.0
    %1757 = vmatpush1.xpose.msra.mxu0 0.0
    %1758 = vmatprep.subr.mxu0 0.0
    %1759 = vmatpush1.xpose.msra.mxu0 0.0
    %1760 = vmatprep.subr.mxu0 0.0
    %1761 = vmatpush1.xpose.msra.mxu0 0.0
    %1762 = vmatprep.subr.mxu0 0.0
    %1763 = vmatpush1.xpose.msra.mxu0 0.0
    %1764 = vmatprep.subr.mxu0 0.0
    %1765 = vmatpush1.xpose.msra.mxu0 0.0
    %1766 = vmatprep.subr.mxu0 0.0
    %1767 = vmatpush1.xpose.msra.mxu0 0.0
    %1768 = vmatprep.subr.mxu0 0.0
    %1769 = vmatpush1.xpose.msra.mxu0 0.0
    %1770 = vmatprep.subr.mxu0 0.0
    %1771 = vmatpush1.xpose.msra.mxu0 0.0
    %1772 = vmatprep.subr.mxu0 0.0
    %1773 = vmatpush1.xpose.msra.mxu0 %v1664
    %1774 = vmatprep.subr.mxu0 0.0
    %1775 = vmatpush1.xpose.msra.mxu0 %v1659
    %1776 = vmatprep.subr.mxu0 0.0
    %1777 = vmatpush2.xpose.msra.mxu0 0.0
    %1778 = vmatprep.subr.mxu0 0.0
    %1779 = vmatpush2.xpose.msra.mxu0 0.0
    %1780 = vmatprep.subr.mxu0 0.0
    %1781 = vmatpush2.xpose.msra.mxu0 0.0
    %1782 = vmatprep.subr.mxu0 0.0
    %1783 = vmatpush2.xpose.msra.mxu0 0.0
    %1784 = vmatprep.subr.mxu0 0.0
    %1785 = vmatpush2.xpose.msra.mxu0 0.0
    %1786 = vmatprep.subr.mxu0 0.0
    %1787 = vmatpush2.xpose.msra.mxu0 0.0
    %1788 = vmatprep.subr.mxu0 0.0
    %1789 = vmatpush2.xpose.msra.mxu0 0.0
    %1790 = vmatprep.subr.mxu0 0.0
    %1791 = vmatpush2.xpose.msra.mxu0 0.0
    %1792 = vmatprep.subr.mxu0 0.0
    %1793 = vmatpush2.xpose.msra.mxu0 0.0
    %1794 = vmatprep.subr.mxu0 0.0
    %1795 = vmatpush2.xpose.msra.mxu0 0.0
    %1796 = vmatprep.subr.mxu0 0.0
    %1797 = vmatpush2.xpose.msra.mxu0 0.0
    %1798 = vmatprep.subr.mxu0 0.0
    %1799 = vmatpush2.xpose.msra.mxu0 0.0
    %1800 = vmatprep.subr.mxu0 0.0
    %1801 = vmatpush2.xpose.msra.mxu0 0.0
    %1802 = vmatprep.subr.mxu0 0.0
    %1803 = vmatpush2.xpose.msra.mxu0 0.0
    %1804 = vmatprep.subr.mxu0 0.0
    %1805 = vmatpush2.xpose.msra.mxu0 0.0
    %1806 = vmatprep.subr.mxu0 0.0
    %1807 = vmatpush2.xpose.msra.mxu0 0.0
    %1808 = vmatprep.mubr.f32.mxu0 0.0
    %1809 = vmatmul.mubr.f32.gmra.mxu0 %v1742
    %v1810 = vpop.f32.mrf.mxu0
    %v1811 = vadd.f32 %v28, %v1810
    %v1812 = vpop.f32.mrf.mxu0
    %1813 = vmatprep.mubr.f32.mxu0 0.0
    %1814 = vmatmul.mubr.f32.gmra.mxu0 %v1743
    %v1815 = vpop.f32.mrf.mxu0
    %v1816 = vadd.f32 %v29, %v1815
    %v1817 = vpop.f32.mrf.mxu0
    %1818 = vdwg.mxu0
    %v1819 = vsel %vm458, %v1811, -inf
    %1820 = vmax.xlane.f32.xlu0 %v1819
    %v1821 = vpop.xlane.xlu0 %1820
    %v1822 = vsel %vm458, %v1816, -inf
    %1823 = vmax.xlane.f32.xlu0 %v1822
    %v1824 = vpop.xlane.xlu0 %1823
    %v1825 = vsub.f32 %v1811, %v1821
    %v1826 = vsub.f32 %v1816, %v1824
    %v1827 = vmul.f32 %v1825, 1.442695
    %v1828 = vpow.pop %v1827
    %v1829 = vmul.f32 %v1826, 1.442695
    %v1830 = vpow.pop %v1829
    %v1831 = vsel %vm458, %v1828, 0.0
    %1832 = vadd.xlane.f32.xlu0 %v1831
    %v1833 = vpop.xlane.xlu0 %1832
    %v1834 = vsel %vm458, %v1830, 0.0
    %1835 = vadd.xlane.f32.xlu0 %v1834
    %v1836 = vpop.xlane.xlu0 %1835
    %v1837 = vrcp.pop %v1833
    %v1838 = vmul.f32 %v1828, %v1837
    %v1839 = vrcp.pop %v1836
    %v1840 = vmul.f32 %v1830, %v1839
    %v1841 = vmul.f32 %v1734, %v32
    %v1842 = vmul.f32 %v1739, %v33
    %v1843 = vmul.f32 %v1584, %v34
    %v1844 = vmul.f32 %v1589, %v35
    %1845 = vmatprep.subr.mxu0 0.0
    %1846 = vmatpush1.xpose.msra.mxu0 0.0
    %1847 = vmatprep.subr.mxu0 0.0
    %1848 = vmatpush1.xpose.msra.mxu0 0.0
    %1849 = vmatprep.subr.mxu0 0.0
    %1850 = vmatpush1.xpose.msra.mxu0 0.0
    %1851 = vmatprep.subr.mxu0 0.0
    %1852 = vmatpush1.xpose.msra.mxu0 0.0
    %1853 = vmatprep.subr.mxu0 0.0
    %1854 = vmatpush1.xpose.msra.mxu0 0.0
    %1855 = vmatprep.subr.mxu0 0.0
    %1856 = vmatpush1.xpose.msra.mxu0 0.0
    %1857 = vmatprep.subr.mxu0 0.0
    %1858 = vmatpush1.xpose.msra.mxu0 0.0
    %1859 = vmatprep.subr.mxu0 0.0
    %1860 = vmatpush1.xpose.msra.mxu0 0.0
    %1861 = vmatprep.subr.mxu0 0.0
    %1862 = vmatpush1.xpose.msra.mxu0 0.0
    %1863 = vmatprep.subr.mxu0 0.0
    %1864 = vmatpush1.xpose.msra.mxu0 0.0
    %1865 = vmatprep.subr.mxu0 0.0
    %1866 = vmatpush1.xpose.msra.mxu0 0.0
    %1867 = vmatprep.subr.mxu0 0.0
    %1868 = vmatpush1.xpose.msra.mxu0 0.0
    %1869 = vmatprep.subr.mxu0 0.0
    %1870 = vmatpush1.xpose.msra.mxu0 0.0
    %1871 = vmatprep.subr.mxu0 0.0
    %1872 = vmatpush1.xpose.msra.mxu0 0.0
    %1873 = vmatprep.subr.mxu0 0.0
    %1874 = vmatpush1.xpose.msra.mxu0 %v1664
    %1875 = vmatprep.subr.mxu0 0.0
    %1876 = vmatpush1.xpose.msra.mxu0 %v1659
    %1877 = vmatprep.subr.mxu0 0.0
    %1878 = vmatpush2.xpose.msra.mxu0 0.0
    %1879 = vmatprep.subr.mxu0 0.0
    %1880 = vmatpush2.xpose.msra.mxu0 0.0
    %1881 = vmatprep.subr.mxu0 0.0
    %1882 = vmatpush2.xpose.msra.mxu0 0.0
    %1883 = vmatprep.subr.mxu0 0.0
    %1884 = vmatpush2.xpose.msra.mxu0 0.0
    %1885 = vmatprep.subr.mxu0 0.0
    %1886 = vmatpush2.xpose.msra.mxu0 0.0
    %1887 = vmatprep.subr.mxu0 0.0
    %1888 = vmatpush2.xpose.msra.mxu0 0.0
    %1889 = vmatprep.subr.mxu0 0.0
    %1890 = vmatpush2.xpose.msra.mxu0 0.0
    %1891 = vmatprep.subr.mxu0 0.0
    %1892 = vmatpush2.xpose.msra.mxu0 0.0
    %1893 = vmatprep.subr.mxu0 0.0
    %1894 = vmatpush2.xpose.msra.mxu0 0.0
    %1895 = vmatprep.subr.mxu0 0.0
    %1896 = vmatpush2.xpose.msra.mxu0 0.0
    %1897 = vmatprep.subr.mxu0 0.0
    %1898 = vmatpush2.xpose.msra.mxu0 0.0
    %1899 = vmatprep.subr.mxu0 0.0
    %1900 = vmatpush2.xpose.msra.mxu0 0.0
    %1901 = vmatprep.subr.mxu0 0.0
    %1902 = vmatpush2.xpose.msra.mxu0 0.0
    %1903 = vmatprep.subr.mxu0 0.0
    %1904 = vmatpush2.xpose.msra.mxu0 0.0
    %1905 = vmatprep.subr.mxu0 0.0
    %1906 = vmatpush2.xpose.msra.mxu0 0.0
    %1907 = vmatprep.subr.mxu0 0.0
    %1908 = vmatpush2.xpose.msra.mxu0 0.0
    %1909 = vmatprep.mubr.f32.mxu0 0.0
    %1910 = vmatmul.mubr.f32.gmra.mxu0 %v1843
    %v1911 = vpop.f32.mrf.mxu0
    %v1912 = vadd.f32 %v28, %v1911
    %v1913 = vpop.f32.mrf.mxu0
    %1914 = vmatprep.mubr.f32.mxu0 0.0
    %1915 = vmatmul.mubr.f32.gmra.mxu0 %v1844
    %v1916 = vpop.f32.mrf.mxu0
    %v1917 = vadd.f32 %v29, %v1916
    %v1918 = vpop.f32.mrf.mxu0
    %1919 = vdwg.mxu0
    %v1920 = vsel %vm458, %v1912, -inf
    %1921 = vmax.xlane.f32.xlu0 %v1920
    %v1922 = vpop.xlane.xlu0 %1921
    %v1923 = vsel %vm458, %v1917, -inf
    %1924 = vmax.xlane.f32.xlu0 %v1923
    %v1925 = vpop.xlane.xlu0 %1924
    %v1926 = vsub.f32 %v1912, %v1922
    %v1927 = vsub.f32 %v1917, %v1925
    %v1928 = vmul.f32 %v1926, 1.442695
    %v1929 = vpow.pop %v1928
    %v1930 = vmul.f32 %v1927, 1.442695
    %v1931 = vpow.pop %v1930
    %v1932 = vsel %vm458, %v1929, 0.0
    %1933 = vadd.xlane.f32.xlu0 %v1932
    %v1934 = vpop.xlane.xlu0 %1933
    %v1935 = vsel %vm458, %v1931, 0.0
    %1936 = vadd.xlane.f32.xlu0 %v1935
    %v1937 = vpop.xlane.xlu0 %1936
    %v1938 = vrcp.pop %v1934
    %v1939 = vmul.f32 %v1929, %v1938
    %v1940 = vrcp.pop %v1937
    %v1941 = vmul.f32 %v1931, %v1940
    %v1942 = vmul.f32 %v1734, %v34
    %v1943 = vmul.f32 %v1739, %v35
    %v1945 = vsel %vm458, %v1939, 0
    %v1948 = vsel %vm458, %v1941, 0
    %1950 = vmatprep.subr.mxu0 0.0
    %1951 = vmatpush1.msra.mxu0 0.0
    %1952 = vmatprep.subr.mxu0 0.0
    %1953 = vmatpush1.msra.mxu0 0.0
    %1954 = vmatprep.subr.mxu0 0.0
    %1955 = vmatpush1.msra.mxu0 0.0
    %1956 = vmatprep.subr.mxu0 0.0
    %1957 = vmatpush1.msra.mxu0 0.0
    %1958 = vmatprep.subr.mxu0 0.0
    %1959 = vmatpush1.msra.mxu0 0.0
    %1960 = vmatprep.subr.mxu0 0.0
    %1961 = vmatpush1.msra.mxu0 0.0
    %1962 = vmatprep.subr.mxu0 0.0
    %1963 = vmatpush1.msra.mxu0 0.0
    %1964 = vmatprep.subr.mxu0 0.0
    %1965 = vmatpush1.msra.mxu0 0.0
    %1966 = vmatprep.subr.mxu0 0.0
    %1967 = vmatpush1.msra.mxu0 0.0
    %1968 = vmatprep.subr.mxu0 0.0
    %1969 = vmatpush1.msra.mxu0 0.0
    %1970 = vmatprep.subr.mxu0 0.0
    %1971 = vmatpush1.msra.mxu0 0.0
    %1972 = vmatprep.subr.mxu0 0.0
    %1973 = vmatpush1.msra.mxu0 0.0
    %1974 = vmatprep.subr.mxu0 0.0
    %1975 = vmatpush1.msra.mxu0 0.0
    %1976 = vmatprep.subr.mxu0 0.0
    %1977 = vmatpush1.msra.mxu0 0.0
    %1978 = vmatprep.subr.mxu0 0.0
    %1979 = vmatpush1.msra.mxu0 %v1943
    %1980 = vmatprep.subr.mxu0 0.0
    %1981 = vmatpush1.msra.mxu0 %v1942
    %1982 = vmatprep.subr.mxu0 0.0
    %1983 = vmatpush2.msra.mxu0 0.0
    %1984 = vmatprep.subr.mxu0 0.0
    %1985 = vmatpush2.msra.mxu0 0.0
    %1986 = vmatprep.subr.mxu0 0.0
    %1987 = vmatpush2.msra.mxu0 0.0
    %1988 = vmatprep.subr.mxu0 0.0
    %1989 = vmatpush2.msra.mxu0 0.0
    %1990 = vmatprep.subr.mxu0 0.0
    %1991 = vmatpush2.msra.mxu0 0.0
    %1992 = vmatprep.subr.mxu0 0.0
    %1993 = vmatpush2.msra.mxu0 0.0
    %1994 = vmatprep.subr.mxu0 0.0
    %1995 = vmatpush2.msra.mxu0 0.0
    %1996 = vmatprep.subr.mxu0 0.0
    %1997 = vmatpush2.msra.mxu0 0.0
    %1998 = vmatprep.subr.mxu0 0.0
    %1999 = vmatpush2.msra.mxu0 0.0
    %2000 = vmatprep.subr.mxu0 0.0
    %2001 = vmatpush2.msra.mxu0 0.0
    %2002 = vmatprep.subr.mxu0 0.0
    %2003 = vmatpush2.msra.mxu0 0.0
    %2004 = vmatprep.subr.mxu0 0.0
    %2005 = vmatpush2.msra.mxu0 0.0
    %2006 = vmatprep.subr.mxu0 0.0
    %2007 = vmatpush2.msra.mxu0 0.0
    %2008 = vmatprep.subr.mxu0 0.0
    %2009 = vmatpush2.msra.mxu0 0.0
    %2010 = vmatprep.subr.mxu0 0.0
    %2011 = vmatpush2.msra.mxu0 0.0
    %2012 = vmatprep.subr.mxu0 0.0
    %2013 = vmatpush2.msra.mxu0 0.0
    %2014 = vmatprep.mubr.f32.mxu0 0.0
    %2015 = vmatmul.mubr.f32.gmra.mxu0 %v1945
    %v2016 = vpop.f32.mrf.mxu0
    %v2017 = vadd.f32 0.0, %v2016
    %v2018 = vpop.f32.mrf.mxu0
    %2019 = vmatprep.mubr.f32.mxu0 0.0
    %2020 = vmatmul.mubr.f32.gmra.mxu0 %v1948
    %v2021 = vpop.f32.mrf.mxu0
    %v2022 = vadd.f32 0.0, %v2021
    %v2023 = vpop.f32.mrf.mxu0
    %2024 = vdwg.mxu0
    %v2026 = vsel %vm458, %v1838, 0
    %v2029 = vsel %vm458, %v1840, 0
    %2031 = vmatprep.subr.mxu0 0.0
    %2032 = vmatpush1.msra.mxu0 0.0
    %2033 = vmatprep.subr.mxu0 0.0
    %2034 = vmatpush1.msra.mxu0 0.0
    %2035 = vmatprep.subr.mxu0 0.0
    %2036 = vmatpush1.msra.mxu0 0.0
    %2037 = vmatprep.subr.mxu0 0.0
    %2038 = vmatpush1.msra.mxu0 0.0
    %2039 = vmatprep.subr.mxu0 0.0
    %2040 = vmatpush1.msra.mxu0 0.0
    %2041 = vmatprep.subr.mxu0 0.0
    %2042 = vmatpush1.msra.mxu0 0.0
    %2043 = vmatprep.subr.mxu0 0.0
    %2044 = vmatpush1.msra.mxu0 0.0
    %2045 = vmatprep.subr.mxu0 0.0
    %2046 = vmatpush1.msra.mxu0 0.0
    %2047 = vmatprep.subr.mxu0 0.0
    %2048 = vmatpush1.msra.mxu0 0.0
    %2049 = vmatprep.subr.mxu0 0.0
    %2050 = vmatpush1.msra.mxu0 0.0
    %2051 = vmatprep.subr.mxu0 0.0
    %2052 = vmatpush1.msra.mxu0 0.0
    %2053 = vmatprep.subr.mxu0 0.0
    %2054 = vmatpush1.msra.mxu0 0.0
    %2055 = vmatprep.subr.mxu0 0.0
    %2056 = vmatpush1.msra.mxu0 0.0
    %2057 = vmatprep.subr.mxu0 0.0
    %2058 = vmatpush1.msra.mxu0 0.0
    %2059 = vmatprep.subr.mxu0 0.0
    %2060 = vmatpush1.msra.mxu0 %v1842
    %2061 = vmatprep.subr.mxu0 0.0
    %2062 = vmatpush1.msra.mxu0 %v1841
    %2063 = vmatprep.subr.mxu0 0.0
    %2064 = vmatpush2.msra.mxu0 0.0
    %2065 = vmatprep.subr.mxu0 0.0
    %2066 = vmatpush2.msra.mxu0 0.0
    %2067 = vmatprep.subr.mxu0 0.0
    %2068 = vmatpush2.msra.mxu0 0.0
    %2069 = vmatprep.subr.mxu0 0.0
    %2070 = vmatpush2.msra.mxu0 0.0
    %2071 = vmatprep.subr.mxu0 0.0
    %2072 = vmatpush2.msra.mxu0 0.0
    %2073 = vmatprep.subr.mxu0 0.0
    %2074 = vmatpush2.msra.mxu0 0.0
    %2075 = vmatprep.subr.mxu0 0.0
    %2076 = vmatpush2.msra.mxu0 0.0
    %2077 = vmatprep.subr.mxu0 0.0
    %2078 = vmatpush2.msra.mxu0 0.0
    %2079 = vmatprep.subr.mxu0 0.0
    %2080 = vmatpush2.msra.mxu0 0.0
    %2081 = vmatprep.subr.mxu0 0.0
    %2082 = vmatpush2.msra.mxu0 0.0
    %2083 = vmatprep.subr.mxu0 0.0
    %2084 = vmatpush2.msra.mxu0 0.0
    %2085 = vmatprep.subr.mxu0 0.0
    %2086 = vmatpush2.msra.mxu0 0.0
    %2087 = vmatprep.subr.mxu0 0.0
    %2088 = vmatpush2.msra.mxu0 0.0
    %2089 = vmatprep.subr.mxu0 0.0
    %2090 = vmatpush2.msra.mxu0 0.0
    %2091 = vmatprep.subr.mxu0 0.0
    %2092 = vmatpush2.msra.mxu0 0.0
    %2093 = vmatprep.subr.mxu0 0.0
    %2094 = vmatpush2.msra.mxu0 0.0
    %2095 = vmatprep.mubr.f32.mxu0 0.0
    %2096 = vmatmul.mubr.f32.gmra.mxu0 %v2026
    %v2097 = vpop.f32.mrf.mxu0
    %v2098 = vadd.f32 %v2017, %v2097
    %v2099 = vpop.f32.mrf.mxu0
    %2100 = vmatprep.mubr.f32.mxu0 0.0
    %2101 = vmatmul.mubr.f32.gmra.mxu0 %v2029
    %v2102 = vpop.f32.mrf.mxu0
    %v2103 = vadd.f32 %v2022, %v2102
    %v2104 = vpop.f32.mrf.mxu0
    %2105 = vdwg.mxu0
    %v2106 = vmul.f32 %v1584, %v36
    %v2107 = vmul.f32 %v1589, %v37
    %2108 = vmatprep.subr.mxu0 0.0
    %2109 = vmatpush1.xpose.msra.mxu0 0.0
    %2110 = vmatprep.subr.mxu0 0.0
    %2111 = vmatpush1.xpose.msra.mxu0 0.0
    %2112 = vmatprep.subr.mxu0 0.0
    %2113 = vmatpush1.xpose.msra.mxu0 0.0
    %2114 = vmatprep.subr.mxu0 0.0
    %2115 = vmatpush1.xpose.msra.mxu0 0.0
    %2116 = vmatprep.subr.mxu0 0.0
    %2117 = vmatpush1.xpose.msra.mxu0 0.0
    %2118 = vmatprep.subr.mxu0 0.0
    %2119 = vmatpush1.xpose.msra.mxu0 0.0
    %2120 = vmatprep.subr.mxu0 0.0
    %2121 = vmatpush1.xpose.msra.mxu0 0.0
    %2122 = vmatprep.subr.mxu0 0.0
    %2123 = vmatpush1.xpose.msra.mxu0 0.0
    %2124 = vmatprep.subr.mxu0 0.0
    %2125 = vmatpush1.xpose.msra.mxu0 0.0
    %2126 = vmatprep.subr.mxu0 0.0
    %2127 = vmatpush1.xpose.msra.mxu0 0.0
    %2128 = vmatprep.subr.mxu0 0.0
    %2129 = vmatpush1.xpose.msra.mxu0 0.0
    %2130 = vmatprep.subr.mxu0 0.0
    %2131 = vmatpush1.xpose.msra.mxu0 0.0
    %2132 = vmatprep.subr.mxu0 0.0
    %2133 = vmatpush1.xpose.msra.mxu0 0.0
    %2134 = vmatprep.subr.mxu0 0.0
    %2135 = vmatpush1.xpose.msra.mxu0 0.0
    %2136 = vmatprep.subr.mxu0 0.0
    %2137 = vmatpush1.xpose.msra.mxu0 %v1664
    %2138 = vmatprep.subr.mxu0 0.0
    %2139 = vmatpush1.xpose.msra.mxu0 %v1659
    %2140 = vmatprep.subr.mxu0 0.0
    %2141 = vmatpush2.xpose.msra.mxu0 0.0
    %2142 = vmatprep.subr.mxu0 0.0
    %2143 = vmatpush2.xpose.msra.mxu0 0.0
    %2144 = vmatprep.subr.mxu0 0.0
    %2145 = vmatpush2.xpose.msra.mxu0 0.0
    %2146 = vmatprep.subr.mxu0 0.0
    %2147 = vmatpush2.xpose.msra.mxu0 0.0
    %2148 = vmatprep.subr.mxu0 0.0
    %2149 = vmatpush2.xpose.msra.mxu0 0.0
    %2150 = vmatprep.subr.mxu0 0.0
    %2151 = vmatpush2.xpose.msra.mxu0 0.0
    %2152 = vmatprep.subr.mxu0 0.0
    %2153 = vmatpush2.xpose.msra.mxu0 0.0
    %2154 = vmatprep.subr.mxu0 0.0
    %2155 = vmatpush2.xpose.msra.mxu0 0.0
    %2156 = vmatprep.subr.mxu0 0.0
    %2157 = vmatpush2.xpose.msra.mxu0 0.0
    %2158 = vmatprep.subr.mxu0 0.0
    %2159 = vmatpush2.xpose.msra.mxu0 0.0
    %2160 = vmatprep.subr.mxu0 0.0
    %2161 = vmatpush2.xpose.msra.mxu0 0.0
    %2162 = vmatprep.subr.mxu0 0.0
    %2163 = vmatpush2.xpose.msra.mxu0 0.0
    %2164 = vmatprep.subr.mxu0 0.0
    %2165 = vmatpush2.xpose.msra.mxu0 0.0
    %2166 = vmatprep.subr.mxu0 0.0
    %2167 = vmatpush2.xpose.msra.mxu0 0.0
    %2168 = vmatprep.subr.mxu0 0.0
    %2169 = vmatpush2.xpose.msra.mxu0 0.0
    %2170 = vmatprep.subr.mxu0 0.0
    %2171 = vmatpush2.xpose.msra.mxu0 0.0
    %2172 = vmatprep.mubr.f32.mxu0 0.0
    %2173 = vmatmul.mubr.f32.gmra.mxu0 %v2106
    %v2174 = vpop.f32.mrf.mxu0
    %v2175 = vadd.f32 %v28, %v2174
    %v2176 = vpop.f32.mrf.mxu0
    %2177 = vmatprep.mubr.f32.mxu0 0.0
    %2178 = vmatmul.mubr.f32.gmra.mxu0 %v2107
    %v2179 = vpop.f32.mrf.mxu0
    %v2180 = vadd.f32 %v29, %v2179
    %v2181 = vpop.f32.mrf.mxu0
    %2182 = vdwg.mxu0
    %v2183 = vsel %vm458, %v2175, -inf
    %2184 = vmax.xlane.f32.xlu0 %v2183
    %v2185 = vpop.xlane.xlu0 %2184
    %v2186 = vsel %vm458, %v2180, -inf
    %2187 = vmax.xlane.f32.xlu0 %v2186
    %v2188 = vpop.xlane.xlu0 %2187
    %v2189 = vsub.f32 %v2175, %v2185
    %v2190 = vsub.f32 %v2180, %v2188
    %v2191 = vmul.f32 %v2189, 1.442695
    %v2192 = vpow.pop %v2191
    %v2193 = vmul.f32 %v2190, 1.442695
    %v2194 = vpow.pop %v2193
    %v2195 = vsel %vm458, %v2192, 0.0
    %2196 = vadd.xlane.f32.xlu0 %v2195
    %v2197 = vpop.xlane.xlu0 %2196
    %v2198 = vsel %vm458, %v2194, 0.0
    %2199 = vadd.xlane.f32.xlu0 %v2198
    %v2200 = vpop.xlane.xlu0 %2199
    %v2201 = vrcp.pop %v2197
    %v2202 = vmul.f32 %v2192, %v2201
    %v2203 = vrcp.pop %v2200
    %v2204 = vmul.f32 %v2194, %v2203
    %v2205 = vmul.f32 %v1734, %v36
    %v2206 = vmul.f32 %v1739, %v37
    %v2208 = vsel %vm458, %v2202, 0
    %v2211 = vsel %vm458, %v2204, 0
    %2213 = vmatprep.subr.mxu0 0.0
    %2214 = vmatpush1.msra.mxu0 0.0
    %2215 = vmatprep.subr.mxu0 0.0
    %2216 = vmatpush1.msra.mxu0 0.0
    %2217 = vmatprep.subr.mxu0 0.0
    %2218 = vmatpush1.msra.mxu0 0.0
    %2219 = vmatprep.subr.mxu0 0.0
    %2220 = vmatpush1.msra.mxu0 0.0
    %2221 = vmatprep.subr.mxu0 0.0
    %2222 = vmatpush1.msra.mxu0 0.0
    %2223 = vmatprep.subr.mxu0 0.0
    %2224 = vmatpush1.msra.mxu0 0.0
    %2225 = vmatprep.subr.mxu0 0.0
    %2226 = vmatpush1.msra.mxu0 0.0
    %2227 = vmatprep.subr.mxu0 0.0
    %2228 = vmatpush1.msra.mxu0 0.0
    %2229 = vmatprep.subr.mxu0 0.0
    %2230 = vmatpush1.msra.mxu0 0.0
    %2231 = vmatprep.subr.mxu0 0.0
    %2232 = vmatpush1.msra.mxu0 0.0
    %2233 = vmatprep.subr.mxu0 0.0
    %2234 = vmatpush1.msra.mxu0 0.0
    %2235 = vmatprep.subr.mxu0 0.0
    %2236 = vmatpush1.msra.mxu0 0.0
    %2237 = vmatprep.subr.mxu0 0.0
    %2238 = vmatpush1.msra.mxu0 0.0
    %2239 = vmatprep.subr.mxu0 0.0
    %2240 = vmatpush1.msra.mxu0 0.0
    %2241 = vmatprep.subr.mxu0 0.0
    %2242 = vmatpush1.msra.mxu0 %v2206
    %2243 = vmatprep.subr.mxu0 0.0
    %2244 = vmatpush1.msra.mxu0 %v2205
    %2245 = vmatprep.subr.mxu0 0.0
    %2246 = vmatpush2.msra.mxu0 0.0
    %2247 = vmatprep.subr.mxu0 0.0
    %2248 = vmatpush2.msra.mxu0 0.0
    %2249 = vmatprep.subr.mxu0 0.0
    %2250 = vmatpush2.msra.mxu0 0.0
    %2251 = vmatprep.subr.mxu0 0.0
    %2252 = vmatpush2.msra.mxu0 0.0
    %2253 = vmatprep.subr.mxu0 0.0
    %2254 = vmatpush2.msra.mxu0 0.0
    %2255 = vmatprep.subr.mxu0 0.0
    %2256 = vmatpush2.msra.mxu0 0.0
    %2257 = vmatprep.subr.mxu0 0.0
    %2258 = vmatpush2.msra.mxu0 0.0
    %2259 = vmatprep.subr.mxu0 0.0
    %2260 = vmatpush2.msra.mxu0 0.0
    %2261 = vmatprep.subr.mxu0 0.0
    %2262 = vmatpush2.msra.mxu0 0.0
    %2263 = vmatprep.subr.mxu0 0.0
    %2264 = vmatpush2.msra.mxu0 0.0
    %2265 = vmatprep.subr.mxu0 0.0
    %2266 = vmatpush2.msra.mxu0 0.0
    %2267 = vmatprep.subr.mxu0 0.0
    %2268 = vmatpush2.msra.mxu0 0.0
    %2269 = vmatprep.subr.mxu0 0.0
    %2270 = vmatpush2.msra.mxu0 0.0
    %2271 = vmatprep.subr.mxu0 0.0
    %2272 = vmatpush2.msra.mxu0 0.0
    %2273 = vmatprep.subr.mxu0 0.0
    %2274 = vmatpush2.msra.mxu0 0.0
    %2275 = vmatprep.subr.mxu0 0.0
    %2276 = vmatpush2.msra.mxu0 0.0
    %2277 = vmatprep.mubr.f32.mxu0 0.0
    %2278 = vmatmul.mubr.f32.gmra.mxu0 %v2208
    %v2279 = vpop.f32.mrf.mxu0
    %v2280 = vadd.f32 0.0, %v2279
    %v2281 = vpop.f32.mrf.mxu0
    %2282 = vmatprep.mubr.f32.mxu0 0.0
    %2283 = vmatmul.mubr.f32.gmra.mxu0 %v2211
    %v2284 = vpop.f32.mrf.mxu0
    %v2285 = vadd.f32 0.0, %v2284
    %v2286 = vpop.f32.mrf.mxu0
    %2287 = vdwg.mxu0
    %v2288 = vadd.f32 %v2098, %v2280
    %v2289 = vadd.f32 %v2103, %v2285
    %v2290 = vmul.f32 %v1584, %v38
    %v2291 = vmul.f32 %v1589, %v39
    %2292 = vmatprep.subr.mxu0 0.0
    %2293 = vmatpush1.xpose.msra.mxu0 0.0
    %2294 = vmatprep.subr.mxu0 0.0
    %2295 = vmatpush1.xpose.msra.mxu0 0.0
    %2296 = vmatprep.subr.mxu0 0.0
    %2297 = vmatpush1.xpose.msra.mxu0 0.0
    %2298 = vmatprep.subr.mxu0 0.0
    %2299 = vmatpush1.xpose.msra.mxu0 0.0
    %2300 = vmatprep.subr.mxu0 0.0
    %2301 = vmatpush1.xpose.msra.mxu0 0.0
    %2302 = vmatprep.subr.mxu0 0.0
    %2303 = vmatpush1.xpose.msra.mxu0 0.0
    %2304 = vmatprep.subr.mxu0 0.0
    %2305 = vmatpush1.xpose.msra.mxu0 0.0
    %2306 = vmatprep.subr.mxu0 0.0
    %2307 = vmatpush1.xpose.msra.mxu0 0.0
    %2308 = vmatprep.subr.mxu0 0.0
    %2309 = vmatpush1.xpose.msra.mxu0 0.0
    %2310 = vmatprep.subr.mxu0 0.0
    %2311 = vmatpush1.xpose.msra.mxu0 0.0
    %2312 = vmatprep.subr.mxu0 0.0
    %2313 = vmatpush1.xpose.msra.mxu0 0.0
    %2314 = vmatprep.subr.mxu0 0.0
    %2315 = vmatpush1.xpose.msra.mxu0 0.0
    %2316 = vmatprep.subr.mxu0 0.0
    %2317 = vmatpush1.xpose.msra.mxu0 0.0
    %2318 = vmatprep.subr.mxu0 0.0
    %2319 = vmatpush1.xpose.msra.mxu0 0.0
    %2320 = vmatprep.subr.mxu0 0.0
    %2321 = vmatpush1.xpose.msra.mxu0 %v1664
    %2322 = vmatprep.subr.mxu0 0.0
    %2323 = vmatpush1.xpose.msra.mxu0 %v1659
    %2324 = vmatprep.subr.mxu0 0.0
    %2325 = vmatpush2.xpose.msra.mxu0 0.0
    %2326 = vmatprep.subr.mxu0 0.0
    %2327 = vmatpush2.xpose.msra.mxu0 0.0
    %2328 = vmatprep.subr.mxu0 0.0
    %2329 = vmatpush2.xpose.msra.mxu0 0.0
    %2330 = vmatprep.subr.mxu0 0.0
    %2331 = vmatpush2.xpose.msra.mxu0 0.0
    %2332 = vmatprep.subr.mxu0 0.0
    %2333 = vmatpush2.xpose.msra.mxu0 0.0
    %2334 = vmatprep.subr.mxu0 0.0
    %2335 = vmatpush2.xpose.msra.mxu0 0.0
    %2336 = vmatprep.subr.mxu0 0.0
    %2337 = vmatpush2.xpose.msra.mxu0 0.0
    %2338 = vmatprep.subr.mxu0 0.0
    %2339 = vmatpush2.xpose.msra.mxu0 0.0
    %2340 = vmatprep.subr.mxu0 0.0
    %2341 = vmatpush2.xpose.msra.mxu0 0.0
    %2342 = vmatprep.subr.mxu0 0.0
    %2343 = vmatpush2.xpose.msra.mxu0 0.0
    %2344 = vmatprep.subr.mxu0 0.0
    %2345 = vmatpush2.xpose.msra.mxu0 0.0
    %2346 = vmatprep.subr.mxu0 0.0
    %2347 = vmatpush2.xpose.msra.mxu0 0.0
    %2348 = vmatprep.subr.mxu0 0.0
    %2349 = vmatpush2.xpose.msra.mxu0 0.0
    %2350 = vmatprep.subr.mxu0 0.0
    %2351 = vmatpush2.xpose.msra.mxu0 0.0
    %2352 = vmatprep.subr.mxu0 0.0
    %2353 = vmatpush2.xpose.msra.mxu0 0.0
    %2354 = vmatprep.subr.mxu0 0.0
    %2355 = vmatpush2.xpose.msra.mxu0 0.0
    %2356 = vmatprep.mubr.f32.mxu0 0.0
    %2357 = vmatmul.mubr.f32.gmra.mxu0 %v2290
    %v2358 = vpop.f32.mrf.mxu0
    %v2359 = vadd.f32 %v28, %v2358
    %v2360 = vpop.f32.mrf.mxu0
    %2361 = vmatprep.mubr.f32.mxu0 0.0
    %2362 = vmatmul.mubr.f32.gmra.mxu0 %v2291
    %v2363 = vpop.f32.mrf.mxu0
    %v2364 = vadd.f32 %v29, %v2363
    %v2365 = vpop.f32.mrf.mxu0
    %2366 = vdwg.mxu0
    %v2367 = vsel %vm458, %v2359, -inf
    %2368 = vmax.xlane.f32.xlu0 %v2367
    %v2369 = vpop.xlane.xlu0 %2368
    %v2370 = vsel %vm458, %v2364, -inf
    %2371 = vmax.xlane.f32.xlu0 %v2370
    %v2372 = vpop.xlane.xlu0 %2371
    %v2373 = vsub.f32 %v2359, %v2369
    %v2374 = vsub.f32 %v2364, %v2372
    %v2375 = vmul.f32 %v2373, 1.442695
    %v2376 = vpow.pop %v2375
    %v2377 = vmul.f32 %v2374, 1.442695
    %v2378 = vpow.pop %v2377
    %v2379 = vsel %vm458, %v2376, 0.0
    %2380 = vadd.xlane.f32.xlu0 %v2379
    %v2381 = vpop.xlane.xlu0 %2380
    %v2382 = vsel %vm458, %v2378, 0.0
    %2383 = vadd.xlane.f32.xlu0 %v2382
    %v2384 = vpop.xlane.xlu0 %2383
    %v2385 = vrcp.pop %v2381
    %v2386 = vmul.f32 %v2376, %v2385
    %v2387 = vrcp.pop %v2384
    %v2388 = vmul.f32 %v2378, %v2387
    %v2389 = vmul.f32 %v1734, %v38
    %v2390 = vmul.f32 %v1739, %v39
    %v2392 = vsel %vm458, %v2386, 0
    %v2395 = vsel %vm458, %v2388, 0
    %2397 = vmatprep.subr.mxu0 0.0
    %2398 = vmatpush1.msra.mxu0 0.0
    %2399 = vmatprep.subr.mxu0 0.0
    %2400 = vmatpush1.msra.mxu0 0.0
    %2401 = vmatprep.subr.mxu0 0.0
    %2402 = vmatpush1.msra.mxu0 0.0
    %2403 = vmatprep.subr.mxu0 0.0
    %2404 = vmatpush1.msra.mxu0 0.0
    %2405 = vmatprep.subr.mxu0 0.0
    %2406 = vmatpush1.msra.mxu0 0.0
    %2407 = vmatprep.subr.mxu0 0.0
    %2408 = vmatpush1.msra.mxu0 0.0
    %2409 = vmatprep.subr.mxu0 0.0
    %2410 = vmatpush1.msra.mxu0 0.0
    %2411 = vmatprep.subr.mxu0 0.0
    %2412 = vmatpush1.msra.mxu0 0.0
    %2413 = vmatprep.subr.mxu0 0.0
    %2414 = vmatpush1.msra.mxu0 0.0
    %2415 = vmatprep.subr.mxu0 0.0
    %2416 = vmatpush1.msra.mxu0 0.0
    %2417 = vmatprep.subr.mxu0 0.0
    %2418 = vmatpush1.msra.mxu0 0.0
    %2419 = vmatprep.subr.mxu0 0.0
    %2420 = vmatpush1.msra.mxu0 0.0
    %2421 = vmatprep.subr.mxu0 0.0
    %2422 = vmatpush1.msra.mxu0 0.0
    %2423 = vmatprep.subr.mxu0 0.0
    %2424 = vmatpush1.msra.mxu0 0.0
    %2425 = vmatprep.subr.mxu0 0.0
    %2426 = vmatpush1.msra.mxu0 %v2390
    %2427 = vmatprep.subr.mxu0 0.0
    %2428 = vmatpush1.msra.mxu0 %v2389
    %2429 = vmatprep.subr.mxu0 0.0
    %2430 = vmatpush2.msra.mxu0 0.0
    %2431 = vmatprep.subr.mxu0 0.0
    %2432 = vmatpush2.msra.mxu0 0.0
    %2433 = vmatprep.subr.mxu0 0.0
    %2434 = vmatpush2.msra.mxu0 0.0
    %2435 = vmatprep.subr.mxu0 0.0
    %2436 = vmatpush2.msra.mxu0 0.0
    %2437 = vmatprep.subr.mxu0 0.0
    %2438 = vmatpush2.msra.mxu0 0.0
    %2439 = vmatprep.subr.mxu0 0.0
    %2440 = vmatpush2.msra.mxu0 0.0
    %2441 = vmatprep.subr.mxu0 0.0
    %2442 = vmatpush2.msra.mxu0 0.0
    %2443 = vmatprep.subr.mxu0 0.0
    %2444 = vmatpush2.msra.mxu0 0.0
    %2445 = vmatprep.subr.mxu0 0.0
    %2446 = vmatpush2.msra.mxu0 0.0
    %2447 = vmatprep.subr.mxu0 0.0
    %2448 = vmatpush2.msra.mxu0 0.0
    %2449 = vmatprep.subr.mxu0 0.0
    %2450 = vmatpush2.msra.mxu0 0.0
    %2451 = vmatprep.subr.mxu0 0.0
    %2452 = vmatpush2.msra.mxu0 0.0
    %2453 = vmatprep.subr.mxu0 0.0
    %2454 = vmatpush2.msra.mxu0 0.0
    %2455 = vmatprep.subr.mxu0 0.0
    %2456 = vmatpush2.msra.mxu0 0.0
    %2457 = vmatprep.subr.mxu0 0.0
    %2458 = vmatpush2.msra.mxu0 0.0
    %2459 = vmatprep.subr.mxu0 0.0
    %2460 = vmatpush2.msra.mxu0 0.0
    %2461 = vmatprep.mubr.f32.mxu0 0.0
    %2462 = vmatmul.mubr.f32.gmra.mxu0 %v2392
    %v2463 = vpop.f32.mrf.mxu0
    %v2464 = vadd.f32 0.0, %v2463
    %v2465 = vpop.f32.mrf.mxu0
    %2466 = vmatprep.mubr.f32.mxu0 0.0
    %2467 = vmatmul.mubr.f32.gmra.mxu0 %v2395
    %v2468 = vpop.f32.mrf.mxu0
    %v2469 = vadd.f32 0.0, %v2468
    %v2470 = vpop.f32.mrf.mxu0
    %2471 = vdwg.mxu0
    %v2472 = vadd.f32 %v2288, %v2464
    %v2473 = vadd.f32 %v2289, %v2469
    %2474 = vmatprep.subr.mxu0 0.0
    %2475 = vmatpush1.msra.mxu0 %v1464
    %2476 = vmatprep.subr.mxu0 0.0
    %2477 = vmatpush1.msra.mxu0 %v1463
    %2478 = vmatprep.subr.mxu0 0.0
    %2479 = vmatpush1.msra.mxu0 %v1462
    %2480 = vmatprep.subr.mxu0 0.0
    %2481 = vmatpush1.msra.mxu0 %v1461
    %2482 = vmatprep.subr.mxu0 0.0
    %2483 = vmatpush1.msra.mxu0 %v1460
    %2484 = vmatprep.subr.mxu0 0.0
    %2485 = vmatpush1.msra.mxu0 %v1459
    %2486 = vmatprep.subr.mxu0 0.0
    %2487 = vmatpush1.msra.mxu0 %v1458
    %2488 = vmatprep.subr.mxu0 0.0
    %2489 = vmatpush1.msra.mxu0 %v1457
    %2490 = vmatprep.subr.mxu0 0.0
    %2491 = vmatpush1.msra.mxu0 %v1456
    %2492 = vmatprep.subr.mxu0 0.0
    %2493 = vmatpush1.msra.mxu0 %v1455
    %2494 = vmatprep.subr.mxu0 0.0
    %2495 = vmatpush1.msra.mxu0 %v1454
    %2496 = vmatprep.subr.mxu0 0.0
    %2497 = vmatpush1.msra.mxu0 %v1453
    %2498 = vmatprep.subr.mxu0 0.0
    %2499 = vmatpush1.msra.mxu0 %v1452
    %2500 = vmatprep.subr.mxu0 0.0
    %2501 = vmatpush1.msra.mxu0 %v1451
    %2502 = vmatprep.subr.mxu0 0.0
    %2503 = vmatpush1.msra.mxu0 %v1450
    %2504 = vmatprep.subr.mxu0 0.0
    %2505 = vmatpush1.msra.mxu0 %v1449
    %2506 = vmatprep.subr.mxu0 0.0
    %2507 = vmatpush2.msra.mxu0 0.0
    %2508 = vmatprep.subr.mxu0 0.0
    %2509 = vmatpush2.msra.mxu0 0.0
    %2510 = vmatprep.subr.mxu0 0.0
    %2511 = vmatpush2.msra.mxu0 0.0
    %2512 = vmatprep.subr.mxu0 0.0
    %2513 = vmatpush2.msra.mxu0 0.0
    %2514 = vmatprep.subr.mxu0 0.0
    %2515 = vmatpush2.msra.mxu0 0.0
    %2516 = vmatprep.subr.mxu0 0.0
    %2517 = vmatpush2.msra.mxu0 0.0
    %2518 = vmatprep.subr.mxu0 0.0
    %2519 = vmatpush2.msra.mxu0 0.0
    %2520 = vmatprep.subr.mxu0 0.0
    %2521 = vmatpush2.msra.mxu0 0.0
    %2522 = vmatprep.subr.mxu0 0.0
    %2523 = vmatpush2.msra.mxu0 0.0
    %2524 = vmatprep.subr.mxu0 0.0
    %2525 = vmatpush2.msra.mxu0 0.0
    %2526 = vmatprep.subr.mxu0 0.0
    %2527 = vmatpush2.msra.mxu0 0.0
    %2528 = vmatprep.subr.mxu0 0.0
    %2529 = vmatpush2.msra.mxu0 0.0
    %2530 = vmatprep.subr.mxu0 0.0
    %2531 = vmatpush2.msra.mxu0 0.0
    %2532 = vmatprep.subr.mxu0 0.0
    %2533 = vmatpush2.msra.mxu0 0.0
    %2534 = vmatprep.subr.mxu0 0.0
    %2535 = vmatpush2.msra.mxu0 0.0
    %2536 = vmatprep.subr.mxu0 0.0
    %2537 = vmatpush2.msra.mxu0 0.0
    %2538 = vmatprep.mubr.f32.mxu0 0.0
    %2539 = vmatmul.mubr.f32.gmra.mxu0 %v2472
    %v2540 = vpop.f32.mrf.mxu0
    %v2541 = vadd.f32 %v1503, %v2540
    %v2542 = vpop.f32.mrf.mxu0
    %2543 = vmatprep.mubr.f32.mxu0 0.0
    %2544 = vmatmul.mubr.f32.gmra.mxu0 %v2473
    %v2545 = vpop.f32.mrf.mxu0
    %v2546 = vadd.f32 %v1504, %v2545
    %v2547 = vpop.f32.mrf.mxu0
    %2548 = vdwg.mxu0
    %v2549 = vadd.f32 %v1399, %v2541
    %v2550 = vadd.f32 %v1400, %v2546
    %2551 = vadd.xlane.f32.xlu0 %v2549
    %v2552 = vpop.xlane.xlu0 %2551
    %2553 = vadd.xlane.f32.xlu0 %v2550
    %v2554 = vpop.xlane.xlu0 %2553
    %v2555 = vmul.f32 %v2552, 0.03125
    %v2556 = vmul.f32 %v2554, 0.03125
    %v2557 = vsub.f32 %v2549, %v2555
    %v2558 = vsub.f32 %v2550, %v2556
    %v2559 = vmul.f32 %v2557, %v30
    %v2560 = vmul.f32 %v2558, %v31
    %v2561 = vmul.f32 %v2559, %v2559
    %v2562 = vmul.f32 %v2560, %v2560
    %2563 = vadd.xlane.f32.xlu0 %v2561
    %v2564 = vpop.xlane.xlu0 %2563
    %2565 = vadd.xlane.f32.xlu0 %v2562
    %v2566 = vpop.xlane.xlu0 %2565
    %v2567 = vmul.f32 %v2564, 0.03125
    %v2568 = vmul.f32 %v2566, 0.03125
    %v2569 = vadd.f32 %v2567, 1e-05
    %v2570 = vadd.f32 %v2568, 1e-05
    %v2571 = vrsqrt.pop %v2569
    %v2572 = vrsqrt.pop %v2570
    %v2573 = vmul.f32 %v2557, %v2571
    %v2574 = vmul.f32 %v2558, %v2572
    %v2575 = vmul.f32 %v2573, %v1505
    %v2576 = vmul.f32 %v2574, %v1506
    %v2577 = vadd.f32 %v2575, %v1507
    %v2578 = vadd.f32 %v2576, %v1508
    %2579 = vmatprep.subr.mxu0 0.0
    %2580 = vmatpush1.msra.mxu0 %v1480
    %2581 = vmatprep.subr.mxu0 0.0
    %2582 = vmatpush1.msra.mxu0 %v1479
    %2583 = vmatprep.subr.mxu0 0.0
    %2584 = vmatpush1.msra.mxu0 %v1478
    %2585 = vmatprep.subr.mxu0 0.0
    %2586 = vmatpush1.msra.mxu0 %v1477
    %2587 = vmatprep.subr.mxu0 0.0
    %2588 = vmatpush1.msra.mxu0 %v1476
    %2589 = vmatprep.subr.mxu0 0.0
    %2590 = vmatpush1.msra.mxu0 %v1475
    %2591 = vmatprep.subr.mxu0 0.0
    %2592 = vmatpush1.msra.mxu0 %v1474
    %2593 = vmatprep.subr.mxu0 0.0
    %2594 = vmatpush1.msra.mxu0 %v1473
    %2595 = vmatprep.subr.mxu0 0.0
    %2596 = vmatpush1.msra.mxu0 %v1472
    %2597 = vmatprep.subr.mxu0 0.0
    %2598 = vmatpush1.msra.mxu0 %v1471
    %2599 = vmatprep.subr.mxu0 0.0
    %2600 = vmatpush1.msra.mxu0 %v1470
    %2601 = vmatprep.subr.mxu0 0.0
    %2602 = vmatpush1.msra.mxu0 %v1469
    %2603 = vmatprep.subr.mxu0 0.0
    %2604 = vmatpush1.msra.mxu0 %v1468
    %2605 = vmatprep.subr.mxu0 0.0
    %2606 = vmatpush1.msra.mxu0 %v1467
    %2607 = vmatprep.subr.mxu0 0.0
    %2608 = vmatpush1.msra.mxu0 %v1466
    %2609 = vmatprep.subr.mxu0 0.0
    %2610 = vmatpush1.msra.mxu0 %v1465
    %2611 = vmatprep.subr.mxu0 0.0
    %2612 = vmatpush2.msra.mxu0 0.0
    %2613 = vmatprep.subr.mxu0 0.0
    %2614 = vmatpush2.msra.mxu0 0.0
    %2615 = vmatprep.subr.mxu0 0.0
    %2616 = vmatpush2.msra.mxu0 0.0
    %2617 = vmatprep.subr.mxu0 0.0
    %2618 = vmatpush2.msra.mxu0 0.0
    %2619 = vmatprep.subr.mxu0 0.0
    %2620 = vmatpush2.msra.mxu0 0.0
    %2621 = vmatprep.subr.mxu0 0.0
    %2622 = vmatpush2.msra.mxu0 0.0
    %2623 = vmatprep.subr.mxu0 0.0
    %2624 = vmatpush2.msra.mxu0 0.0
    %2625 = vmatprep.subr.mxu0 0.0
    %2626 = vmatpush2.msra.mxu0 0.0
    %2627 = vmatprep.subr.mxu0 0.0
    %2628 = vmatpush2.msra.mxu0 0.0
    %2629 = vmatprep.subr.mxu0 0.0
    %2630 = vmatpush2.msra.mxu0 0.0
    %2631 = vmatprep.subr.mxu0 0.0
    %2632 = vmatpush2.msra.mxu0 0.0
    %2633 = vmatprep.subr.mxu0 0.0
    %2634 = vmatpush2.msra.mxu0 0.0
    %2635 = vmatprep.subr.mxu0 0.0
    %2636 = vmatpush2.msra.mxu0 0.0
    %2637 = vmatprep.subr.mxu0 0.0
    %2638 = vmatpush2.msra.mxu0 0.0
    %2639 = vmatprep.subr.mxu0 0.0
    %2640 = vmatpush2.msra.mxu0 0.0
    %2641 = vmatprep.subr.mxu0 0.0
    %2642 = vmatpush2.msra.mxu0 0.0
    %2643 = vmatprep.mubr.f32.mxu0 0.0
    %2644 = vmatmul.mubr.f32.gmra.mxu0 %v2577
    %v2645 = vpop.f32.mrf.mxu0
    %v2646 = vadd.f32 %v1509, %v2645
    %v2647 = vpop.f32.mrf.mxu0
    %2648 = vmatprep.mubr.f32.mxu0 0.0
    %2649 = vmatmul.mubr.f32.gmra.mxu0 %v2578
    %v2650 = vpop.f32.mrf.mxu0
    %v2651 = vadd.f32 %v1510, %v2650
    %v2652 = vpop.f32.mrf.mxu0
    %2653 = vdwg.mxu0
    %v2654 = vmax.f32 %v2646, 0.0
    %v2655 = vmax.f32 %v2651, 0.0
    %2656 = vmatprep.subr.mxu0 0.0
    %2657 = vmatpush1.msra.mxu0 %v1496
    %2658 = vmatprep.subr.mxu0 0.0
    %2659 = vmatpush1.msra.mxu0 %v1495
    %2660 = vmatprep.subr.mxu0 0.0
    %2661 = vmatpush1.msra.mxu0 %v1494
    %2662 = vmatprep.subr.mxu0 0.0
    %2663 = vmatpush1.msra.mxu0 %v1493
    %2664 = vmatprep.subr.mxu0 0.0
    %2665 = vmatpush1.msra.mxu0 %v1492
    %2666 = vmatprep.subr.mxu0 0.0
    %2667 = vmatpush1.msra.mxu0 %v1491
    %2668 = vmatprep.subr.mxu0 0.0
    %2669 = vmatpush1.msra.mxu0 %v1490
    %2670 = vmatprep.subr.mxu0 0.0
    %2671 = vmatpush1.msra.mxu0 %v1489
    %2672 = vmatprep.subr.mxu0 0.0
    %2673 = vmatpush1.msra.mxu0 %v1488
    %2674 = vmatprep.subr.mxu0 0.0
    %2675 = vmatpush1.msra.mxu0 %v1487
    %2676 = vmatprep.subr.mxu0 0.0
    %2677 = vmatpush1.msra.mxu0 %v1486
    %2678 = vmatprep.subr.mxu0 0.0
    %2679 = vmatpush1.msra.mxu0 %v1485
    %2680 = vmatprep.subr.mxu0 0.0
    %2681 = vmatpush1.msra.mxu0 %v1484
    %2682 = vmatprep.subr.mxu0 0.0
    %2683 = vmatpush1.msra.mxu0 %v1483
    %2684 = vmatprep.subr.mxu0 0.0
    %2685 = vmatpush1.msra.mxu0 %v1482
    %2686 = vmatprep.subr.mxu0 0.0
    %2687 = vmatpush1.msra.mxu0 %v1481
    %2688 = vmatprep.subr.mxu0 0.0
    %2689 = vmatpush2.msra.mxu0 0.0
    %2690 = vmatprep.subr.mxu0 0.0
    %2691 = vmatpush2.msra.mxu0 0.0
    %2692 = vmatprep.subr.mxu0 0.0
    %2693 = vmatpush2.msra.mxu0 0.0
    %2694 = vmatprep.subr.mxu0 0.0
    %2695 = vmatpush2.msra.mxu0 0.0
    %2696 = vmatprep.subr.mxu0 0.0
    %2697 = vmatpush2.msra.mxu0 0.0
    %2698 = vmatprep.subr.mxu0 0.0
    %2699 = vmatpush2.msra.mxu0 0.0
    %2700 = vmatprep.subr.mxu0 0.0
    %2701 = vmatpush2.msra.mxu0 0.0
    %2702 = vmatprep.subr.mxu0 0.0
    %2703 = vmatpush2.msra.mxu0 0.0
    %2704 = vmatprep.subr.mxu0 0.0
    %2705 = vmatpush2.msra.mxu0 0.0
    %2706 = vmatprep.subr.mxu0 0.0
    %2707 = vmatpush2.msra.mxu0 0.0
    %2708 = vmatprep.subr.mxu0 0.0
    %2709 = vmatpush2.msra.mxu0 0.0
    %2710 = vmatprep.subr.mxu0 0.0
    %2711 = vmatpush2.msra.mxu0 0.0
    %2712 = vmatprep.subr.mxu0 0.0
    %2713 = vmatpush2.msra.mxu0 0.0
    %2714 = vmatprep.subr.mxu0 0.0
    %2715 = vmatpush2.msra.mxu0 0.0
    %2716 = vmatprep.subr.mxu0 0.0
    %2717 = vmatpush2.msra.mxu0 0.0
    %2718 = vmatprep.subr.mxu0 0.0
    %2719 = vmatpush2.msra.mxu0 0.0
    %2720 = vmatprep.mubr.f32.mxu0 0.0
    %2721 = vmatmul.mubr.f32.gmra.mxu0 %v2654
    %v2722 = vpop.f32.mrf.mxu0
    %v2723 = vadd.f32 %v1511, %v2722
    %v2724 = vpop.f32.mrf.mxu0
    %2725 = vmatprep.mubr.f32.mxu0 0.0
    %2726 = vmatmul.mubr.f32.gmra.mxu0 %v2655
    %v2727 = vpop.f32.mrf.mxu0
    %v2728 = vadd.f32 %v1512, %v2727
    %v2729 = vpop.f32.mrf.mxu0
    %2730 = vdwg.mxu0
    %v2731 = vadd.f32 %v2577, %v2723
    %v2732 = vadd.f32 %v2578, %v2728
    %2733 = vadd.xlane.f32.xlu0 %v2731
    %v2734 = vpop.xlane.xlu0 %2733
    %2735 = vadd.xlane.f32.xlu0 %v2732
    %v2736 = vpop.xlane.xlu0 %2735
    %v2737 = vmul.f32 %v2734, 0.03125
    %v2738 = vmul.f32 %v2736, 0.03125
    %v2739 = vsub.f32 %v2731, %v2737
    %v2740 = vsub.f32 %v2732, %v2738
    %v2741 = vmul.f32 %v2739, %v30
    %v2742 = vmul.f32 %v2740, %v31
    %v2743 = vmul.f32 %v2741, %v2741
    %v2744 = vmul.f32 %v2742, %v2742
    %2745 = vadd.xlane.f32.xlu0 %v2743
    %v2746 = vpop.xlane.xlu0 %2745
    %2747 = vadd.xlane.f32.xlu0 %v2744
    %v2748 = vpop.xlane.xlu0 %2747
    %v2749 = vmul.f32 %v2746, 0.03125
    %v2750 = vmul.f32 %v2748, 0.03125
    %v2751 = vadd.f32 %v2749, 1e-05
    %v2752 = vadd.f32 %v2750, 1e-05
    %v2753 = vrsqrt.pop %v2751
    %v2754 = vrsqrt.pop %v2752
    %v2755 = vmul.f32 %v2739, %v2753
    %v2756 = vmul.f32 %v2740, %v2754
    %v2757 = vmul.f32 %v2755, %v1513
    %v2758 = vmul.f32 %v2756, %v1514
    %v2759 = vadd.f32 %v2757, %v1515
    %v2760 = vadd.f32 %v2758, %v1516
    %2761 = vst [vmem:[#allocation5] sm:$0xff] %v2759
    %2762 = vst [vmem:[#allocation5 + $0x8] sm:$0xff] %v2760
    // Predicated region
    $region14: #{transformer_encoder.1} parent=1 // pred_check
      _
    $region15: #{transformer_encoder.1} parent=1 // pred_check_branch
      %2764 = sbr.rel (0) target = $region17
    $region16: #{transformer_encoder.1} parent=1 // pred_region
      %s2766 = ssub.s32 256, 256
      %2767 = vsyncadd [#allocation4], %s2766
      %s2768 = sshll.u32 [#allocation5], 4
      %s2769 = int_to_ptr.vmem [resolvable:$true] %s2768
      %2774 = dma.vmem_to_hbm [thread:$0]  %s2769, 256, %s2, [#allocation4], 128, 128, 8
    $region17: #{transformer_encoder.1} parent=1 // pred_fallthru
      _
    // Predicated region
    $region18: #{transformer_encoder.1} parent=1 // pred_check
      _
    $region19: #{transformer_encoder.1} parent=1 // pred_check_branch
      %2776 = sbr.rel (0) target = $region21
    $region20: #{transformer_encoder.1} parent=1 // pred_region
      %2777 = dma.done [#allocation4], 256
    $region21: #{transformer_encoder.1} parent=1 // pred_fallthru
      _
    %2778 = vsyncpa [#allocation3], 1
    %2779 = vsyncpa [#allocation4], 1

</llo_original>
